<compile_context>
chip_gen: v5e
topology: v5e:2x2
jax: 0.10.0
libtpu: 0.0.40
codegen_flags: <defaults>
</compile_context>

<pallas_src>
import functools

import jax
import jax.numpy as jnp
from jax.experimental import pallas as pl
from jax.experimental.pallas import tpu as pltpu


class Config:
    def __init__(self, **kw):
        self.__dict__.update(kw)


# ----------------------------------------------------------------------------
# Parameter construction (emulates nn.Conv1d / nn.PReLU default init).
# Conv weights are stored as (K, Cin, Cout) == torch_weight.permute(2, 1, 0);
# the final 1-channel convs are stored as (K, Cin) == torch_weight[0].T.
# ----------------------------------------------------------------------------
def init_params(key, d_motion, config):
    c_in = d_motion - 3
    dm = config.d_model

    def conv_init(k, K, cin, cout):
        kw, kb = jax.random.split(k)
        bound = 1.0 / float(cin * K) ** 0.5
        w = jax.random.uniform(kw, (K, cin, cout), jnp.float32, -bound, bound)
        b = jax.random.uniform(kb, (cout,), jnp.float32, -bound, bound)
        return w, b

    keys = jax.random.split(key, 6)
    p = {}
    p["ws1"], p["bs1"] = conv_init(keys[0], 5, c_in, dm)
    p["ws2"], p["bs2"] = conv_init(keys[1], 5, dm, dm)
    w, b = conv_init(keys[2], 5, dm, 1)
    p["ws3"], p["bs3"] = w[:, :, 0], b[0]
    p["wl1"], p["bl1"] = conv_init(keys[3], 15, c_in, dm)
    p["wl2"], p["bl2"] = conv_init(keys[4], 15, dm, dm)
    w, b = conv_init(keys[5], 15, dm, 1)
    p["wl3"], p["bl3"] = w[:, :, 0], b[0]
    # nn.PReLU() slopes: [short_prelu1, short_prelu2, long_prelu1, long_prelu2]
    p["alphas"] = jnp.full((4,), 0.25, jnp.float32)
    return p


# ----------------------------------------------------------------------------
# Fused forward: one pallas_call for both branches / all six convs.
# ----------------------------------------------------------------------------
def refine_discriminator_forward(params, x, config, *, batch_block=8):
    B, T, C = x.shape
    dm = config.d_model
    width = 2 * dm                 # fused channel width: [short | long]
    K = 15                         # long kernel; the short (5) kernel sits at taps 5..9
    OFF = 8                        # sublane-aligned start row of the live region
    assert C <= width, "fused layout assumes d_motion - 3 <= 2 * d_model"
    # TODO(synk): support C > 2*d_model by widening the fused channel layout.

    f32, bf16 = jnp.float32, jnp.bfloat16

    t_pad = ((T + 7) // 8) * 8                       # sublane-aligned time extent
    bblk = max(1, min(batch_block, B, max(1, 128 // t_pad)))
    n_blk = -(-B // bblk)                            # cdiv
    b_pad = n_blk * bblk
    m = bblk * t_pad                                 # matmul M dimension

    # ---- fuse the two branches along the channel axis (outside the kernel) ----
    w1f = jnp.zeros((K, width, width), f32)
    w1f = w1f.at[5:10, :C, :dm].set(params["ws1"])
    w1f = w1f.at[:, :C, dm:].set(params["wl1"])
    w2f = jnp.zeros((K, width, width), f32)
    w2f = w2f.at[5:10, :dm, :dm].set(params["ws2"])
    w2f = w2f.at[:, dm:, dm:].set(params["wl2"])
    w3f = jnp.zeros((K, width), f32)
    w3f = w3f.at[5:10, :dm].set(params["ws3"])
    w3f = w3f.at[:, dm:].set(params["wl3"])
    w1f = w1f.astype(bf16)
    w2f = w2f.astype(bf16)

    b1f = jnp.concatenate([params["bs1"], params["bl1"]])[None, :].astype(f32)
    b2f = jnp.concatenate([params["bs2"], params["bl2"]])[None, :].astype(f32)
    b3f = jnp.stack([params["bs3"], params["bl3"]]).astype(f32)       # (2,)

    a = params["alphas"]
    avec = jnp.stack([
        jnp.concatenate([jnp.full((dm,), a[0]), jnp.full((dm,), a[2])]),
        jnp.concatenate([jnp.full((dm,), a[1]), jnp.full((dm,), a[3])]),
    ]).astype(f32)                                                     # (2, width)

    # ---- pad input to (b_pad, t_pad, width); extra rows / channels are zero ----
    xp = jnp.zeros((b_pad, t_pad, width), f32)
    xp = xp.at[:B, :T, :C].set(x.astype(f32))

    # ------------------------------------------------------------------------
    def kernel(b3_ref, x_ref, w1_ref, b1_ref, w2_ref, b2_ref, w3_ref, a_ref,
               o_ref, scratch):
        # Zero only the halo rows (8 leading + 8 trailing); live-region writes
        # below are full-width so no other stale data is ever visible.
        zero_halo = jnp.zeros((bblk, OFF, width), f32)
        scratch[:, :OFF, :] = zero_halo
        scratch[:, OFF + t_pad:, :] = zero_halo

        def conv_mxu(w_ref, bias):
            # 'same' conv as K shifted (m, width) @ (width, width) MXU matmuls.
            acc = jnp.zeros((m, width), f32)
            for k in range(K):                                  # static unroll
                xk = scratch[:, k + 1:k + 1 + t_pad, :]
                xk = xk.reshape(m, width).astype(bf16)
                acc = acc + jnp.dot(xk, w_ref[k],
                                    preferred_element_type=f32)
            return acc + bias

        def write_live(h2d):
            scratch[:, OFF:OFF + t_pad, :] = h2d.reshape(bblk, t_pad, width)
            if t_pad > T:
                # keep zero 'same'-padding semantics for the padded time rows
                scratch[:, OFF + T:OFF + t_pad, :] = jnp.zeros(
                    (bblk, t_pad - T, width), f32)

        # stage the (channel/time zero-padded) input block
        scratch[:, OFF:OFF + t_pad, :] = x_ref[...]

        # layer 1 + PReLU (per-channel slopes: short | long)
        h = conv_mxu(w1_ref, b1_ref[...])
        h = jnp.where(h >= 0.0, h, h * a_ref[0])
        write_live(h)

        # layer 2 + PReLU
        h = conv_mxu(w2_ref, b2_ref[...])
        h = jnp.where(h >= 0.0, h, h * a_ref[1])
        write_live(h)

        # layer 3: both 1-channel convs via elementwise accumulate + one reduce
        acc = jnp.zeros((bblk, t_pad, width), f32)
        for k in range(K):
            acc = acc + scratch[:, k + 1:k + 1 + t_pad, :] * w3_ref[k]
        logit_s = jnp.sum(acc[:, :, :dm], axis=-1, keepdims=True) + b3_ref[0]
        logit_l = jnp.sum(acc[:, :, dm:], axis=-1, keepdims=True) + b3_ref[1]
        o_ref[:, :, 0:1] = (1.0 / (1.0 + jnp.exp(-logit_s))).astype(o_ref.dtype)
        o_ref[:, :, 1:2] = (1.0 / (1.0 + jnp.exp(-logit_l))).astype(o_ref.dtype)

    def const_spec(shape):
        n = len(shape)
        return pl.BlockSpec(shape, lambda b, n=n: (0,) * n)

    out = pl.pallas_call(
        kernel,
        out_shape=jax.ShapeDtypeStruct((b_pad, t_pad, 2), jnp.float32),
        grid=(n_blk,),
        in_specs=[
            pl.BlockSpec(memory_space=pltpu.MemorySpace.SMEM),         # b3 (2,)
            pl.BlockSpec((bblk, t_pad, width), lambda b: (b, 0, 0)),   # x block
            const_spec((K, width, width)),                             # w1 (bf16)
            const_spec((1, width)),                                    # b1
            const_spec((K, width, width)),                             # w2 (bf16)
            const_spec((1, width)),                                    # b2
            const_spec((K, width)),                                    # w3 (f32)
            const_spec((2, width)),                                    # PReLU slopes
        ],
        out_specs=pl.BlockSpec((bblk, t_pad, 2), lambda b: (b, 0, 0)),
        scratch_shapes=[pltpu.VMEM((bblk, t_pad + 2 * OFF, width), f32)],
        compiler_params=pltpu.CompilerParams(
            dimension_semantics=("parallel",)),
    )(b3f, xp, w1f, b1f, w2f, b2f, w3f, avec)

    # (b_pad, t_pad, 2) -> (B, 2, T), matching the PyTorch output layout.
    return jnp.transpose(out[:B, :T, :], (0, 2, 1))


# ----------------------------------------------------------------------------
# Pure-JAX reference mirroring the kernel's numerics (bf16 matmul operands,
# f32 accumulation / activations), computed per branch (no fusion) so it also
# independently validates the channel-concatenation / tap-embedding math.
# ----------------------------------------------------------------------------
def refine_discriminator_ref(params, x):
    B, T, _ = x.shape
    f32 = jnp.float32
    rnd = lambda v: v.astype(jnp.bfloat16).astype(f32)

    def conv_mxu_like(h, w, b, K):
        pad = K // 2
        hp = jnp.pad(h, ((0, 0), (pad, pad), (0, 0)))
        y = jnp.zeros((B, T, w.shape[-1]), f32) + b
        for k in range(K):
            y = y + jnp.einsum("btc,cd->btd", rnd(hp[:, k:k + T]), rnd(w[k]),
                               preferred_element_type=f32)
        return y

    def conv_vpu_like(h, w, b, K):          # final 1-channel conv, exact f32
        pad = K // 2
        hp = jnp.pad(h, ((0, 0), (pad, pad), (0, 0)))
        y = jnp.zeros((B, T), f32) + b
        for k in range(K):
            y = y + jnp.sum(hp[:, k:k + T] * w[k][None, None, :], axis=-1)
        return y

    def prelu(h, al):
        return jnp.where(h >= 0, h, al * h)

    a = params["alphas"]

    def branch(w1, b1, w2, b2, w3, b3, K, a1, a2):
        h = prelu(conv_mxu_like(x.astype(f32), w1, b1, K), a1)
        h = prelu(conv_mxu_like(h, w2, b2, K), a2)
        return jax.nn.sigmoid(conv_vpu_like(h, w3, b3, K))     # (B, T)

    s = branch(params["ws1"], params["bs1"], params["ws2"], params["bs2"],
               params["ws3"], params["bs3"], 5, a[0], a[1])
    l = branch(params["wl1"], params["bl1"], params["wl2"], params["bl2"],
               params["wl3"], params["bl3"], 15, a[2], a[3])
    return jnp.stack([s, l], axis=1)                           # (B, 2, T)


# ----------------------------------------------------------------------------
if __name__ == "__main__":
    cfg = Config(d_model=32)
    d_motion = 16                      # conv input channels = d_motion - 3 = 13
    B, T = 2, 16

    root = jax.random.PRNGKey(0)
    k_param, k_x = jax.random.split(root)
    params = init_params(k_param, d_motion, cfg)
    x = jax.random.normal(k_x, (B, T, d_motion - 3), jnp.float32)

    fwd = jax.jit(functools.partial(refine_discriminator_forward, config=cfg))
    out = fwd(params, x)
    jax.block_until_ready(out)

    ref = refine_discriminator_ref(params, x)

    assert out.shape == (B, 2, T), out.shape
    assert bool(jnp.all(jnp.isfinite(out)))
    assert bool(jnp.all((out >= 0) & (out <= 1)))
    max_err = float(jnp.max(jnp.abs(out - ref)))
    assert max_err < 1e-3, f"max |kernel - ref| = {max_err}"
    print("KERNEL_OK")
</pallas_src>

<mosaic_0001>
module attributes {stable_mosaic.version = 11 : i64} {
  func.func @kernel(%arg0: i32, %arg1: memref<2xf32, #tpu.memory_space<smem>>, %arg2: memref<2x16x64xf32, #tpu.memory_space<vmem>>, %arg3: memref<15x64x64xbf16, #tpu.memory_space<vmem>>, %arg4: memref<1x64xf32, #tpu.memory_space<vmem>>, %arg5: memref<15x64x64xbf16, #tpu.memory_space<vmem>>, %arg6: memref<1x64xf32, #tpu.memory_space<vmem>>, %arg7: memref<15x64xf32, #tpu.memory_space<vmem>>, %arg8: memref<2x64xf32, #tpu.memory_space<vmem>>, %arg9: memref<2x16x2xf32, #tpu.memory_space<vmem>>, %arg10: memref<2x32x64xf32, #tpu.memory_space<vmem>>) attributes {dimension_semantics = [#tpu.dimension_semantics<parallel>], iteration_bounds = array<i64: 1>, scalar_prefetch = 0 : i64, scratch_operands = 1 : i64, tpu.core_type = #tpu.core_type<tc>, window_params = [{transform_indices = @transform_0, window_bounds = array<i64: 2>}, {transform_indices = @transform_1, window_bounds = array<i64: 2, 16, 64>}, {pipeline_mode = #tpu.pipeline_mode<synchronous>, transform_indices = @transform_2, window_bounds = array<i64: 15, 64, 64>}, {pipeline_mode = #tpu.pipeline_mode<synchronous>, transform_indices = @transform_3, window_bounds = array<i64: 1, 64>}, {pipeline_mode = #tpu.pipeline_mode<synchronous>, transform_indices = @transform_4, window_bounds = array<i64: 15, 64, 64>}, {pipeline_mode = #tpu.pipeline_mode<synchronous>, transform_indices = @transform_5, window_bounds = array<i64: 1, 64>}, {pipeline_mode = #tpu.pipeline_mode<synchronous>, transform_indices = @transform_6, window_bounds = array<i64: 15, 64>}, {pipeline_mode = #tpu.pipeline_mode<synchronous>, transform_indices = @transform_7, window_bounds = array<i64: 2, 64>}, {transform_indices = @transform_8, window_bounds = array<i64: 2, 16, 2>}]} {
    %cst = arith.constant 0.000000e+00 : f32
    %0 = vector.broadcast %cst : f32 to vector<2x8x64xf32>
    %c0 = arith.constant 0 : index
    %c0_0 = arith.constant 0 : index
    %c0_1 = arith.constant 0 : index
    %1 = vector.load %arg10[%c0, %c0_0, %c0_1] : memref<2x32x64xf32, #tpu.memory_space<vmem>>, vector<2x8x64xf32>
    tpu.vector_store %arg10[%c0, %c0_0, %c0_1], %0 {strides = array<i32>} : memref<2x32x64xf32, #tpu.memory_space<vmem>>, vector<2x8x64xf32>,
    %c0_2 = arith.constant 0 : index
    %c24 = arith.constant 24 : index
    %c0_3 = arith.constant 0 : index
    %2 = vector.load %arg10[%c0_2, %c24, %c0_3] : memref<2x32x64xf32, #tpu.memory_space<vmem>>, vector<2x8x64xf32>
    tpu.vector_store %arg10[%c0_2, %c24, %c0_3], %0 {strides = array<i32>} : memref<2x32x64xf32, #tpu.memory_space<vmem>>, vector<2x8x64xf32>,
    %c0_4 = arith.constant 0 : index
    %c0_5 = arith.constant 0 : index
    %c0_6 = arith.constant 0 : index
    %3 = vector.load %arg2[%c0_4, %c0_5, %c0_6] : memref<2x16x64xf32, #tpu.memory_space<vmem>>, vector<2x16x64xf32>
    %c0_7 = arith.constant 0 : index
    %c8 = arith.constant 8 : index
    %c0_8 = arith.constant 0 : index
    %4 = vector.load %arg10[%c0_7, %c8, %c0_8] : memref<2x32x64xf32, #tpu.memory_space<vmem>>, vector<2x16x64xf32>
    tpu.vector_store %arg10[%c0_7, %c8, %c0_8], %3 {strides = array<i32>} : memref<2x32x64xf32, #tpu.memory_space<vmem>>, vector<2x16x64xf32>,
    %c0_9 = arith.constant 0 : index
    %c0_10 = arith.constant 0 : index
    %5 = vector.load %arg4[%c0_9, %c0_10] : memref<1x64xf32, #tpu.memory_space<vmem>>, vector<1x64xf32>
    %cst_11 = arith.constant 0.000000e+00 : f32
    %6 = vector.broadcast %cst_11 : f32 to vector<32x64xf32>
    %c0_12 = arith.constant 0 : index
    %c1 = arith.constant 1 : index
    %c0_13 = arith.constant 0 : index
    %7 = vector.load %arg10[%c0_12, %c1, %c0_13] : memref<2x32x64xf32, #tpu.memory_space<vmem>>, vector<2x16x64xf32>
    %8 = vector.shape_cast %7 : vector<2x16x64xf32> to vector<32x64xf32>
    %9 = arith.truncf %8 : vector<32x64xf32> to vector<32x64xbf16>
    %c0_14 = arith.constant 0 : index
    %c0_15 = arith.constant 0 : index
    %c0_16 = arith.constant 0 : index
    %10 = vector.load %arg3[%c0_14, %c0_15, %c0_16] : memref<15x64x64xbf16, #tpu.memory_space<vmem>>, vector<1x64x64xbf16>
    %11 = vector.shape_cast %10 : vector<1x64x64xbf16> to vector<64x64xbf16>
    %cst_17 = arith.constant dense<0.000000e+00> : vector<32x64xf32>
    %12 = tpu.matmul %9, %11, %cst_17 {dimension_numbers = #tpu.dot_dimension_numbers<[1], [0], [0], [1], [0, 0, 1, 1], [], []>} : vector<32x64xbf16>, vector<64x64xbf16>, vector<32x64xf32> -> vector<32x64xf32>
    %13 = arith.addf %6, %12 : vector<32x64xf32>
    %c0_18 = arith.constant 0 : index
    %c2 = arith.constant 2 : index
    %c0_19 = arith.constant 0 : index
    %14 = vector.load %arg10[%c0_18, %c2, %c0_19] : memref<2x32x64xf32, #tpu.memory_space<vmem>>, vector<2x16x64xf32>
    %15 = vector.shape_cast %14 : vector<2x16x64xf32> to vector<32x64xf32>
    %16 = arith.truncf %15 : vector<32x64xf32> to vector<32x64xbf16>
    %c1_20 = arith.constant 1 : index
    %c0_21 = arith.constant 0 : index
    %c0_22 = arith.constant 0 : index
    %17 = vector.load %arg3[%c1_20, %c0_21, %c0_22] : memref<15x64x64xbf16, #tpu.memory_space<vmem>>, vector<1x64x64xbf16>
    %18 = vector.shape_cast %17 : vector<1x64x64xbf16> to vector<64x64xbf16>
    %cst_23 = arith.constant dense<0.000000e+00> : vector<32x64xf32>
    %19 = tpu.matmul %16, %18, %cst_23 {dimension_numbers = #tpu.dot_dimension_numbers<[1], [0], [0], [1], [0, 0, 1, 1], [], []>} : vector<32x64xbf16>, vector<64x64xbf16>, vector<32x64xf32> -> vector<32x64xf32>
    %20 = arith.addf %13, %19 : vector<32x64xf32>
    %c0_24 = arith.constant 0 : index
    %c3 = arith.constant 3 : index
    %c0_25 = arith.constant 0 : index
    %21 = vector.load %arg10[%c0_24, %c3, %c0_25] : memref<2x32x64xf32, #tpu.memory_space<vmem>>, vector<2x16x64xf32>
    %22 = vector.shape_cast %21 : vector<2x16x64xf32> to vector<32x64xf32>
    %23 = arith.truncf %22 : vector<32x64xf32> to vector<32x64xbf16>
    %c2_26 = arith.constant 2 : index
    %c0_27 = arith.constant 0 : index
    %c0_28 = arith.constant 0 : index
    %24 = vector.load %arg3[%c2_26, %c0_27, %c0_28] : memref<15x64x64xbf16, #tpu.memory_space<vmem>>, vector<1x64x64xbf16>
    %25 = vector.shape_cast %24 : vector<1x64x64xbf16> to vector<64x64xbf16>
    %cst_29 = arith.constant dense<0.000000e+00> : vector<32x64xf32>
    %26 = tpu.matmul %23, %25, %cst_29 {dimension_numbers = #tpu.dot_dimension_numbers<[1], [0], [0], [1], [0, 0, 1, 1], [], []>} : vector<32x64xbf16>, vector<64x64xbf16>, vector<32x64xf32> -> vector<32x64xf32>
    %27 = arith.addf %20, %26 : vector<32x64xf32>
    %c0_30 = arith.constant 0 : index
    %c4 = arith.constant 4 : index
    %c0_31 = arith.constant 0 : index
    %28 = vector.load %arg10[%c0_30, %c4, %c0_31] : memref<2x32x64xf32, #tpu.memory_space<vmem>>, vector<2x16x64xf32>
    %29 = vector.shape_cast %28 : vector<2x16x64xf32> to vector<32x64xf32>
    %30 = arith.truncf %29 : vector<32x64xf32> to vector<32x64xbf16>
    %c3_32 = arith.constant 3 : index
    %c0_33 = arith.constant 0 : index
    %c0_34 = arith.constant 0 : index
    %31 = vector.load %arg3[%c3_32, %c0_33, %c0_34] : memref<15x64x64xbf16, #tpu.memory_space<vmem>>, vector<1x64x64xbf16>
    %32 = vector.shape_cast %31 : vector<1x64x64xbf16> to vector<64x64xbf16>
    %cst_35 = arith.constant dense<0.000000e+00> : vector<32x64xf32>
    %33 = tpu.matmul %30, %32, %cst_35 {dimension_numbers = #tpu.dot_dimension_numbers<[1], [0], [0], [1], [0, 0, 1, 1], [], []>} : vector<32x64xbf16>, vector<64x64xbf16>, vector<32x64xf32> -> vector<32x64xf32>
    %34 = arith.addf %27, %33 : vector<32x64xf32>
    %c0_36 = arith.constant 0 : index
    %c5 = arith.constant 5 : index
    %c0_37 = arith.constant 0 : index
    %35 = vector.load %arg10[%c0_36, %c5, %c0_37] : memref<2x32x64xf32, #tpu.memory_space<vmem>>, vector<2x16x64xf32>
    %36 = vector.shape_cast %35 : vector<2x16x64xf32> to vector<32x64xf32>
    %37 = arith.truncf %36 : vector<32x64xf32> to vector<32x64xbf16>
    %c4_38 = arith.constant 4 : index
    %c0_39 = arith.constant 0 : index
    %c0_40 = arith.constant 0 : index
    %38 = vector.load %arg3[%c4_38, %c0_39, %c0_40] : memref<15x64x64xbf16, #tpu.memory_space<vmem>>, vector<1x64x64xbf16>
    %39 = vector.shape_cast %38 : vector<1x64x64xbf16> to vector<64x64xbf16>
    %cst_41 = arith.constant dense<0.000000e+00> : vector<32x64xf32>
    %40 = tpu.matmul %37, %39, %cst_41 {dimension_numbers = #tpu.dot_dimension_numbers<[1], [0], [0], [1], [0, 0, 1, 1], [], []>} : vector<32x64xbf16>, vector<64x64xbf16>, vector<32x64xf32> -> vector<32x64xf32>
    %41 = arith.addf %34, %40 : vector<32x64xf32>
    %c0_42 = arith.constant 0 : index
    %c6 = arith.constant 6 : index
    %c0_43 = arith.constant 0 : index
    %42 = vector.load %arg10[%c0_42, %c6, %c0_43] : memref<2x32x64xf32, #tpu.memory_space<vmem>>, vector<2x16x64xf32>
    %43 = vector.shape_cast %42 : vector<2x16x64xf32> to vector<32x64xf32>
    %44 = arith.truncf %43 : vector<32x64xf32> to vector<32x64xbf16>
    %c5_44 = arith.constant 5 : index
    %c0_45 = arith.constant 0 : index
    %c0_46 = arith.constant 0 : index
    %45 = vector.load %arg3[%c5_44, %c0_45, %c0_46] : memref<15x64x64xbf16, #tpu.memory_space<vmem>>, vector<1x64x64xbf16>
    %46 = vector.shape_cast %45 : vector<1x64x64xbf16> to vector<64x64xbf16>
    %cst_47 = arith.constant dense<0.000000e+00> : vector<32x64xf32>
    %47 = tpu.matmul %44, %46, %cst_47 {dimension_numbers = #tpu.dot_dimension_numbers<[1], [0], [0], [1], [0, 0, 1, 1], [], []>} : vector<32x64xbf16>, vector<64x64xbf16>, vector<32x64xf32> -> vector<32x64xf32>
    %48 = arith.addf %41, %47 : vector<32x64xf32>
    %c0_48 = arith.constant 0 : index
    %c7 = arith.constant 7 : index
    %c0_49 = arith.constant 0 : index
    %49 = vector.load %arg10[%c0_48, %c7, %c0_49] : memref<2x32x64xf32, #tpu.memory_space<vmem>>, vector<2x16x64xf32>
    %50 = vector.shape_cast %49 : vector<2x16x64xf32> to vector<32x64xf32>
    %51 = arith.truncf %50 : vector<32x64xf32> to vector<32x64xbf16>
    %c6_50 = arith.constant 6 : index
    %c0_51 = arith.constant 0 : index
    %c0_52 = arith.constant 0 : index
    %52 = vector.load %arg3[%c6_50, %c0_51, %c0_52] : memref<15x64x64xbf16, #tpu.memory_space<vmem>>, vector<1x64x64xbf16>
    %53 = vector.shape_cast %52 : vector<1x64x64xbf16> to vector<64x64xbf16>
    %cst_53 = arith.constant dense<0.000000e+00> : vector<32x64xf32>
    %54 = tpu.matmul %51, %53, %cst_53 {dimension_numbers = #tpu.dot_dimension_numbers<[1], [0], [0], [1], [0, 0, 1, 1], [], []>} : vector<32x64xbf16>, vector<64x64xbf16>, vector<32x64xf32> -> vector<32x64xf32>
    %55 = arith.addf %48, %54 : vector<32x64xf32>
    %c0_54 = arith.constant 0 : index
    %c8_55 = arith.constant 8 : index
    %c0_56 = arith.constant 0 : index
    %56 = vector.load %arg10[%c0_54, %c8_55, %c0_56] : memref<2x32x64xf32, #tpu.memory_space<vmem>>, vector<2x16x64xf32>
    %57 = vector.shape_cast %56 : vector<2x16x64xf32> to vector<32x64xf32>
    %58 = arith.truncf %57 : vector<32x64xf32> to vector<32x64xbf16>
    %c7_57 = arith.constant 7 : index
    %c0_58 = arith.constant 0 : index
    %c0_59 = arith.constant 0 : index
    %59 = vector.load %arg3[%c7_57, %c0_58, %c0_59] : memref<15x64x64xbf16, #tpu.memory_space<vmem>>, vector<1x64x64xbf16>
    %60 = vector.shape_cast %59 : vector<1x64x64xbf16> to vector<64x64xbf16>
    %cst_60 = arith.constant dense<0.000000e+00> : vector<32x64xf32>
    %61 = tpu.matmul %58, %60, %cst_60 {dimension_numbers = #tpu.dot_dimension_numbers<[1], [0], [0], [1], [0, 0, 1, 1], [], []>} : vector<32x64xbf16>, vector<64x64xbf16>, vector<32x64xf32> -> vector<32x64xf32>
    %62 = arith.addf %55, %61 : vector<32x64xf32>
    %c0_61 = arith.constant 0 : index
    %c9 = arith.constant 9 : index
    %c0_62 = arith.constant 0 : index
    %63 = vector.load %arg10[%c0_61, %c9, %c0_62] : memref<2x32x64xf32, #tpu.memory_space<vmem>>, vector<2x16x64xf32>
    %64 = vector.shape_cast %63 : vector<2x16x64xf32> to vector<32x64xf32>
    %65 = arith.truncf %64 : vector<32x64xf32> to vector<32x64xbf16>
    %c8_63 = arith.constant 8 : index
    %c0_64 = arith.constant 0 : index
    %c0_65 = arith.constant 0 : index
    %66 = vector.load %arg3[%c8_63, %c0_64, %c0_65] : memref<15x64x64xbf16, #tpu.memory_space<vmem>>, vector<1x64x64xbf16>
    %67 = vector.shape_cast %66 : vector<1x64x64xbf16> to vector<64x64xbf16>
    %cst_66 = arith.constant dense<0.000000e+00> : vector<32x64xf32>
    %68 = tpu.matmul %65, %67, %cst_66 {dimension_numbers = #tpu.dot_dimension_numbers<[1], [0], [0], [1], [0, 0, 1, 1], [], []>} : vector<32x64xbf16>, vector<64x64xbf16>, vector<32x64xf32> -> vector<32x64xf32>
    %69 = arith.addf %62, %68 : vector<32x64xf32>
    %c0_67 = arith.constant 0 : index
    %c10 = arith.constant 10 : index
    %c0_68 = arith.constant 0 : index
    %70 = vector.load %arg10[%c0_67, %c10, %c0_68] : memref<2x32x64xf32, #tpu.memory_space<vmem>>, vector<2x16x64xf32>
    %71 = vector.shape_cast %70 : vector<2x16x64xf32> to vector<32x64xf32>
    %72 = arith.truncf %71 : vector<32x64xf32> to vector<32x64xbf16>
    %c9_69 = arith.constant 9 : index
    %c0_70 = arith.constant 0 : index
    %c0_71 = arith.constant 0 : index
    %73 = vector.load %arg3[%c9_69, %c0_70, %c0_71] : memref<15x64x64xbf16, #tpu.memory_space<vmem>>, vector<1x64x64xbf16>
    %74 = vector.shape_cast %73 : vector<1x64x64xbf16> to vector<64x64xbf16>
    %cst_72 = arith.constant dense<0.000000e+00> : vector<32x64xf32>
    %75 = tpu.matmul %72, %74, %cst_72 {dimension_numbers = #tpu.dot_dimension_numbers<[1], [0], [0], [1], [0, 0, 1, 1], [], []>} : vector<32x64xbf16>, vector<64x64xbf16>, vector<32x64xf32> -> vector<32x64xf32>
    %76 = arith.addf %69, %75 : vector<32x64xf32>
    %c0_73 = arith.constant 0 : index
    %c11 = arith.constant 11 : index
    %c0_74 = arith.constant 0 : index
    %77 = vector.load %arg10[%c0_73, %c11, %c0_74] : memref<2x32x64xf32, #tpu.memory_space<vmem>>, vector<2x16x64xf32>
    %78 = vector.shape_cast %77 : vector<2x16x64xf32> to vector<32x64xf32>
    %79 = arith.truncf %78 : vector<32x64xf32> to vector<32x64xbf16>
    %c10_75 = arith.constant 10 : index
    %c0_76 = arith.constant 0 : index
    %c0_77 = arith.constant 0 : index
    %80 = vector.load %arg3[%c10_75, %c0_76, %c0_77] : memref<15x64x64xbf16, #tpu.memory_space<vmem>>, vector<1x64x64xbf16>
    %81 = vector.shape_cast %80 : vector<1x64x64xbf16> to vector<64x64xbf16>
    %cst_78 = arith.constant dense<0.000000e+00> : vector<32x64xf32>
    %82 = tpu.matmul %79, %81, %cst_78 {dimension_numbers = #tpu.dot_dimension_numbers<[1], [0], [0], [1], [0, 0, 1, 1], [], []>} : vector<32x64xbf16>, vector<64x64xbf16>, vector<32x64xf32> -> vector<32x64xf32>
    %83 = arith.addf %76, %82 : vector<32x64xf32>
    %c0_79 = arith.constant 0 : index
    %c12 = arith.constant 12 : index
    %c0_80 = arith.constant 0 : index
    %84 = vector.load %arg10[%c0_79, %c12, %c0_80] : memref<2x32x64xf32, #tpu.memory_space<vmem>>, vector<2x16x64xf32>
    %85 = vector.shape_cast %84 : vector<2x16x64xf32> to vector<32x64xf32>
    %86 = arith.truncf %85 : vector<32x64xf32> to vector<32x64xbf16>
    %c11_81 = arith.constant 11 : index
    %c0_82 = arith.constant 0 : index
    %c0_83 = arith.constant 0 : index
    %87 = vector.load %arg3[%c11_81, %c0_82, %c0_83] : memref<15x64x64xbf16, #tpu.memory_space<vmem>>, vector<1x64x64xbf16>
    %88 = vector.shape_cast %87 : vector<1x64x64xbf16> to vector<64x64xbf16>
    %cst_84 = arith.constant dense<0.000000e+00> : vector<32x64xf32>
    %89 = tpu.matmul %86, %88, %cst_84 {dimension_numbers = #tpu.dot_dimension_numbers<[1], [0], [0], [1], [0, 0, 1, 1], [], []>} : vector<32x64xbf16>, vector<64x64xbf16>, vector<32x64xf32> -> vector<32x64xf32>
    %90 = arith.addf %83, %89 : vector<32x64xf32>
    %c0_85 = arith.constant 0 : index
    %c13 = arith.constant 13 : index
    %c0_86 = arith.constant 0 : index
    %91 = vector.load %arg10[%c0_85, %c13, %c0_86] : memref<2x32x64xf32, #tpu.memory_space<vmem>>, vector<2x16x64xf32>
    %92 = vector.shape_cast %91 : vector<2x16x64xf32> to vector<32x64xf32>
    %93 = arith.truncf %92 : vector<32x64xf32> to vector<32x64xbf16>
    %c12_87 = arith.constant 12 : index
    %c0_88 = arith.constant 0 : index
    %c0_89 = arith.constant 0 : index
    %94 = vector.load %arg3[%c12_87, %c0_88, %c0_89] : memref<15x64x64xbf16, #tpu.memory_space<vmem>>, vector<1x64x64xbf16>
    %95 = vector.shape_cast %94 : vector<1x64x64xbf16> to vector<64x64xbf16>
    %cst_90 = arith.constant dense<0.000000e+00> : vector<32x64xf32>
    %96 = tpu.matmul %93, %95, %cst_90 {dimension_numbers = #tpu.dot_dimension_numbers<[1], [0], [0], [1], [0, 0, 1, 1], [], []>} : vector<32x64xbf16>, vector<64x64xbf16>, vector<32x64xf32> -> vector<32x64xf32>
    %97 = arith.addf %90, %96 : vector<32x64xf32>
    %c0_91 = arith.constant 0 : index
    %c14 = arith.constant 14 : index
    %c0_92 = arith.constant 0 : index
    %98 = vector.load %arg10[%c0_91, %c14, %c0_92] : memref<2x32x64xf32, #tpu.memory_space<vmem>>, vector<2x16x64xf32>
    %99 = vector.shape_cast %98 : vector<2x16x64xf32> to vector<32x64xf32>
    %100 = arith.truncf %99 : vector<32x64xf32> to vector<32x64xbf16>
    %c13_93 = arith.constant 13 : index
    %c0_94 = arith.constant 0 : index
    %c0_95 = arith.constant 0 : index
    %101 = vector.load %arg3[%c13_93, %c0_94, %c0_95] : memref<15x64x64xbf16, #tpu.memory_space<vmem>>, vector<1x64x64xbf16>
    %102 = vector.shape_cast %101 : vector<1x64x64xbf16> to vector<64x64xbf16>
    %cst_96 = arith.constant dense<0.000000e+00> : vector<32x64xf32>
    %103 = tpu.matmul %100, %102, %cst_96 {dimension_numbers = #tpu.dot_dimension_numbers<[1], [0], [0], [1], [0, 0, 1, 1], [], []>} : vector<32x64xbf16>, vector<64x64xbf16>, vector<32x64xf32> -> vector<32x64xf32>
    %104 = arith.addf %97, %103 : vector<32x64xf32>
    %c0_97 = arith.constant 0 : index
    %c15 = arith.constant 15 : index
    %c0_98 = arith.constant 0 : index
    %105 = vector.load %arg10[%c0_97, %c15, %c0_98] : memref<2x32x64xf32, #tpu.memory_space<vmem>>, vector<2x16x64xf32>
    %106 = vector.shape_cast %105 : vector<2x16x64xf32> to vector<32x64xf32>
    %107 = arith.truncf %106 : vector<32x64xf32> to vector<32x64xbf16>
    %c14_99 = arith.constant 14 : index
    %c0_100 = arith.constant 0 : index
    %c0_101 = arith.constant 0 : index
    %108 = vector.load %arg3[%c14_99, %c0_100, %c0_101] : memref<15x64x64xbf16, #tpu.memory_space<vmem>>, vector<1x64x64xbf16>
    %109 = vector.shape_cast %108 : vector<1x64x64xbf16> to vector<64x64xbf16>
    %cst_102 = arith.constant dense<0.000000e+00> : vector<32x64xf32>
    %110 = tpu.matmul %107, %109, %cst_102 {dimension_numbers = #tpu.dot_dimension_numbers<[1], [0], [0], [1], [0, 0, 1, 1], [], []>} : vector<32x64xbf16>, vector<64x64xbf16>, vector<32x64xf32> -> vector<32x64xf32>
    %111 = arith.addf %104, %110 : vector<32x64xf32>
    %112 = vector.broadcast %5 : vector<1x64xf32> to vector<32x64xf32>
    %113 = arith.addf %111, %112 : vector<32x64xf32>
    %cst_103 = arith.constant 0.000000e+00 : f32
    %114 = vector.broadcast %cst_103 : f32 to vector<32x64xf32>
    %115 = arith.cmpf oge, %113, %114 : vector<32x64xf32>
    %c0_104 = arith.constant 0 : index
    %c0_105 = arith.constant 0 : index
    %116 = vector.load %arg8[%c0_104, %c0_105] : memref<2x64xf32, #tpu.memory_space<vmem>>, vector<1x64xf32>
    %117 = vector.shape_cast %116 : vector<1x64xf32> to vector<64xf32>
    %118 = vector.shape_cast %117 : vector<64xf32> to vector<1x64xf32>
    %119 = vector.broadcast %118 : vector<1x64xf32> to vector<32x64xf32>
    %120 = arith.mulf %113, %119 : vector<32x64xf32>
    %121 = arith.select %115, %113, %120 : vector<32x64xi1>, vector<32x64xf32>
    %122 = vector.shape_cast %121 : vector<32x64xf32> to vector<2x16x64xf32>
    %c0_106 = arith.constant 0 : index
    %c8_107 = arith.constant 8 : index
    %c0_108 = arith.constant 0 : index
    %123 = vector.load %arg10[%c0_106, %c8_107, %c0_108] : memref<2x32x64xf32, #tpu.memory_space<vmem>>, vector<2x16x64xf32>
    tpu.vector_store %arg10[%c0_106, %c8_107, %c0_108], %122 {strides = array<i32>} : memref<2x32x64xf32, #tpu.memory_space<vmem>>, vector<2x16x64xf32>,
    %c0_109 = arith.constant 0 : index
    %c0_110 = arith.constant 0 : index
    %124 = vector.load %arg6[%c0_109, %c0_110] : memref<1x64xf32, #tpu.memory_space<vmem>>, vector<1x64xf32>
    %cst_111 = arith.constant 0.000000e+00 : f32
    %125 = vector.broadcast %cst_111 : f32 to vector<32x64xf32>
    %c0_112 = arith.constant 0 : index
    %c1_113 = arith.constant 1 : index
    %c0_114 = arith.constant 0 : index
    %126 = vector.load %arg10[%c0_112, %c1_113, %c0_114] : memref<2x32x64xf32, #tpu.memory_space<vmem>>, vector<2x16x64xf32>
    %127 = vector.shape_cast %126 : vector<2x16x64xf32> to vector<32x64xf32>
    %128 = arith.truncf %127 : vector<32x64xf32> to vector<32x64xbf16>
    %c0_115 = arith.constant 0 : index
    %c0_116 = arith.constant 0 : index
    %c0_117 = arith.constant 0 : index
    %129 = vector.load %arg5[%c0_115, %c0_116, %c0_117] : memref<15x64x64xbf16, #tpu.memory_space<vmem>>, vector<1x64x64xbf16>
    %130 = vector.shape_cast %129 : vector<1x64x64xbf16> to vector<64x64xbf16>
    %cst_118 = arith.constant dense<0.000000e+00> : vector<32x64xf32>
    %131 = tpu.matmul %128, %130, %cst_118 {dimension_numbers = #tpu.dot_dimension_numbers<[1], [0], [0], [1], [0, 0, 1, 1], [], []>} : vector<32x64xbf16>, vector<64x64xbf16>, vector<32x64xf32> -> vector<32x64xf32>
    %132 = arith.addf %125, %131 : vector<32x64xf32>
    %c0_119 = arith.constant 0 : index
    %c2_120 = arith.constant 2 : index
    %c0_121 = arith.constant 0 : index
    %133 = vector.load %arg10[%c0_119, %c2_120, %c0_121] : memref<2x32x64xf32, #tpu.memory_space<vmem>>, vector<2x16x64xf32>
    %134 = vector.shape_cast %133 : vector<2x16x64xf32> to vector<32x64xf32>
    %135 = arith.truncf %134 : vector<32x64xf32> to vector<32x64xbf16>
    %c1_122 = arith.constant 1 : index
    %c0_123 = arith.constant 0 : index
    %c0_124 = arith.constant 0 : index
    %136 = vector.load %arg5[%c1_122, %c0_123, %c0_124] : memref<15x64x64xbf16, #tpu.memory_space<vmem>>, vector<1x64x64xbf16>
    %137 = vector.shape_cast %136 : vector<1x64x64xbf16> to vector<64x64xbf16>
    %cst_125 = arith.constant dense<0.000000e+00> : vector<32x64xf32>
    %138 = tpu.matmul %135, %137, %cst_125 {dimension_numbers = #tpu.dot_dimension_numbers<[1], [0], [0], [1], [0, 0, 1, 1], [], []>} : vector<32x64xbf16>, vector<64x64xbf16>, vector<32x64xf32> -> vector<32x64xf32>
    %139 = arith.addf %132, %138 : vector<32x64xf32>
    %c0_126 = arith.constant 0 : index
    %c3_127 = arith.constant 3 : index
    %c0_128 = arith.constant 0 : index
    %140 = vector.load %arg10[%c0_126, %c3_127, %c0_128] : memref<2x32x64xf32, #tpu.memory_space<vmem>>, vector<2x16x64xf32>
    %141 = vector.shape_cast %140 : vector<2x16x64xf32> to vector<32x64xf32>
    %142 = arith.truncf %141 : vector<32x64xf32> to vector<32x64xbf16>
    %c2_129 = arith.constant 2 : index
    %c0_130 = arith.constant 0 : index
    %c0_131 = arith.constant 0 : index
    %143 = vector.load %arg5[%c2_129, %c0_130, %c0_131] : memref<15x64x64xbf16, #tpu.memory_space<vmem>>, vector<1x64x64xbf16>
    %144 = vector.shape_cast %143 : vector<1x64x64xbf16> to vector<64x64xbf16>
    %cst_132 = arith.constant dense<0.000000e+00> : vector<32x64xf32>
    %145 = tpu.matmul %142, %144, %cst_132 {dimension_numbers = #tpu.dot_dimension_numbers<[1], [0], [0], [1], [0, 0, 1, 1], [], []>} : vector<32x64xbf16>, vector<64x64xbf16>, vector<32x64xf32> -> vector<32x64xf32>
    %146 = arith.addf %139, %145 : vector<32x64xf32>
    %c0_133 = arith.constant 0 : index
    %c4_134 = arith.constant 4 : index
    %c0_135 = arith.constant 0 : index
    %147 = vector.load %arg10[%c0_133, %c4_134, %c0_135] : memref<2x32x64xf32, #tpu.memory_space<vmem>>, vector<2x16x64xf32>
    %148 = vector.shape_cast %147 : vector<2x16x64xf32> to vector<32x64xf32>
    %149 = arith.truncf %148 : vector<32x64xf32> to vector<32x64xbf16>
    %c3_136 = arith.constant 3 : index
    %c0_137 = arith.constant 0 : index
    %c0_138 = arith.constant 0 : index
    %150 = vector.load %arg5[%c3_136, %c0_137, %c0_138] : memref<15x64x64xbf16, #tpu.memory_space<vmem>>, vector<1x64x64xbf16>
    %151 = vector.shape_cast %150 : vector<1x64x64xbf16> to vector<64x64xbf16>
    %cst_139 = arith.constant dense<0.000000e+00> : vector<32x64xf32>
    %152 = tpu.matmul %149, %151, %cst_139 {dimension_numbers = #tpu.dot_dimension_numbers<[1], [0], [0], [1], [0, 0, 1, 1], [], []>} : vector<32x64xbf16>, vector<64x64xbf16>, vector<32x64xf32> -> vector<32x64xf32>
    %153 = arith.addf %146, %152 : vector<32x64xf32>
    %c0_140 = arith.constant 0 : index
    %c5_141 = arith.constant 5 : index
    %c0_142 = arith.constant 0 : index
    %154 = vector.load %arg10[%c0_140, %c5_141, %c0_142] : memref<2x32x64xf32, #tpu.memory_space<vmem>>, vector<2x16x64xf32>
    %155 = vector.shape_cast %154 : vector<2x16x64xf32> to vector<32x64xf32>
    %156 = arith.truncf %155 : vector<32x64xf32> to vector<32x64xbf16>
    %c4_143 = arith.constant 4 : index
    %c0_144 = arith.constant 0 : index
    %c0_145 = arith.constant 0 : index
    %157 = vector.load %arg5[%c4_143, %c0_144, %c0_145] : memref<15x64x64xbf16, #tpu.memory_space<vmem>>, vector<1x64x64xbf16>
    %158 = vector.shape_cast %157 : vector<1x64x64xbf16> to vector<64x64xbf16>
    %cst_146 = arith.constant dense<0.000000e+00> : vector<32x64xf32>
    %159 = tpu.matmul %156, %158, %cst_146 {dimension_numbers = #tpu.dot_dimension_numbers<[1], [0], [0], [1], [0, 0, 1, 1], [], []>} : vector<32x64xbf16>, vector<64x64xbf16>, vector<32x64xf32> -> vector<32x64xf32>
    %160 = arith.addf %153, %159 : vector<32x64xf32>
    %c0_147 = arith.constant 0 : index
    %c6_148 = arith.constant 6 : index
    %c0_149 = arith.constant 0 : index
    %161 = vector.load %arg10[%c0_147, %c6_148, %c0_149] : memref<2x32x64xf32, #tpu.memory_space<vmem>>, vector<2x16x64xf32>
    %162 = vector.shape_cast %161 : vector<2x16x64xf32> to vector<32x64xf32>
    %163 = arith.truncf %162 : vector<32x64xf32> to vector<32x64xbf16>
    %c5_150 = arith.constant 5 : index
    %c0_151 = arith.constant 0 : index
    %c0_152 = arith.constant 0 : index
    %164 = vector.load %arg5[%c5_150, %c0_151, %c0_152] : memref<15x64x64xbf16, #tpu.memory_space<vmem>>, vector<1x64x64xbf16>
    %165 = vector.shape_cast %164 : vector<1x64x64xbf16> to vector<64x64xbf16>
    %cst_153 = arith.constant dense<0.000000e+00> : vector<32x64xf32>
    %166 = tpu.matmul %163, %165, %cst_153 {dimension_numbers = #tpu.dot_dimension_numbers<[1], [0], [0], [1], [0, 0, 1, 1], [], []>} : vector<32x64xbf16>, vector<64x64xbf16>, vector<32x64xf32> -> vector<32x64xf32>
    %167 = arith.addf %160, %166 : vector<32x64xf32>
    %c0_154 = arith.constant 0 : index
    %c7_155 = arith.constant 7 : index
    %c0_156 = arith.constant 0 : index
    %168 = vector.load %arg10[%c0_154, %c7_155, %c0_156] : memref<2x32x64xf32, #tpu.memory_space<vmem>>, vector<2x16x64xf32>
    %169 = vector.shape_cast %168 : vector<2x16x64xf32> to vector<32x64xf32>
    %170 = arith.truncf %169 : vector<32x64xf32> to vector<32x64xbf16>
    %c6_157 = arith.constant 6 : index
    %c0_158 = arith.constant 0 : index
    %c0_159 = arith.constant 0 : index
    %171 = vector.load %arg5[%c6_157, %c0_158, %c0_159] : memref<15x64x64xbf16, #tpu.memory_space<vmem>>, vector<1x64x64xbf16>
    %172 = vector.shape_cast %171 : vector<1x64x64xbf16> to vector<64x64xbf16>
    %cst_160 = arith.constant dense<0.000000e+00> : vector<32x64xf32>
    %173 = tpu.matmul %170, %172, %cst_160 {dimension_numbers = #tpu.dot_dimension_numbers<[1], [0], [0], [1], [0, 0, 1, 1], [], []>} : vector<32x64xbf16>, vector<64x64xbf16>, vector<32x64xf32> -> vector<32x64xf32>
    %174 = arith.addf %167, %173 : vector<32x64xf32>
    %c0_161 = arith.constant 0 : index
    %c8_162 = arith.constant 8 : index
    %c0_163 = arith.constant 0 : index
    %175 = vector.load %arg10[%c0_161, %c8_162, %c0_163] : memref<2x32x64xf32, #tpu.memory_space<vmem>>, vector<2x16x64xf32>
    %176 = vector.shape_cast %175 : vector<2x16x64xf32> to vector<32x64xf32>
    %177 = arith.truncf %176 : vector<32x64xf32> to vector<32x64xbf16>
    %c7_164 = arith.constant 7 : index
    %c0_165 = arith.constant 0 : index
    %c0_166 = arith.constant 0 : index
    %178 = vector.load %arg5[%c7_164, %c0_165, %c0_166] : memref<15x64x64xbf16, #tpu.memory_space<vmem>>, vector<1x64x64xbf16>
    %179 = vector.shape_cast %178 : vector<1x64x64xbf16> to vector<64x64xbf16>
    %cst_167 = arith.constant dense<0.000000e+00> : vector<32x64xf32>
    %180 = tpu.matmul %177, %179, %cst_167 {dimension_numbers = #tpu.dot_dimension_numbers<[1], [0], [0], [1], [0, 0, 1, 1], [], []>} : vector<32x64xbf16>, vector<64x64xbf16>, vector<32x64xf32> -> vector<32x64xf32>
    %181 = arith.addf %174, %180 : vector<32x64xf32>
    %c0_168 = arith.constant 0 : index
    %c9_169 = arith.constant 9 : index
    %c0_170 = arith.constant 0 : index
    %182 = vector.load %arg10[%c0_168, %c9_169, %c0_170] : memref<2x32x64xf32, #tpu.memory_space<vmem>>, vector<2x16x64xf32>
    %183 = vector.shape_cast %182 : vector<2x16x64xf32> to vector<32x64xf32>
    %184 = arith.truncf %183 : vector<32x64xf32> to vector<32x64xbf16>
    %c8_171 = arith.constant 8 : index
    %c0_172 = arith.constant 0 : index
    %c0_173 = arith.constant 0 : index
    %185 = vector.load %arg5[%c8_171, %c0_172, %c0_173] : memref<15x64x64xbf16, #tpu.memory_space<vmem>>, vector<1x64x64xbf16>
    %186 = vector.shape_cast %185 : vector<1x64x64xbf16> to vector<64x64xbf16>
    %cst_174 = arith.constant dense<0.000000e+00> : vector<32x64xf32>
    %187 = tpu.matmul %184, %186, %cst_174 {dimension_numbers = #tpu.dot_dimension_numbers<[1], [0], [0], [1], [0, 0, 1, 1], [], []>} : vector<32x64xbf16>, vector<64x64xbf16>, vector<32x64xf32> -> vector<32x64xf32>
    %188 = arith.addf %181, %187 : vector<32x64xf32>
    %c0_175 = arith.constant 0 : index
    %c10_176 = arith.constant 10 : index
    %c0_177 = arith.constant 0 : index
    %189 = vector.load %arg10[%c0_175, %c10_176, %c0_177] : memref<2x32x64xf32, #tpu.memory_space<vmem>>, vector<2x16x64xf32>
    %190 = vector.shape_cast %189 : vector<2x16x64xf32> to vector<32x64xf32>
    %191 = arith.truncf %190 : vector<32x64xf32> to vector<32x64xbf16>
    %c9_178 = arith.constant 9 : index
    %c0_179 = arith.constant 0 : index
    %c0_180 = arith.constant 0 : index
    %192 = vector.load %arg5[%c9_178, %c0_179, %c0_180] : memref<15x64x64xbf16, #tpu.memory_space<vmem>>, vector<1x64x64xbf16>
    %193 = vector.shape_cast %192 : vector<1x64x64xbf16> to vector<64x64xbf16>
    %cst_181 = arith.constant dense<0.000000e+00> : vector<32x64xf32>
    %194 = tpu.matmul %191, %193, %cst_181 {dimension_numbers = #tpu.dot_dimension_numbers<[1], [0], [0], [1], [0, 0, 1, 1], [], []>} : vector<32x64xbf16>, vector<64x64xbf16>, vector<32x64xf32> -> vector<32x64xf32>
    %195 = arith.addf %188, %194 : vector<32x64xf32>
    %c0_182 = arith.constant 0 : index
    %c11_183 = arith.constant 11 : index
    %c0_184 = arith.constant 0 : index
    %196 = vector.load %arg10[%c0_182, %c11_183, %c0_184] : memref<2x32x64xf32, #tpu.memory_space<vmem>>, vector<2x16x64xf32>
    %197 = vector.shape_cast %196 : vector<2x16x64xf32> to vector<32x64xf32>
    %198 = arith.truncf %197 : vector<32x64xf32> to vector<32x64xbf16>
    %c10_185 = arith.constant 10 : index
    %c0_186 = arith.constant 0 : index
    %c0_187 = arith.constant 0 : index
    %199 = vector.load %arg5[%c10_185, %c0_186, %c0_187] : memref<15x64x64xbf16, #tpu.memory_space<vmem>>, vector<1x64x64xbf16>
    %200 = vector.shape_cast %199 : vector<1x64x64xbf16> to vector<64x64xbf16>
    %cst_188 = arith.constant dense<0.000000e+00> : vector<32x64xf32>
    %201 = tpu.matmul %198, %200, %cst_188 {dimension_numbers = #tpu.dot_dimension_numbers<[1], [0], [0], [1], [0, 0, 1, 1], [], []>} : vector<32x64xbf16>, vector<64x64xbf16>, vector<32x64xf32> -> vector<32x64xf32>
    %202 = arith.addf %195, %201 : vector<32x64xf32>
    %c0_189 = arith.constant 0 : index
    %c12_190 = arith.constant 12 : index
    %c0_191 = arith.constant 0 : index
    %203 = vector.load %arg10[%c0_189, %c12_190, %c0_191] : memref<2x32x64xf32, #tpu.memory_space<vmem>>, vector<2x16x64xf32>
    %204 = vector.shape_cast %203 : vector<2x16x64xf32> to vector<32x64xf32>
    %205 = arith.truncf %204 : vector<32x64xf32> to vector<32x64xbf16>
    %c11_192 = arith.constant 11 : index
    %c0_193 = arith.constant 0 : index
    %c0_194 = arith.constant 0 : index
    %206 = vector.load %arg5[%c11_192, %c0_193, %c0_194] : memref<15x64x64xbf16, #tpu.memory_space<vmem>>, vector<1x64x64xbf16>
    %207 = vector.shape_cast %206 : vector<1x64x64xbf16> to vector<64x64xbf16>
    %cst_195 = arith.constant dense<0.000000e+00> : vector<32x64xf32>
    %208 = tpu.matmul %205, %207, %cst_195 {dimension_numbers = #tpu.dot_dimension_numbers<[1], [0], [0], [1], [0, 0, 1, 1], [], []>} : vector<32x64xbf16>, vector<64x64xbf16>, vector<32x64xf32> -> vector<32x64xf32>
    %209 = arith.addf %202, %208 : vector<32x64xf32>
    %c0_196 = arith.constant 0 : index
    %c13_197 = arith.constant 13 : index
    %c0_198 = arith.constant 0 : index
    %210 = vector.load %arg10[%c0_196, %c13_197, %c0_198] : memref<2x32x64xf32, #tpu.memory_space<vmem>>, vector<2x16x64xf32>
    %211 = vector.shape_cast %210 : vector<2x16x64xf32> to vector<32x64xf32>
    %212 = arith.truncf %211 : vector<32x64xf32> to vector<32x64xbf16>
    %c12_199 = arith.constant 12 : index
    %c0_200 = arith.constant 0 : index
    %c0_201 = arith.constant 0 : index
    %213 = vector.load %arg5[%c12_199, %c0_200, %c0_201] : memref<15x64x64xbf16, #tpu.memory_space<vmem>>, vector<1x64x64xbf16>
    %214 = vector.shape_cast %213 : vector<1x64x64xbf16> to vector<64x64xbf16>
    %cst_202 = arith.constant dense<0.000000e+00> : vector<32x64xf32>
    %215 = tpu.matmul %212, %214, %cst_202 {dimension_numbers = #tpu.dot_dimension_numbers<[1], [0], [0], [1], [0, 0, 1, 1], [], []>} : vector<32x64xbf16>, vector<64x64xbf16>, vector<32x64xf32> -> vector<32x64xf32>
    %216 = arith.addf %209, %215 : vector<32x64xf32>
    %c0_203 = arith.constant 0 : index
    %c14_204 = arith.constant 14 : index
    %c0_205 = arith.constant 0 : index
    %217 = vector.load %arg10[%c0_203, %c14_204, %c0_205] : memref<2x32x64xf32, #tpu.memory_space<vmem>>, vector<2x16x64xf32>
    %218 = vector.shape_cast %217 : vector<2x16x64xf32> to vector<32x64xf32>
    %219 = arith.truncf %218 : vector<32x64xf32> to vector<32x64xbf16>
    %c13_206 = arith.constant 13 : index
    %c0_207 = arith.constant 0 : index
    %c0_208 = arith.constant 0 : index
    %220 = vector.load %arg5[%c13_206, %c0_207, %c0_208] : memref<15x64x64xbf16, #tpu.memory_space<vmem>>, vector<1x64x64xbf16>
    %221 = vector.shape_cast %220 : vector<1x64x64xbf16> to vector<64x64xbf16>
    %cst_209 = arith.constant dense<0.000000e+00> : vector<32x64xf32>
    %222 = tpu.matmul %219, %221, %cst_209 {dimension_numbers = #tpu.dot_dimension_numbers<[1], [0], [0], [1], [0, 0, 1, 1], [], []>} : vector<32x64xbf16>, vector<64x64xbf16>, vector<32x64xf32> -> vector<32x64xf32>
    %223 = arith.addf %216, %222 : vector<32x64xf32>
    %c0_210 = arith.constant 0 : index
    %c15_211 = arith.constant 15 : index
    %c0_212 = arith.constant 0 : index
    %224 = vector.load %arg10[%c0_210, %c15_211, %c0_212] : memref<2x32x64xf32, #tpu.memory_space<vmem>>, vector<2x16x64xf32>
    %225 = vector.shape_cast %224 : vector<2x16x64xf32> to vector<32x64xf32>
    %226 = arith.truncf %225 : vector<32x64xf32> to vector<32x64xbf16>
    %c14_213 = arith.constant 14 : index
    %c0_214 = arith.constant 0 : index
    %c0_215 = arith.constant 0 : index
    %227 = vector.load %arg5[%c14_213, %c0_214, %c0_215] : memref<15x64x64xbf16, #tpu.memory_space<vmem>>, vector<1x64x64xbf16>
    %228 = vector.shape_cast %227 : vector<1x64x64xbf16> to vector<64x64xbf16>
    %cst_216 = arith.constant dense<0.000000e+00> : vector<32x64xf32>
    %229 = tpu.matmul %226, %228, %cst_216 {dimension_numbers = #tpu.dot_dimension_numbers<[1], [0], [0], [1], [0, 0, 1, 1], [], []>} : vector<32x64xbf16>, vector<64x64xbf16>, vector<32x64xf32> -> vector<32x64xf32>
    %230 = arith.addf %223, %229 : vector<32x64xf32>
    %231 = vector.broadcast %124 : vector<1x64xf32> to vector<32x64xf32>
    %232 = arith.addf %230, %231 : vector<32x64xf32>
    %cst_217 = arith.constant 0.000000e+00 : f32
    %233 = vector.broadcast %cst_217 : f32 to vector<32x64xf32>
    %234 = arith.cmpf oge, %232, %233 : vector<32x64xf32>
    %c1_218 = arith.constant 1 : index
    %c0_219 = arith.constant 0 : index
    %235 = vector.load %arg8[%c1_218, %c0_219] : memref<2x64xf32, #tpu.memory_space<vmem>>, vector<1x64xf32>
    %236 = vector.shape_cast %235 : vector<1x64xf32> to vector<64xf32>
    %237 = vector.shape_cast %236 : vector<64xf32> to vector<1x64xf32>
    %238 = vector.broadcast %237 : vector<1x64xf32> to vector<32x64xf32>
    %239 = arith.mulf %232, %238 : vector<32x64xf32>
    %240 = arith.select %234, %232, %239 : vector<32x64xi1>, vector<32x64xf32>
    %241 = vector.shape_cast %240 : vector<32x64xf32> to vector<2x16x64xf32>
    %c0_220 = arith.constant 0 : index
    %c8_221 = arith.constant 8 : index
    %c0_222 = arith.constant 0 : index
    %242 = vector.load %arg10[%c0_220, %c8_221, %c0_222] : memref<2x32x64xf32, #tpu.memory_space<vmem>>, vector<2x16x64xf32>
    tpu.vector_store %arg10[%c0_220, %c8_221, %c0_222], %241 {strides = array<i32>} : memref<2x32x64xf32, #tpu.memory_space<vmem>>, vector<2x16x64xf32>,
    %cst_223 = arith.constant 0.000000e+00 : f32
    %243 = vector.broadcast %cst_223 : f32 to vector<2x16x64xf32>
    %c0_224 = arith.constant 0 : index
    %c1_225 = arith.constant 1 : index
    %c0_226 = arith.constant 0 : index
    %244 = vector.load %arg10[%c0_224, %c1_225, %c0_226] : memref<2x32x64xf32, #tpu.memory_space<vmem>>, vector<2x16x64xf32>
    %c0_227 = arith.constant 0 : index
    %c0_228 = arith.constant 0 : index
    %245 = vector.load %arg7[%c0_227, %c0_228] : memref<15x64xf32, #tpu.memory_space<vmem>>, vector<1x64xf32>
    %246 = vector.shape_cast %245 : vector<1x64xf32> to vector<64xf32>
    %247 = vector.shape_cast %246 : vector<64xf32> to vector<1x1x64xf32>
    %248 = vector.broadcast %247 : vector<1x1x64xf32> to vector<2x16x64xf32>
    %249 = arith.mulf %244, %248 : vector<2x16x64xf32>
    %250 = arith.addf %243, %249 : vector<2x16x64xf32>
    %c0_229 = arith.constant 0 : index
    %c2_230 = arith.constant 2 : index
    %c0_231 = arith.constant 0 : index
    %251 = vector.load %arg10[%c0_229, %c2_230, %c0_231] : memref<2x32x64xf32, #tpu.memory_space<vmem>>, vector<2x16x64xf32>
    %c1_232 = arith.constant 1 : index
    %c0_233 = arith.constant 0 : index
    %252 = vector.load %arg7[%c1_232, %c0_233] : memref<15x64xf32, #tpu.memory_space<vmem>>, vector<1x64xf32>
    %253 = vector.shape_cast %252 : vector<1x64xf32> to vector<64xf32>
    %254 = vector.shape_cast %253 : vector<64xf32> to vector<1x1x64xf32>
    %255 = vector.broadcast %254 : vector<1x1x64xf32> to vector<2x16x64xf32>
    %256 = arith.mulf %251, %255 : vector<2x16x64xf32>
    %257 = arith.addf %250, %256 : vector<2x16x64xf32>
    %c0_234 = arith.constant 0 : index
    %c3_235 = arith.constant 3 : index
    %c0_236 = arith.constant 0 : index
    %258 = vector.load %arg10[%c0_234, %c3_235, %c0_236] : memref<2x32x64xf32, #tpu.memory_space<vmem>>, vector<2x16x64xf32>
    %c2_237 = arith.constant 2 : index
    %c0_238 = arith.constant 0 : index
    %259 = vector.load %arg7[%c2_237, %c0_238] : memref<15x64xf32, #tpu.memory_space<vmem>>, vector<1x64xf32>
    %260 = vector.shape_cast %259 : vector<1x64xf32> to vector<64xf32>
    %261 = vector.shape_cast %260 : vector<64xf32> to vector<1x1x64xf32>
    %262 = vector.broadcast %261 : vector<1x1x64xf32> to vector<2x16x64xf32>
    %263 = arith.mulf %258, %262 : vector<2x16x64xf32>
    %264 = arith.addf %257, %263 : vector<2x16x64xf32>
    %c0_239 = arith.constant 0 : index
    %c4_240 = arith.constant 4 : index
    %c0_241 = arith.constant 0 : index
    %265 = vector.load %arg10[%c0_239, %c4_240, %c0_241] : memref<2x32x64xf32, #tpu.memory_space<vmem>>, vector<2x16x64xf32>
    %c3_242 = arith.constant 3 : index
    %c0_243 = arith.constant 0 : index
    %266 = vector.load %arg7[%c3_242, %c0_243] : memref<15x64xf32, #tpu.memory_space<vmem>>, vector<1x64xf32>
    %267 = vector.shape_cast %266 : vector<1x64xf32> to vector<64xf32>
    %268 = vector.shape_cast %267 : vector<64xf32> to vector<1x1x64xf32>
    %269 = vector.broadcast %268 : vector<1x1x64xf32> to vector<2x16x64xf32>
    %270 = arith.mulf %265, %269 : vector<2x16x64xf32>
    %271 = arith.addf %264, %270 : vector<2x16x64xf32>
    %c0_244 = arith.constant 0 : index
    %c5_245 = arith.constant 5 : index
    %c0_246 = arith.constant 0 : index
    %272 = vector.load %arg10[%c0_244, %c5_245, %c0_246] : memref<2x32x64xf32, #tpu.memory_space<vmem>>, vector<2x16x64xf32>
    %c4_247 = arith.constant 4 : index
    %c0_248 = arith.constant 0 : index
    %273 = vector.load %arg7[%c4_247, %c0_248] : memref<15x64xf32, #tpu.memory_space<vmem>>, vector<1x64xf32>
    %274 = vector.shape_cast %273 : vector<1x64xf32> to vector<64xf32>
    %275 = vector.shape_cast %274 : vector<64xf32> to vector<1x1x64xf32>
    %276 = vector.broadcast %275 : vector<1x1x64xf32> to vector<2x16x64xf32>
    %277 = arith.mulf %272, %276 : vector<2x16x64xf32>
    %278 = arith.addf %271, %277 : vector<2x16x64xf32>
    %c0_249 = arith.constant 0 : index
    %c6_250 = arith.constant 6 : index
    %c0_251 = arith.constant 0 : index
    %279 = vector.load %arg10[%c0_249, %c6_250, %c0_251] : memref<2x32x64xf32, #tpu.memory_space<vmem>>, vector<2x16x64xf32>
    %c5_252 = arith.constant 5 : index
    %c0_253 = arith.constant 0 : index
    %280 = vector.load %arg7[%c5_252, %c0_253] : memref<15x64xf32, #tpu.memory_space<vmem>>, vector<1x64xf32>
    %281 = vector.shape_cast %280 : vector<1x64xf32> to vector<64xf32>
    %282 = vector.shape_cast %281 : vector<64xf32> to vector<1x1x64xf32>
    %283 = vector.broadcast %282 : vector<1x1x64xf32> to vector<2x16x64xf32>
    %284 = arith.mulf %279, %283 : vector<2x16x64xf32>
    %285 = arith.addf %278, %284 : vector<2x16x64xf32>
    %c0_254 = arith.constant 0 : index
    %c7_255 = arith.constant 7 : index
    %c0_256 = arith.constant 0 : index
    %286 = vector.load %arg10[%c0_254, %c7_255, %c0_256] : memref<2x32x64xf32, #tpu.memory_space<vmem>>, vector<2x16x64xf32>
    %c6_257 = arith.constant 6 : index
    %c0_258 = arith.constant 0 : index
    %287 = vector.load %arg7[%c6_257, %c0_258] : memref<15x64xf32, #tpu.memory_space<vmem>>, vector<1x64xf32>
    %288 = vector.shape_cast %287 : vector<1x64xf32> to vector<64xf32>
    %289 = vector.shape_cast %288 : vector<64xf32> to vector<1x1x64xf32>
    %290 = vector.broadcast %289 : vector<1x1x64xf32> to vector<2x16x64xf32>
    %291 = arith.mulf %286, %290 : vector<2x16x64xf32>
    %292 = arith.addf %285, %291 : vector<2x16x64xf32>
    %c0_259 = arith.constant 0 : index
    %c8_260 = arith.constant 8 : index
    %c0_261 = arith.constant 0 : index
    %293 = vector.load %arg10[%c0_259, %c8_260, %c0_261] : memref<2x32x64xf32, #tpu.memory_space<vmem>>, vector<2x16x64xf32>
    %c7_262 = arith.constant 7 : index
    %c0_263 = arith.constant 0 : index
    %294 = vector.load %arg7[%c7_262, %c0_263] : memref<15x64xf32, #tpu.memory_space<vmem>>, vector<1x64xf32>
    %295 = vector.shape_cast %294 : vector<1x64xf32> to vector<64xf32>
    %296 = vector.shape_cast %295 : vector<64xf32> to vector<1x1x64xf32>
    %297 = vector.broadcast %296 : vector<1x1x64xf32> to vector<2x16x64xf32>
    %298 = arith.mulf %293, %297 : vector<2x16x64xf32>
    %299 = arith.addf %292, %298 : vector<2x16x64xf32>
    %c0_264 = arith.constant 0 : index
    %c9_265 = arith.constant 9 : index
    %c0_266 = arith.constant 0 : index
    %300 = vector.load %arg10[%c0_264, %c9_265, %c0_266] : memref<2x32x64xf32, #tpu.memory_space<vmem>>, vector<2x16x64xf32>
    %c8_267 = arith.constant 8 : index
    %c0_268 = arith.constant 0 : index
    %301 = vector.load %arg7[%c8_267, %c0_268] : memref<15x64xf32, #tpu.memory_space<vmem>>, vector<1x64xf32>
    %302 = vector.shape_cast %301 : vector<1x64xf32> to vector<64xf32>
    %303 = vector.shape_cast %302 : vector<64xf32> to vector<1x1x64xf32>
    %304 = vector.broadcast %303 : vector<1x1x64xf32> to vector<2x16x64xf32>
    %305 = arith.mulf %300, %304 : vector<2x16x64xf32>
    %306 = arith.addf %299, %305 : vector<2x16x64xf32>
    %c0_269 = arith.constant 0 : index
    %c10_270 = arith.constant 10 : index
    %c0_271 = arith.constant 0 : index
    %307 = vector.load %arg10[%c0_269, %c10_270, %c0_271] : memref<2x32x64xf32, #tpu.memory_space<vmem>>, vector<2x16x64xf32>
    %c9_272 = arith.constant 9 : index
    %c0_273 = arith.constant 0 : index
    %308 = vector.load %arg7[%c9_272, %c0_273] : memref<15x64xf32, #tpu.memory_space<vmem>>, vector<1x64xf32>
    %309 = vector.shape_cast %308 : vector<1x64xf32> to vector<64xf32>
    %310 = vector.shape_cast %309 : vector<64xf32> to vector<1x1x64xf32>
    %311 = vector.broadcast %310 : vector<1x1x64xf32> to vector<2x16x64xf32>
    %312 = arith.mulf %307, %311 : vector<2x16x64xf32>
    %313 = arith.addf %306, %312 : vector<2x16x64xf32>
    %c0_274 = arith.constant 0 : index
    %c11_275 = arith.constant 11 : index
    %c0_276 = arith.constant 0 : index
    %314 = vector.load %arg10[%c0_274, %c11_275, %c0_276] : memref<2x32x64xf32, #tpu.memory_space<vmem>>, vector<2x16x64xf32>
    %c10_277 = arith.constant 10 : index
    %c0_278 = arith.constant 0 : index
    %315 = vector.load %arg7[%c10_277, %c0_278] : memref<15x64xf32, #tpu.memory_space<vmem>>, vector<1x64xf32>
    %316 = vector.shape_cast %315 : vector<1x64xf32> to vector<64xf32>
    %317 = vector.shape_cast %316 : vector<64xf32> to vector<1x1x64xf32>
    %318 = vector.broadcast %317 : vector<1x1x64xf32> to vector<2x16x64xf32>
    %319 = arith.mulf %314, %318 : vector<2x16x64xf32>
    %320 = arith.addf %313, %319 : vector<2x16x64xf32>
    %c0_279 = arith.constant 0 : index
    %c12_280 = arith.constant 12 : index
    %c0_281 = arith.constant 0 : index
    %321 = vector.load %arg10[%c0_279, %c12_280, %c0_281] : memref<2x32x64xf32, #tpu.memory_space<vmem>>, vector<2x16x64xf32>
    %c11_282 = arith.constant 11 : index
    %c0_283 = arith.constant 0 : index
    %322 = vector.load %arg7[%c11_282, %c0_283] : memref<15x64xf32, #tpu.memory_space<vmem>>, vector<1x64xf32>
    %323 = vector.shape_cast %322 : vector<1x64xf32> to vector<64xf32>
    %324 = vector.shape_cast %323 : vector<64xf32> to vector<1x1x64xf32>
    %325 = vector.broadcast %324 : vector<1x1x64xf32> to vector<2x16x64xf32>
    %326 = arith.mulf %321, %325 : vector<2x16x64xf32>
    %327 = arith.addf %320, %326 : vector<2x16x64xf32>
    %c0_284 = arith.constant 0 : index
    %c13_285 = arith.constant 13 : index
    %c0_286 = arith.constant 0 : index
    %328 = vector.load %arg10[%c0_284, %c13_285, %c0_286] : memref<2x32x64xf32, #tpu.memory_space<vmem>>, vector<2x16x64xf32>
    %c12_287 = arith.constant 12 : index
    %c0_288 = arith.constant 0 : index
    %329 = vector.load %arg7[%c12_287, %c0_288] : memref<15x64xf32, #tpu.memory_space<vmem>>, vector<1x64xf32>
    %330 = vector.shape_cast %329 : vector<1x64xf32> to vector<64xf32>
    %331 = vector.shape_cast %330 : vector<64xf32> to vector<1x1x64xf32>
    %332 = vector.broadcast %331 : vector<1x1x64xf32> to vector<2x16x64xf32>
    %333 = arith.mulf %328, %332 : vector<2x16x64xf32>
    %334 = arith.addf %327, %333 : vector<2x16x64xf32>
    %c0_289 = arith.constant 0 : index
    %c14_290 = arith.constant 14 : index
    %c0_291 = arith.constant 0 : index
    %335 = vector.load %arg10[%c0_289, %c14_290, %c0_291] : memref<2x32x64xf32, #tpu.memory_space<vmem>>, vector<2x16x64xf32>
    %c13_292 = arith.constant 13 : index
    %c0_293 = arith.constant 0 : index
    %336 = vector.load %arg7[%c13_292, %c0_293] : memref<15x64xf32, #tpu.memory_space<vmem>>, vector<1x64xf32>
    %337 = vector.shape_cast %336 : vector<1x64xf32> to vector<64xf32>
    %338 = vector.shape_cast %337 : vector<64xf32> to vector<1x1x64xf32>
    %339 = vector.broadcast %338 : vector<1x1x64xf32> to vector<2x16x64xf32>
    %340 = arith.mulf %335, %339 : vector<2x16x64xf32>
    %341 = arith.addf %334, %340 : vector<2x16x64xf32>
    %c0_294 = arith.constant 0 : index
    %c15_295 = arith.constant 15 : index
    %c0_296 = arith.constant 0 : index
    %342 = vector.load %arg10[%c0_294, %c15_295, %c0_296] : memref<2x32x64xf32, #tpu.memory_space<vmem>>, vector<2x16x64xf32>
    %c14_297 = arith.constant 14 : index
    %c0_298 = arith.constant 0 : index
    %343 = vector.load %arg7[%c14_297, %c0_298] : memref<15x64xf32, #tpu.memory_space<vmem>>, vector<1x64xf32>
    %344 = vector.shape_cast %343 : vector<1x64xf32> to vector<64xf32>
    %345 = vector.shape_cast %344 : vector<64xf32> to vector<1x1x64xf32>
    %346 = vector.broadcast %345 : vector<1x1x64xf32> to vector<2x16x64xf32>
    %347 = arith.mulf %342, %346 : vector<2x16x64xf32>
    %348 = arith.addf %341, %347 : vector<2x16x64xf32>
    %349 = vector.extract_strided_slice %348 {offsets = [0, 0, 0], sizes = [2, 16, 32], strides = [1, 1, 1]} : vector<2x16x64xf32> to vector<2x16x32xf32>
    %cst_299 = arith.constant dense<0.000000e+00> : vector<2x16xf32>
    %350 = vector.multi_reduction <add>, %349, %cst_299 [2] : vector<2x16x32xf32> to vector<2x16xf32>
    %351 = vector.shape_cast %350 : vector<2x16xf32> to vector<2x16x1xf32>
    %c0_300 = arith.constant 0 : index
    %352 = memref.load %arg1[%c0_300] : memref<2xf32, #tpu.memory_space<smem>>
    %353 = vector.broadcast %352 : f32 to vector<2x16x1xf32>
    %354 = arith.addf %351, %353 : vector<2x16x1xf32>
    %355 = vector.extract_strided_slice %348 {offsets = [0, 0, 32], sizes = [2, 16, 32], strides = [1, 1, 1]} : vector<2x16x64xf32> to vector<2x16x32xf32>
    %cst_301 = arith.constant dense<0.000000e+00> : vector<2x16xf32>
    %356 = vector.multi_reduction <add>, %355, %cst_301 [2] : vector<2x16x32xf32> to vector<2x16xf32>
    %357 = vector.shape_cast %356 : vector<2x16xf32> to vector<2x16x1xf32>
    %c1_302 = arith.constant 1 : index
    %358 = memref.load %arg1[%c1_302] : memref<2xf32, #tpu.memory_space<smem>>
    %359 = vector.broadcast %358 : f32 to vector<2x16x1xf32>
    %360 = arith.addf %357, %359 : vector<2x16x1xf32>
    %cst_303 = arith.constant 0.000000e+00 : f32
    %361 = vector.broadcast %cst_303 : f32 to vector<2x16x1xf32>
    %362 = arith.subf %361, %354 : vector<2x16x1xf32>
    %363 = math.exp %362 : vector<2x16x1xf32>
    %cst_304 = arith.constant 1.000000e+00 : f32
    %364 = vector.broadcast %cst_304 : f32 to vector<2x16x1xf32>
    %365 = arith.addf %364, %363 : vector<2x16x1xf32>
    %cst_305 = arith.constant 1.000000e+00 : f32
    %366 = vector.broadcast %cst_305 : f32 to vector<2x16x1xf32>
    %367 = arith.divf %366, %365 : vector<2x16x1xf32>
    %c0_306 = arith.constant 0 : index
    %c0_307 = arith.constant 0 : index
    %c0_308 = arith.constant 0 : index
    %368 = vector.load %arg9[%c0_306, %c0_307, %c0_308] : memref<2x16x2xf32, #tpu.memory_space<vmem>>, vector<2x16x1xf32>
    tpu.vector_store %arg9[%c0_306, %c0_307, %c0_308], %367 {strides = array<i32>} : memref<2x16x2xf32, #tpu.memory_space<vmem>>, vector<2x16x1xf32>,
    %cst_309 = arith.constant 0.000000e+00 : f32
    %369 = vector.broadcast %cst_309 : f32 to vector<2x16x1xf32>
    %370 = arith.subf %369, %360 : vector<2x16x1xf32>
    %371 = math.exp %370 : vector<2x16x1xf32>
    %cst_310 = arith.constant 1.000000e+00 : f32
    %372 = vector.broadcast %cst_310 : f32 to vector<2x16x1xf32>
    %373 = arith.addf %372, %371 : vector<2x16x1xf32>
    %cst_311 = arith.constant 1.000000e+00 : f32
    %374 = vector.broadcast %cst_311 : f32 to vector<2x16x1xf32>
    %375 = arith.divf %374, %373 : vector<2x16x1xf32>
    %c0_312 = arith.constant 0 : index
    %c0_313 = arith.constant 0 : index
    %c1_314 = arith.constant 1 : index
    %376 = vector.load %arg9[%c0_312, %c0_313, %c1_314] : memref<2x16x2xf32, #tpu.memory_space<vmem>>, vector<2x16x1xf32>
    tpu.vector_store %arg9[%c0_312, %c0_313, %c1_314], %375 {strides = array<i32>} : memref<2x16x2xf32, #tpu.memory_space<vmem>>, vector<2x16x1xf32>,
    return
  }
  func.func @transform_0(%arg0: i32) -> i32 {
    %c0_i32 = arith.constant 0 : i32
    %c0_i32_0 = arith.constant 0 : i32
    return %c0_i32 : i32
  }
  func.func @transform_1(%arg0: i32) -> (i32, i32, i32) {
    %c0_i32 = arith.constant 0 : i32
    %c0_i32_0 = arith.constant 0 : i32
    %c0_i32_1 = arith.constant 0 : i32
    return %arg0, %c0_i32, %c0_i32_0 : i32, i32, i32
  }
  func.func @transform_2(%arg0: i32) -> (i32, i32, i32) {
    %c0_i32 = arith.constant 0 : i32
    %c0_i32_0 = arith.constant 0 : i32
    %c0_i32_1 = arith.constant 0 : i32
    %c0_i32_2 = arith.constant 0 : i32
    return %c0_i32, %c0_i32_0, %c0_i32_1 : i32, i32, i32
  }
  func.func @transform_3(%arg0: i32) -> (i32, i32) {
    %c0_i32 = arith.constant 0 : i32
    %c0_i32_0 = arith.constant 0 : i32
    %c0_i32_1 = arith.constant 0 : i32
    return %c0_i32, %c0_i32_0 : i32, i32
  }
  func.func @transform_4(%arg0: i32) -> (i32, i32, i32) {
    %c0_i32 = arith.constant 0 : i32
    %c0_i32_0 = arith.constant 0 : i32
    %c0_i32_1 = arith.constant 0 : i32
    %c0_i32_2 = arith.constant 0 : i32
    return %c0_i32, %c0_i32_0, %c0_i32_1 : i32, i32, i32
  }
  func.func @transform_5(%arg0: i32) -> (i32, i32) {
    %c0_i32 = arith.constant 0 : i32
    %c0_i32_0 = arith.constant 0 : i32
    %c0_i32_1 = arith.constant 0 : i32
    return %c0_i32, %c0_i32_0 : i32, i32
  }
  func.func @transform_6(%arg0: i32) -> (i32, i32) {
    %c0_i32 = arith.constant 0 : i32
    %c0_i32_0 = arith.constant 0 : i32
    %c0_i32_1 = arith.constant 0 : i32
    return %c0_i32, %c0_i32_0 : i32, i32
  }
  func.func @transform_7(%arg0: i32) -> (i32, i32) {
    %c0_i32 = arith.constant 0 : i32
    %c0_i32_0 = arith.constant 0 : i32
    %c0_i32_1 = arith.constant 0 : i32
    return %c0_i32, %c0_i32_0 : i32, i32
  }
  func.func @transform_8(%arg0: i32) -> (i32, i32, i32) {
    %c0_i32 = arith.constant 0 : i32
    %c0_i32_0 = arith.constant 0 : i32
    %c0_i32_1 = arith.constant 0 : i32
    return %arg0, %c0_i32, %c0_i32_0 : i32, i32, i32
  }
}

</mosaic_0001>

<llo_original>
// kernel: refine_discriminator_forward.1
$region0: #{refine_discriminator_forward.1}
  #allocation0 [shape = 'u32[]', space=smem, size = 0x4, offset = 0x4, fixed_abs, tag = 'smem constant byte address 0x4 - core index']
  #allocation1 [shape = 'u32[72,128]{1,0:T(1,128)}', space=vmem, size = 0x9000, scoped, tag = 'internal scratch']
  #allocation2 [shape = 'f32[2,32,64]{2,1,0:T(8,128)}', space=vmem, size = 0x8000, scoped, tag = 'scratch operand']
  %s0 = inlined_call_operand.vmem [shape: f32[2], index: 0, kind: input, shape index: {}]
  %s1 = inlined_call_operand.vmem [shape: f32[2,16,64], index: 1, kind: input, shape index: {}]
  %s2 = inlined_call_operand.vmem [shape: bf16[15,64,64], index: 2, kind: input, shape index: {}]
  %s3 = inlined_call_operand.vmem [shape: f32[1,64], index: 3, kind: input, shape index: {}]
  %s4 = inlined_call_operand.vmem [shape: bf16[15,64,64], index: 4, kind: input, shape index: {}]
  %s5 = inlined_call_operand.vmem [shape: f32[1,64], index: 5, kind: input, shape index: {}]
  %s6 = inlined_call_operand.vmem [shape: f32[15,64], index: 6, kind: input, shape index: {}]
  %s7 = inlined_call_operand.vmem [shape: f32[2,64], index: 7, kind: input, shape index: {}]
  %s8 = inlined_call_operand.vmem [shape: f32[2,16,2], index: 8, kind: output, shape index: {}]
  %s9 = sld [smem:[#allocation0]]
  $region46: #{refine_discriminator_forward.1} parent=0
    _
  %s11 = ssub.s32 1, %s9
  %s12 = scalar_select 0, %s11, %s9
  $region1: #{refine_discriminator_forward.1} parent=0
    #allocation3 [shape = 'u8[512]{0}', space=smem, size = 0x200, scoped, tag = 'input window, operand 0, single buffered']
    #allocation4 [shape = 's32[1]{0}', space=sflag, size = 0x4, scoped, tag = 'scoped memory for refine_discriminator_forward.1']
    %13 = vsyncpa [#allocation4], 0
    // Predicated region
    $region2: #{refine_discriminator_forward.1} parent=1 // pred_check
      _
    $region3: #{refine_discriminator_forward.1} parent=1 // pred_check_branch
      %15 = sbr.rel (0) target = $region5
    $region4: #{refine_discriminator_forward.1} parent=1 // pred_region
      %17 = vsyncadd [#allocation4], 0
      %s19 = sshll.u32 %s0, 4
      %s20 = int_to_ptr.vmem [resolvable:$true] %s19
      %22 = dma.vmem_to_smem %s20, 16, [#allocation3], [#allocation4]
    $region5: #{refine_discriminator_forward.1} parent=1 // pred_fallthru
      _
    // Predicated region
    $region6: #{refine_discriminator_forward.1} parent=1 // pred_check
      _
    $region7: #{refine_discriminator_forward.1} parent=1 // pred_check_branch
      %24 = sbr.rel (0) target = $region9
    $region8: #{refine_discriminator_forward.1} parent=1 // pred_region
      _
    $region9: #{refine_discriminator_forward.1} parent=1 // pred_fallthru
      _
    // Predicated region
    $region10: #{refine_discriminator_forward.1} parent=1 // pred_check
      _
    $region11: #{refine_discriminator_forward.1} parent=1 // pred_check_branch
      %26 = sbr.rel (0) target = $region13
    $region12: #{refine_discriminator_forward.1} parent=1 // pred_region
      _
    $region13: #{refine_discriminator_forward.1} parent=1 // pred_fallthru
      _
    // Predicated region
    $region14: #{refine_discriminator_forward.1} parent=1 // pred_check
      _
    $region15: #{refine_discriminator_forward.1} parent=1 // pred_check_branch
      %28 = sbr.rel (0) target = $region17
    $region16: #{refine_discriminator_forward.1} parent=1 // pred_region
      _
    $region17: #{refine_discriminator_forward.1} parent=1 // pred_fallthru
      _
    // Predicated region
    $region18: #{refine_discriminator_forward.1} parent=1 // pred_check
      _
    $region19: #{refine_discriminator_forward.1} parent=1 // pred_check_branch
      %30 = sbr.rel (0) target = $region21
    $region20: #{refine_discriminator_forward.1} parent=1 // pred_region
      _
    $region21: #{refine_discriminator_forward.1} parent=1 // pred_fallthru
      _
    // Predicated region
    $region22: #{refine_discriminator_forward.1} parent=1 // pred_check
      _
    $region23: #{refine_discriminator_forward.1} parent=1 // pred_check_branch
      %32 = sbr.rel (0) target = $region25
    $region24: #{refine_discriminator_forward.1} parent=1 // pred_region
      _
    $region25: #{refine_discriminator_forward.1} parent=1 // pred_fallthru
      _
    // Predicated region
    $region26: #{refine_discriminator_forward.1} parent=1 // pred_check
      _
    $region27: #{refine_discriminator_forward.1} parent=1 // pred_check_branch
      %34 = sbr.rel (0) target = $region29
    $region28: #{refine_discriminator_forward.1} parent=1 // pred_region
      _
    $region29: #{refine_discriminator_forward.1} parent=1 // pred_fallthru
      _
    // Predicated region
    $region30: #{refine_discriminator_forward.1} parent=1 // pred_check
      _
    $region31: #{refine_discriminator_forward.1} parent=1 // pred_check_branch
      %36 = sbr.rel (0) target = $region33
    $region32: #{refine_discriminator_forward.1} parent=1 // pred_region
      _
    $region33: #{refine_discriminator_forward.1} parent=1 // pred_fallthru
      _
    // Predicated region
    $region34: #{refine_discriminator_forward.1} parent=1 // pred_check
      _
    $region35: #{refine_discriminator_forward.1} parent=1 // pred_check_branch
      %38 = sbr.rel (0) target = $region37
    $region36: #{refine_discriminator_forward.1} parent=1 // pred_region
      %40 = dma.done [#allocation4], 16
    $region37: #{refine_discriminator_forward.1} parent=1 // pred_fallthru
      _
    %41 = sfence
    %vm43 = vcmask 523264
    %44 = vst.msk [vmem:[#allocation2] sm:$0xff] %vm43, 0.0
    %45 = vst.msk [vmem:[#allocation2 + $0x20] sm:$0xff] %vm43, 0.0
    %46 = vst.msk [vmem:[#allocation2 + $0x18] sm:$0xff] %vm43, 0.0
    %47 = vst.msk [vmem:[#allocation2 + $0x38] sm:$0xff] %vm43, 0.0
    %v48 = vld [vmem:[%s1] sm:$0xff]
    %v49 = vld [vmem:[%s1 + $0x8] sm:$0xff]
    %v50 = vld [vmem:[%s1 + $0x10] sm:$0xff]
    %v51 = vld [vmem:[%s1 + $0x18] sm:$0xff]
    %52 = vst.msk [vmem:[#allocation2 + $0x8] sm:$0xff] %vm43, %v48
    %53 = vst.msk [vmem:[#allocation2 + $0x10] sm:$0xff] %vm43, %v49
    %54 = vst.msk [vmem:[#allocation2 + $0x28] sm:$0xff] %vm43, %v50
    %55 = vst.msk [vmem:[#allocation2 + $0x30] sm:$0xff] %vm43, %v51
    %v56 = vld [vmem:[%s3] sm:$0x1]
    %v57 = vld [vmem:[#allocation2 + $0x1] sm:$0xff]
    %v58 = vld [vmem:[#allocation2 + $0x9] sm:$0xff]
    %v59 = vld [vmem:[#allocation2 + $0x21] sm:$0xff]
    %v60 = vld [vmem:[#allocation2 + $0x29] sm:$0xff]
    %v61 = vpack.c.bf16 %v58, %v57
    %v62 = vpack.c.bf16 %v60, %v59
    %v63 = vld [vmem:[%s2] sm:$0xf]
    %v64 = vld [vmem:[%s2 + $0x4] sm:$0xf]
    %v65 = vld [vmem:[%s2 + $0x8] sm:$0xf]
    %v66 = vld [vmem:[%s2 + $0xc] sm:$0xf]
    %v67 = vld [vmem:[%s2 + $0x10] sm:$0xf]
    %v68 = vld [vmem:[%s2 + $0x14] sm:$0xf]
    %v69 = vld [vmem:[%s2 + $0x18] sm:$0xf]
    %v70 = vld [vmem:[%s2 + $0x1c] sm:$0xf]
    %v71 = vld [vmem:[#allocation2 + $0x2] sm:$0xff]
    %v72 = vld [vmem:[#allocation2 + $0xa] sm:$0xff]
    %v73 = vld [vmem:[#allocation2 + $0x22] sm:$0xff]
    %v74 = vld [vmem:[#allocation2 + $0x2a] sm:$0xff]
    %v75 = vpack.c.bf16 %v72, %v71
    %v76 = vpack.c.bf16 %v74, %v73
    %s77 = scalar_lea.vmem %s2, 32
    %v78 = vld [vmem:[%s77] sm:$0xf]
    %v79 = vld [vmem:[%s77 + $0x4] sm:$0xf]
    %v80 = vld [vmem:[%s77 + $0x8] sm:$0xf]
    %v81 = vld [vmem:[%s77 + $0xc] sm:$0xf]
    %v82 = vld [vmem:[%s77 + $0x10] sm:$0xf]
    %v83 = vld [vmem:[%s77 + $0x14] sm:$0xf]
    %v84 = vld [vmem:[%s77 + $0x18] sm:$0xf]
    %v85 = vld [vmem:[%s77 + $0x1c] sm:$0xf]
    %v94 = vunpack.c.l.b16 %v78
    %v95 = vunpack.c.l.b16 %v79
    %v96 = vunpack.c.l.b16 %v80
    %v97 = vunpack.c.l.b16 %v81
    %v98 = vunpack.c.l.b16 %v82
    %v99 = vunpack.c.l.b16 %v83
    %v100 = vunpack.c.l.b16 %v84
    %v101 = vunpack.c.l.b16 %v85
    %v102 = vpack.c.b16 %v95, %v94
    %v103 = vpack.c.b16 %v97, %v96
    %v104 = vpack.c.b16 %v99, %v98
    %v105 = vpack.c.b16 %v101, %v100
    %v111 = vsel %vm43, %v75, 0
    %v114 = vsel %vm43, %v76, 0
    %116 = vmatpush.bf16.msra.mxu0 0
    %117 = vmatpush.bf16.msra.mxu0 0
    %118 = vmatpush.bf16.msra.mxu0 0
    %119 = vmatpush.bf16.msra.mxu0 0
    %120 = vmatpush.bf16.msra.mxu0 %v105
    %121 = vmatpush.bf16.msra.mxu0 %v104
    %122 = vmatpush.bf16.msra.mxu0 %v103
    %123 = vmatpush.bf16.msra.mxu0 %v102
    %124 = vmatmul.bf16.gmra.mxu0 %v111
    %v125 = vpop.f32.mrf.mxu0
    %v126 = vadd.f32 0.0, %v125
    %v127 = vpop.f32.mrf.mxu0
    %v128 = vadd.f32 0.0, %v127
    %129 = vmatmul.bf16.gmra.mxu0 %v114
    %v130 = vpop.f32.mrf.mxu0
    %v131 = vadd.f32 0.0, %v130
    %v132 = vpop.f32.mrf.mxu0
    %v133 = vadd.f32 0.0, %v132
    %134 = vdwg.mxu0
    %v143 = vunpack.c.l.b16 %v63
    %v144 = vunpack.c.l.b16 %v64
    %v145 = vunpack.c.l.b16 %v65
    %v146 = vunpack.c.l.b16 %v66
    %v147 = vunpack.c.l.b16 %v67
    %v148 = vunpack.c.l.b16 %v68
    %v149 = vunpack.c.l.b16 %v69
    %v150 = vunpack.c.l.b16 %v70
    %v151 = vpack.c.b16 %v144, %v143
    %v152 = vpack.c.b16 %v146, %v145
    %v153 = vpack.c.b16 %v148, %v147
    %v154 = vpack.c.b16 %v150, %v149
    %v160 = vsel %vm43, %v61, 0
    %v163 = vsel %vm43, %v62, 0
    %165 = vmatpush.bf16.msra.mxu0 0
    %166 = vmatpush.bf16.msra.mxu0 0
    %167 = vmatpush.bf16.msra.mxu0 0
    %168 = vmatpush.bf16.msra.mxu0 0
    %169 = vmatpush.bf16.msra.mxu0 %v154
    %170 = vmatpush.bf16.msra.mxu0 %v153
    %171 = vmatpush.bf16.msra.mxu0 %v152
    %172 = vmatpush.bf16.msra.mxu0 %v151
    %173 = vmatmul.bf16.gmra.mxu0 %v160
    %v174 = vpop.f32.mrf.mxu0
    %v175 = vadd.f32 %v126, %v174
    %v176 = vpop.f32.mrf.mxu0
    %v177 = vadd.f32 %v128, %v176
    %178 = vmatmul.bf16.gmra.mxu0 %v163
    %v179 = vpop.f32.mrf.mxu0
    %v180 = vadd.f32 %v131, %v179
    %v181 = vpop.f32.mrf.mxu0
    %v182 = vadd.f32 %v133, %v181
    %183 = vdwg.mxu0
    %v184 = vld [vmem:[#allocation2 + $0x3] sm:$0xff]
    %v185 = vld [vmem:[#allocation2 + $0xb] sm:$0xff]
    %v186 = vld [vmem:[#allocation2 + $0x23] sm:$0xff]
    %v187 = vld [vmem:[#allocation2 + $0x2b] sm:$0xff]
    %v188 = vpack.c.bf16 %v185, %v184
    %v189 = vpack.c.bf16 %v187, %v186
    %s190 = scalar_lea.vmem %s2, 64
    %v191 = vld [vmem:[%s190] sm:$0xf]
    %v192 = vld [vmem:[%s190 + $0x4] sm:$0xf]
    %v193 = vld [vmem:[%s190 + $0x8] sm:$0xf]
    %v194 = vld [vmem:[%s190 + $0xc] sm:$0xf]
    %v195 = vld [vmem:[%s190 + $0x10] sm:$0xf]
    %v196 = vld [vmem:[%s190 + $0x14] sm:$0xf]
    %v197 = vld [vmem:[%s190 + $0x18] sm:$0xf]
    %v198 = vld [vmem:[%s190 + $0x1c] sm:$0xf]
    %v207 = vunpack.c.l.b16 %v191
    %v208 = vunpack.c.l.b16 %v192
    %v209 = vunpack.c.l.b16 %v193
    %v210 = vunpack.c.l.b16 %v194
    %v211 = vunpack.c.l.b16 %v195
    %v212 = vunpack.c.l.b16 %v196
    %v213 = vunpack.c.l.b16 %v197
    %v214 = vunpack.c.l.b16 %v198
    %v215 = vpack.c.b16 %v208, %v207
    %v216 = vpack.c.b16 %v210, %v209
    %v217 = vpack.c.b16 %v212, %v211
    %v218 = vpack.c.b16 %v214, %v213
    %v224 = vsel %vm43, %v188, 0
    %v227 = vsel %vm43, %v189, 0
    %229 = vmatpush.bf16.msra.mxu0 0
    %230 = vmatpush.bf16.msra.mxu0 0
    %231 = vmatpush.bf16.msra.mxu0 0
    %232 = vmatpush.bf16.msra.mxu0 0
    %233 = vmatpush.bf16.msra.mxu0 %v218
    %234 = vmatpush.bf16.msra.mxu0 %v217
    %235 = vmatpush.bf16.msra.mxu0 %v216
    %236 = vmatpush.bf16.msra.mxu0 %v215
    %237 = vmatmul.bf16.gmra.mxu0 %v224
    %v238 = vpop.f32.mrf.mxu0
    %v239 = vadd.f32 0.0, %v238
    %v240 = vpop.f32.mrf.mxu0
    %v241 = vadd.f32 0.0, %v240
    %242 = vmatmul.bf16.gmra.mxu0 %v227
    %v243 = vpop.f32.mrf.mxu0
    %v244 = vadd.f32 0.0, %v243
    %v245 = vpop.f32.mrf.mxu0
    %v246 = vadd.f32 0.0, %v245
    %247 = vdwg.mxu0
    %v248 = vadd.f32 %v175, %v239
    %v249 = vadd.f32 %v177, %v241
    %v250 = vadd.f32 %v180, %v244
    %v251 = vadd.f32 %v182, %v246
    %v252 = vld [vmem:[#allocation2 + $0x4] sm:$0xff]
    %v253 = vld [vmem:[#allocation2 + $0xc] sm:$0xff]
    %v254 = vld [vmem:[#allocation2 + $0x24] sm:$0xff]
    %v255 = vld [vmem:[#allocation2 + $0x2c] sm:$0xff]
    %v256 = vpack.c.bf16 %v253, %v252
    %v257 = vpack.c.bf16 %v255, %v254
    %s258 = scalar_lea.vmem %s2, 96
    %v259 = vld [vmem:[%s258] sm:$0xf]
    %v260 = vld [vmem:[%s258 + $0x4] sm:$0xf]
    %v261 = vld [vmem:[%s258 + $0x8] sm:$0xf]
    %v262 = vld [vmem:[%s258 + $0xc] sm:$0xf]
    %v263 = vld [vmem:[%s258 + $0x10] sm:$0xf]
    %v264 = vld [vmem:[%s258 + $0x14] sm:$0xf]
    %v265 = vld [vmem:[%s258 + $0x18] sm:$0xf]
    %v266 = vld [vmem:[%s258 + $0x1c] sm:$0xf]
    %v275 = vunpack.c.l.b16 %v259
    %v276 = vunpack.c.l.b16 %v260
    %v277 = vunpack.c.l.b16 %v261
    %v278 = vunpack.c.l.b16 %v262
    %v279 = vunpack.c.l.b16 %v263
    %v280 = vunpack.c.l.b16 %v264
    %v281 = vunpack.c.l.b16 %v265
    %v282 = vunpack.c.l.b16 %v266
    %v283 = vpack.c.b16 %v276, %v275
    %v284 = vpack.c.b16 %v278, %v277
    %v285 = vpack.c.b16 %v280, %v279
    %v286 = vpack.c.b16 %v282, %v281
    %v292 = vsel %vm43, %v256, 0
    %v295 = vsel %vm43, %v257, 0
    %297 = vmatpush.bf16.msra.mxu0 0
    %298 = vmatpush.bf16.msra.mxu0 0
    %299 = vmatpush.bf16.msra.mxu0 0
    %300 = vmatpush.bf16.msra.mxu0 0
    %301 = vmatpush.bf16.msra.mxu0 %v286
    %302 = vmatpush.bf16.msra.mxu0 %v285
    %303 = vmatpush.bf16.msra.mxu0 %v284
    %304 = vmatpush.bf16.msra.mxu0 %v283
    %305 = vmatmul.bf16.gmra.mxu0 %v292
    %v306 = vpop.f32.mrf.mxu0
    %v307 = vadd.f32 0.0, %v306
    %v308 = vpop.f32.mrf.mxu0
    %v309 = vadd.f32 0.0, %v308
    %310 = vmatmul.bf16.gmra.mxu0 %v295
    %v311 = vpop.f32.mrf.mxu0
    %v312 = vadd.f32 0.0, %v311
    %v313 = vpop.f32.mrf.mxu0
    %v314 = vadd.f32 0.0, %v313
    %315 = vdwg.mxu0
    %v316 = vadd.f32 %v248, %v307
    %v317 = vadd.f32 %v249, %v309
    %v318 = vadd.f32 %v250, %v312
    %v319 = vadd.f32 %v251, %v314
    %v320 = vld [vmem:[#allocation2 + $0x5] sm:$0xff]
    %v321 = vld [vmem:[#allocation2 + $0xd] sm:$0xff]
    %v322 = vld [vmem:[#allocation2 + $0x25] sm:$0xff]
    %v323 = vld [vmem:[#allocation2 + $0x2d] sm:$0xff]
    %v324 = vpack.c.bf16 %v321, %v320
    %v325 = vpack.c.bf16 %v323, %v322
    %s326 = scalar_lea.vmem %s2, 128
    %v327 = vld [vmem:[%s326] sm:$0xf]
    %v328 = vld [vmem:[%s326 + $0x4] sm:$0xf]
    %v329 = vld [vmem:[%s326 + $0x8] sm:$0xf]
    %v330 = vld [vmem:[%s326 + $0xc] sm:$0xf]
    %v331 = vld [vmem:[%s326 + $0x10] sm:$0xf]
    %v332 = vld [vmem:[%s326 + $0x14] sm:$0xf]
    %v333 = vld [vmem:[%s326 + $0x18] sm:$0xf]
    %v334 = vld [vmem:[%s326 + $0x1c] sm:$0xf]
    %v343 = vunpack.c.l.b16 %v327
    %v344 = vunpack.c.l.b16 %v328
    %v345 = vunpack.c.l.b16 %v329
    %v346 = vunpack.c.l.b16 %v330
    %v347 = vunpack.c.l.b16 %v331
    %v348 = vunpack.c.l.b16 %v332
    %v349 = vunpack.c.l.b16 %v333
    %v350 = vunpack.c.l.b16 %v334
    %v351 = vpack.c.b16 %v344, %v343
    %v352 = vpack.c.b16 %v346, %v345
    %v353 = vpack.c.b16 %v348, %v347
    %v354 = vpack.c.b16 %v350, %v349
    %v360 = vsel %vm43, %v324, 0
    %v363 = vsel %vm43, %v325, 0
    %365 = vmatpush.bf16.msra.mxu0 0
    %366 = vmatpush.bf16.msra.mxu0 0
    %367 = vmatpush.bf16.msra.mxu0 0
    %368 = vmatpush.bf16.msra.mxu0 0
    %369 = vmatpush.bf16.msra.mxu0 %v354
    %370 = vmatpush.bf16.msra.mxu0 %v353
    %371 = vmatpush.bf16.msra.mxu0 %v352
    %372 = vmatpush.bf16.msra.mxu0 %v351
    %373 = vmatmul.bf16.gmra.mxu0 %v360
    %v374 = vpop.f32.mrf.mxu0
    %v375 = vadd.f32 0.0, %v374
    %v376 = vpop.f32.mrf.mxu0
    %v377 = vadd.f32 0.0, %v376
    %378 = vmatmul.bf16.gmra.mxu0 %v363
    %v379 = vpop.f32.mrf.mxu0
    %v380 = vadd.f32 0.0, %v379
    %v381 = vpop.f32.mrf.mxu0
    %v382 = vadd.f32 0.0, %v381
    %383 = vdwg.mxu0
    %v384 = vadd.f32 %v316, %v375
    %v385 = vadd.f32 %v317, %v377
    %v386 = vadd.f32 %v318, %v380
    %v387 = vadd.f32 %v319, %v382
    %v388 = vld [vmem:[#allocation2 + $0x6] sm:$0xff]
    %v389 = vld [vmem:[#allocation2 + $0xe] sm:$0xff]
    %v390 = vld [vmem:[#allocation2 + $0x26] sm:$0xff]
    %v391 = vld [vmem:[#allocation2 + $0x2e] sm:$0xff]
    %v392 = vpack.c.bf16 %v389, %v388
    %v393 = vpack.c.bf16 %v391, %v390
    %s394 = scalar_lea.vmem %s2, 160
    %v395 = vld [vmem:[%s394] sm:$0xf]
    %v396 = vld [vmem:[%s394 + $0x4] sm:$0xf]
    %v397 = vld [vmem:[%s394 + $0x8] sm:$0xf]
    %v398 = vld [vmem:[%s394 + $0xc] sm:$0xf]
    %v399 = vld [vmem:[%s394 + $0x10] sm:$0xf]
    %v400 = vld [vmem:[%s394 + $0x14] sm:$0xf]
    %v401 = vld [vmem:[%s394 + $0x18] sm:$0xf]
    %v402 = vld [vmem:[%s394 + $0x1c] sm:$0xf]
    %v411 = vunpack.c.l.b16 %v395
    %v412 = vunpack.c.l.b16 %v396
    %v413 = vunpack.c.l.b16 %v397
    %v414 = vunpack.c.l.b16 %v398
    %v415 = vunpack.c.l.b16 %v399
    %v416 = vunpack.c.l.b16 %v400
    %v417 = vunpack.c.l.b16 %v401
    %v418 = vunpack.c.l.b16 %v402
    %v419 = vpack.c.b16 %v412, %v411
    %v420 = vpack.c.b16 %v414, %v413
    %v421 = vpack.c.b16 %v416, %v415
    %v422 = vpack.c.b16 %v418, %v417
    %v428 = vsel %vm43, %v392, 0
    %v431 = vsel %vm43, %v393, 0
    %433 = vmatpush.bf16.msra.mxu0 0
    %434 = vmatpush.bf16.msra.mxu0 0
    %435 = vmatpush.bf16.msra.mxu0 0
    %436 = vmatpush.bf16.msra.mxu0 0
    %437 = vmatpush.bf16.msra.mxu0 %v422
    %438 = vmatpush.bf16.msra.mxu0 %v421
    %439 = vmatpush.bf16.msra.mxu0 %v420
    %440 = vmatpush.bf16.msra.mxu0 %v419
    %441 = vmatmul.bf16.gmra.mxu0 %v428
    %v442 = vpop.f32.mrf.mxu0
    %v443 = vadd.f32 0.0, %v442
    %v444 = vpop.f32.mrf.mxu0
    %v445 = vadd.f32 0.0, %v444
    %446 = vmatmul.bf16.gmra.mxu0 %v431
    %v447 = vpop.f32.mrf.mxu0
    %v448 = vadd.f32 0.0, %v447
    %v449 = vpop.f32.mrf.mxu0
    %v450 = vadd.f32 0.0, %v449
    %451 = vdwg.mxu0
    %v452 = vadd.f32 %v384, %v443
    %v453 = vadd.f32 %v385, %v445
    %v454 = vadd.f32 %v386, %v448
    %v455 = vadd.f32 %v387, %v450
    %v456 = vld [vmem:[#allocation2 + $0x7] sm:$0xff]
    %v457 = vld [vmem:[#allocation2 + $0xf] sm:$0xff]
    %v458 = vld [vmem:[#allocation2 + $0x27] sm:$0xff]
    %v459 = vld [vmem:[#allocation2 + $0x2f] sm:$0xff]
    %v460 = vpack.c.bf16 %v457, %v456
    %v461 = vpack.c.bf16 %v459, %v458
    %s462 = scalar_lea.vmem %s2, 192
    %v463 = vld [vmem:[%s462] sm:$0xf]
    %v464 = vld [vmem:[%s462 + $0x4] sm:$0xf]
    %v465 = vld [vmem:[%s462 + $0x8] sm:$0xf]
    %v466 = vld [vmem:[%s462 + $0xc] sm:$0xf]
    %v467 = vld [vmem:[%s462 + $0x10] sm:$0xf]
    %v468 = vld [vmem:[%s462 + $0x14] sm:$0xf]
    %v469 = vld [vmem:[%s462 + $0x18] sm:$0xf]
    %v470 = vld [vmem:[%s462 + $0x1c] sm:$0xf]
    %v479 = vunpack.c.l.b16 %v463
    %v480 = vunpack.c.l.b16 %v464
    %v481 = vunpack.c.l.b16 %v465
    %v482 = vunpack.c.l.b16 %v466
    %v483 = vunpack.c.l.b16 %v467
    %v484 = vunpack.c.l.b16 %v468
    %v485 = vunpack.c.l.b16 %v469
    %v486 = vunpack.c.l.b16 %v470
    %v487 = vpack.c.b16 %v480, %v479
    %v488 = vpack.c.b16 %v482, %v481
    %v489 = vpack.c.b16 %v484, %v483
    %v490 = vpack.c.b16 %v486, %v485
    %v496 = vsel %vm43, %v460, 0
    %v499 = vsel %vm43, %v461, 0
    %501 = vmatpush.bf16.msra.mxu0 0
    %502 = vmatpush.bf16.msra.mxu0 0
    %503 = vmatpush.bf16.msra.mxu0 0
    %504 = vmatpush.bf16.msra.mxu0 0
    %505 = vmatpush.bf16.msra.mxu0 %v490
    %506 = vmatpush.bf16.msra.mxu0 %v489
    %507 = vmatpush.bf16.msra.mxu0 %v488
    %508 = vmatpush.bf16.msra.mxu0 %v487
    %509 = vmatmul.bf16.gmra.mxu0 %v496
    %v510 = vpop.f32.mrf.mxu0
    %v511 = vadd.f32 0.0, %v510
    %v512 = vpop.f32.mrf.mxu0
    %v513 = vadd.f32 0.0, %v512
    %514 = vmatmul.bf16.gmra.mxu0 %v499
    %v515 = vpop.f32.mrf.mxu0
    %v516 = vadd.f32 0.0, %v515
    %v517 = vpop.f32.mrf.mxu0
    %v518 = vadd.f32 0.0, %v517
    %519 = vdwg.mxu0
    %v520 = vadd.f32 %v452, %v511
    %v521 = vadd.f32 %v453, %v513
    %v522 = vadd.f32 %v454, %v516
    %v523 = vadd.f32 %v455, %v518
    %v524 = vld [vmem:[#allocation2 + $0x8] sm:$0xff]
    %v525 = vld [vmem:[#allocation2 + $0x10] sm:$0xff]
    %v526 = vld [vmem:[#allocation2 + $0x28] sm:$0xff]
    %v527 = vld [vmem:[#allocation2 + $0x30] sm:$0xff]
    %v528 = vpack.c.bf16 %v525, %v524
    %v529 = vpack.c.bf16 %v527, %v526
    %s530 = scalar_lea.vmem %s2, 224
    %v531 = vld [vmem:[%s530] sm:$0xf]
    %v532 = vld [vmem:[%s530 + $0x4] sm:$0xf]
    %v533 = vld [vmem:[%s530 + $0x8] sm:$0xf]
    %v534 = vld [vmem:[%s530 + $0xc] sm:$0xf]
    %v535 = vld [vmem:[%s530 + $0x10] sm:$0xf]
    %v536 = vld [vmem:[%s530 + $0x14] sm:$0xf]
    %v537 = vld [vmem:[%s530 + $0x18] sm:$0xf]
    %v538 = vld [vmem:[%s530 + $0x1c] sm:$0xf]
    %v547 = vunpack.c.l.b16 %v531
    %v548 = vunpack.c.l.b16 %v532
    %v549 = vunpack.c.l.b16 %v533
    %v550 = vunpack.c.l.b16 %v534
    %v551 = vunpack.c.l.b16 %v535
    %v552 = vunpack.c.l.b16 %v536
    %v553 = vunpack.c.l.b16 %v537
    %v554 = vunpack.c.l.b16 %v538
    %v555 = vpack.c.b16 %v548, %v547
    %v556 = vpack.c.b16 %v550, %v549
    %v557 = vpack.c.b16 %v552, %v551
    %v558 = vpack.c.b16 %v554, %v553
    %v564 = vsel %vm43, %v528, 0
    %v567 = vsel %vm43, %v529, 0
    %569 = vmatpush.bf16.msra.mxu0 0
    %570 = vmatpush.bf16.msra.mxu0 0
    %571 = vmatpush.bf16.msra.mxu0 0
    %572 = vmatpush.bf16.msra.mxu0 0
    %573 = vmatpush.bf16.msra.mxu0 %v558
    %574 = vmatpush.bf16.msra.mxu0 %v557
    %575 = vmatpush.bf16.msra.mxu0 %v556
    %576 = vmatpush.bf16.msra.mxu0 %v555
    %577 = vmatmul.bf16.gmra.mxu0 %v564
    %v578 = vpop.f32.mrf.mxu0
    %v579 = vadd.f32 0.0, %v578
    %v580 = vpop.f32.mrf.mxu0
    %v581 = vadd.f32 0.0, %v580
    %582 = vmatmul.bf16.gmra.mxu0 %v567
    %v583 = vpop.f32.mrf.mxu0
    %v584 = vadd.f32 0.0, %v583
    %v585 = vpop.f32.mrf.mxu0
    %v586 = vadd.f32 0.0, %v585
    %587 = vdwg.mxu0
    %v588 = vadd.f32 %v520, %v579
    %v589 = vadd.f32 %v521, %v581
    %v590 = vadd.f32 %v522, %v584
    %v591 = vadd.f32 %v523, %v586
    %v592 = vld [vmem:[#allocation2 + $0x9] sm:$0xff]
    %v593 = vld [vmem:[#allocation2 + $0x11] sm:$0xff]
    %v594 = vld [vmem:[#allocation2 + $0x29] sm:$0xff]
    %v595 = vld [vmem:[#allocation2 + $0x31] sm:$0xff]
    %v596 = vpack.c.bf16 %v593, %v592
    %v597 = vpack.c.bf16 %v595, %v594
    %s598 = scalar_lea.vmem %s2, 256
    %v599 = vld [vmem:[%s598] sm:$0xf]
    %v600 = vld [vmem:[%s598 + $0x4] sm:$0xf]
    %v601 = vld [vmem:[%s598 + $0x8] sm:$0xf]
    %v602 = vld [vmem:[%s598 + $0xc] sm:$0xf]
    %v603 = vld [vmem:[%s598 + $0x10] sm:$0xf]
    %v604 = vld [vmem:[%s598 + $0x14] sm:$0xf]
    %v605 = vld [vmem:[%s598 + $0x18] sm:$0xf]
    %v606 = vld [vmem:[%s598 + $0x1c] sm:$0xf]
    %v615 = vunpack.c.l.b16 %v599
    %v616 = vunpack.c.l.b16 %v600
    %v617 = vunpack.c.l.b16 %v601
    %v618 = vunpack.c.l.b16 %v602
    %v619 = vunpack.c.l.b16 %v603
    %v620 = vunpack.c.l.b16 %v604
    %v621 = vunpack.c.l.b16 %v605
    %v622 = vunpack.c.l.b16 %v606
    %v623 = vpack.c.b16 %v616, %v615
    %v624 = vpack.c.b16 %v618, %v617
    %v625 = vpack.c.b16 %v620, %v619
    %v626 = vpack.c.b16 %v622, %v621
    %v632 = vsel %vm43, %v596, 0
    %v635 = vsel %vm43, %v597, 0
    %637 = vmatpush.bf16.msra.mxu0 0
    %638 = vmatpush.bf16.msra.mxu0 0
    %639 = vmatpush.bf16.msra.mxu0 0
    %640 = vmatpush.bf16.msra.mxu0 0
    %641 = vmatpush.bf16.msra.mxu0 %v626
    %642 = vmatpush.bf16.msra.mxu0 %v625
    %643 = vmatpush.bf16.msra.mxu0 %v624
    %644 = vmatpush.bf16.msra.mxu0 %v623
    %645 = vmatmul.bf16.gmra.mxu0 %v632
    %v646 = vpop.f32.mrf.mxu0
    %v647 = vadd.f32 0.0, %v646
    %v648 = vpop.f32.mrf.mxu0
    %v649 = vadd.f32 0.0, %v648
    %650 = vmatmul.bf16.gmra.mxu0 %v635
    %v651 = vpop.f32.mrf.mxu0
    %v652 = vadd.f32 0.0, %v651
    %v653 = vpop.f32.mrf.mxu0
    %v654 = vadd.f32 0.0, %v653
    %655 = vdwg.mxu0
    %v656 = vadd.f32 %v588, %v647
    %v657 = vadd.f32 %v589, %v649
    %v658 = vadd.f32 %v590, %v652
    %v659 = vadd.f32 %v591, %v654
    %v660 = vld [vmem:[#allocation2 + $0xa] sm:$0xff]
    %v661 = vld [vmem:[#allocation2 + $0x12] sm:$0xff]
    %v662 = vld [vmem:[#allocation2 + $0x2a] sm:$0xff]
    %v663 = vld [vmem:[#allocation2 + $0x32] sm:$0xff]
    %v664 = vpack.c.bf16 %v661, %v660
    %v665 = vpack.c.bf16 %v663, %v662
    %s666 = scalar_lea.vmem %s2, 288
    %v667 = vld [vmem:[%s666] sm:$0xf]
    %v668 = vld [vmem:[%s666 + $0x4] sm:$0xf]
    %v669 = vld [vmem:[%s666 + $0x8] sm:$0xf]
    %v670 = vld [vmem:[%s666 + $0xc] sm:$0xf]
    %v671 = vld [vmem:[%s666 + $0x10] sm:$0xf]
    %v672 = vld [vmem:[%s666 + $0x14] sm:$0xf]
    %v673 = vld [vmem:[%s666 + $0x18] sm:$0xf]
    %v674 = vld [vmem:[%s666 + $0x1c] sm:$0xf]
    %v683 = vunpack.c.l.b16 %v667
    %v684 = vunpack.c.l.b16 %v668
    %v685 = vunpack.c.l.b16 %v669
    %v686 = vunpack.c.l.b16 %v670
    %v687 = vunpack.c.l.b16 %v671
    %v688 = vunpack.c.l.b16 %v672
    %v689 = vunpack.c.l.b16 %v673
    %v690 = vunpack.c.l.b16 %v674
    %v691 = vpack.c.b16 %v684, %v683
    %v692 = vpack.c.b16 %v686, %v685
    %v693 = vpack.c.b16 %v688, %v687
    %v694 = vpack.c.b16 %v690, %v689
    %v700 = vsel %vm43, %v664, 0
    %v703 = vsel %vm43, %v665, 0
    %705 = vmatpush.bf16.msra.mxu0 0
    %706 = vmatpush.bf16.msra.mxu0 0
    %707 = vmatpush.bf16.msra.mxu0 0
    %708 = vmatpush.bf16.msra.mxu0 0
    %709 = vmatpush.bf16.msra.mxu0 %v694
    %710 = vmatpush.bf16.msra.mxu0 %v693
    %711 = vmatpush.bf16.msra.mxu0 %v692
    %712 = vmatpush.bf16.msra.mxu0 %v691
    %713 = vmatmul.bf16.gmra.mxu0 %v700
    %v714 = vpop.f32.mrf.mxu0
    %v715 = vadd.f32 0.0, %v714
    %v716 = vpop.f32.mrf.mxu0
    %v717 = vadd.f32 0.0, %v716
    %718 = vmatmul.bf16.gmra.mxu0 %v703
    %v719 = vpop.f32.mrf.mxu0
    %v720 = vadd.f32 0.0, %v719
    %v721 = vpop.f32.mrf.mxu0
    %v722 = vadd.f32 0.0, %v721
    %723 = vdwg.mxu0
    %v724 = vadd.f32 %v656, %v715
    %v725 = vadd.f32 %v657, %v717
    %v726 = vadd.f32 %v658, %v720
    %v727 = vadd.f32 %v659, %v722
    %v728 = vld [vmem:[#allocation2 + $0xb] sm:$0xff]
    %v729 = vld [vmem:[#allocation2 + $0x13] sm:$0xff]
    %v730 = vld [vmem:[#allocation2 + $0x2b] sm:$0xff]
    %v731 = vld [vmem:[#allocation2 + $0x33] sm:$0xff]
    %v732 = vpack.c.bf16 %v729, %v728
    %v733 = vpack.c.bf16 %v731, %v730
    %s734 = scalar_lea.vmem %s2, 320
    %v735 = vld [vmem:[%s734] sm:$0xf]
    %v736 = vld [vmem:[%s734 + $0x4] sm:$0xf]
    %v737 = vld [vmem:[%s734 + $0x8] sm:$0xf]
    %v738 = vld [vmem:[%s734 + $0xc] sm:$0xf]
    %v739 = vld [vmem:[%s734 + $0x10] sm:$0xf]
    %v740 = vld [vmem:[%s734 + $0x14] sm:$0xf]
    %v741 = vld [vmem:[%s734 + $0x18] sm:$0xf]
    %v742 = vld [vmem:[%s734 + $0x1c] sm:$0xf]
    %v751 = vunpack.c.l.b16 %v735
    %v752 = vunpack.c.l.b16 %v736
    %v753 = vunpack.c.l.b16 %v737
    %v754 = vunpack.c.l.b16 %v738
    %v755 = vunpack.c.l.b16 %v739
    %v756 = vunpack.c.l.b16 %v740
    %v757 = vunpack.c.l.b16 %v741
    %v758 = vunpack.c.l.b16 %v742
    %v759 = vpack.c.b16 %v752, %v751
    %v760 = vpack.c.b16 %v754, %v753
    %v761 = vpack.c.b16 %v756, %v755
    %v762 = vpack.c.b16 %v758, %v757
    %v768 = vsel %vm43, %v732, 0
    %v771 = vsel %vm43, %v733, 0
    %773 = vmatpush.bf16.msra.mxu0 0
    %774 = vmatpush.bf16.msra.mxu0 0
    %775 = vmatpush.bf16.msra.mxu0 0
    %776 = vmatpush.bf16.msra.mxu0 0
    %777 = vmatpush.bf16.msra.mxu0 %v762
    %778 = vmatpush.bf16.msra.mxu0 %v761
    %779 = vmatpush.bf16.msra.mxu0 %v760
    %780 = vmatpush.bf16.msra.mxu0 %v759
    %781 = vmatmul.bf16.gmra.mxu0 %v768
    %v782 = vpop.f32.mrf.mxu0
    %v783 = vadd.f32 0.0, %v782
    %v784 = vpop.f32.mrf.mxu0
    %v785 = vadd.f32 0.0, %v784
    %786 = vmatmul.bf16.gmra.mxu0 %v771
    %v787 = vpop.f32.mrf.mxu0
    %v788 = vadd.f32 0.0, %v787
    %v789 = vpop.f32.mrf.mxu0
    %v790 = vadd.f32 0.0, %v789
    %791 = vdwg.mxu0
    %v792 = vadd.f32 %v724, %v783
    %v793 = vadd.f32 %v725, %v785
    %v794 = vadd.f32 %v726, %v788
    %v795 = vadd.f32 %v727, %v790
    %v796 = vld [vmem:[#allocation2 + $0xc] sm:$0xff]
    %v797 = vld [vmem:[#allocation2 + $0x14] sm:$0xff]
    %v798 = vld [vmem:[#allocation2 + $0x2c] sm:$0xff]
    %v799 = vld [vmem:[#allocation2 + $0x34] sm:$0xff]
    %v800 = vpack.c.bf16 %v797, %v796
    %v801 = vpack.c.bf16 %v799, %v798
    %s802 = scalar_lea.vmem %s2, 352
    %v803 = vld [vmem:[%s802] sm:$0xf]
    %v804 = vld [vmem:[%s802 + $0x4] sm:$0xf]
    %v805 = vld [vmem:[%s802 + $0x8] sm:$0xf]
    %v806 = vld [vmem:[%s802 + $0xc] sm:$0xf]
    %v807 = vld [vmem:[%s802 + $0x10] sm:$0xf]
    %v808 = vld [vmem:[%s802 + $0x14] sm:$0xf]
    %v809 = vld [vmem:[%s802 + $0x18] sm:$0xf]
    %v810 = vld [vmem:[%s802 + $0x1c] sm:$0xf]
    %v819 = vunpack.c.l.b16 %v803
    %v820 = vunpack.c.l.b16 %v804
    %v821 = vunpack.c.l.b16 %v805
    %v822 = vunpack.c.l.b16 %v806
    %v823 = vunpack.c.l.b16 %v807
    %v824 = vunpack.c.l.b16 %v808
    %v825 = vunpack.c.l.b16 %v809
    %v826 = vunpack.c.l.b16 %v810
    %v827 = vpack.c.b16 %v820, %v819
    %v828 = vpack.c.b16 %v822, %v821
    %v829 = vpack.c.b16 %v824, %v823
    %v830 = vpack.c.b16 %v826, %v825
    %v836 = vsel %vm43, %v800, 0
    %v839 = vsel %vm43, %v801, 0
    %841 = vmatpush.bf16.msra.mxu0 0
    %842 = vmatpush.bf16.msra.mxu0 0
    %843 = vmatpush.bf16.msra.mxu0 0
    %844 = vmatpush.bf16.msra.mxu0 0
    %845 = vmatpush.bf16.msra.mxu0 %v830
    %846 = vmatpush.bf16.msra.mxu0 %v829
    %847 = vmatpush.bf16.msra.mxu0 %v828
    %848 = vmatpush.bf16.msra.mxu0 %v827
    %849 = vmatmul.bf16.gmra.mxu0 %v836
    %v850 = vpop.f32.mrf.mxu0
    %v851 = vadd.f32 0.0, %v850
    %v852 = vpop.f32.mrf.mxu0
    %v853 = vadd.f32 0.0, %v852
    %854 = vmatmul.bf16.gmra.mxu0 %v839
    %v855 = vpop.f32.mrf.mxu0
    %v856 = vadd.f32 0.0, %v855
    %v857 = vpop.f32.mrf.mxu0
    %v858 = vadd.f32 0.0, %v857
    %859 = vdwg.mxu0
    %v860 = vadd.f32 %v792, %v851
    %v861 = vadd.f32 %v793, %v853
    %v862 = vadd.f32 %v794, %v856
    %v863 = vadd.f32 %v795, %v858
    %v864 = vld [vmem:[#allocation2 + $0xd] sm:$0xff]
    %v865 = vld [vmem:[#allocation2 + $0x15] sm:$0xff]
    %v866 = vld [vmem:[#allocation2 + $0x2d] sm:$0xff]
    %v867 = vld [vmem:[#allocation2 + $0x35] sm:$0xff]
    %v868 = vpack.c.bf16 %v865, %v864
    %v869 = vpack.c.bf16 %v867, %v866
    %s870 = scalar_lea.vmem %s2, 384
    %v871 = vld [vmem:[%s870] sm:$0xf]
    %v872 = vld [vmem:[%s870 + $0x4] sm:$0xf]
    %v873 = vld [vmem:[%s870 + $0x8] sm:$0xf]
    %v874 = vld [vmem:[%s870 + $0xc] sm:$0xf]
    %v875 = vld [vmem:[%s870 + $0x10] sm:$0xf]
    %v876 = vld [vmem:[%s870 + $0x14] sm:$0xf]
    %v877 = vld [vmem:[%s870 + $0x18] sm:$0xf]
    %v878 = vld [vmem:[%s870 + $0x1c] sm:$0xf]
    %v887 = vunpack.c.l.b16 %v871
    %v888 = vunpack.c.l.b16 %v872
    %v889 = vunpack.c.l.b16 %v873
    %v890 = vunpack.c.l.b16 %v874
    %v891 = vunpack.c.l.b16 %v875
    %v892 = vunpack.c.l.b16 %v876
    %v893 = vunpack.c.l.b16 %v877
    %v894 = vunpack.c.l.b16 %v878
    %v895 = vpack.c.b16 %v888, %v887
    %v896 = vpack.c.b16 %v890, %v889
    %v897 = vpack.c.b16 %v892, %v891
    %v898 = vpack.c.b16 %v894, %v893
    %v904 = vsel %vm43, %v868, 0
    %v907 = vsel %vm43, %v869, 0
    %909 = vmatpush.bf16.msra.mxu0 0
    %910 = vmatpush.bf16.msra.mxu0 0
    %911 = vmatpush.bf16.msra.mxu0 0
    %912 = vmatpush.bf16.msra.mxu0 0
    %913 = vmatpush.bf16.msra.mxu0 %v898
    %914 = vmatpush.bf16.msra.mxu0 %v897
    %915 = vmatpush.bf16.msra.mxu0 %v896
    %916 = vmatpush.bf16.msra.mxu0 %v895
    %917 = vmatmul.bf16.gmra.mxu0 %v904
    %v918 = vpop.f32.mrf.mxu0
    %v919 = vadd.f32 0.0, %v918
    %v920 = vpop.f32.mrf.mxu0
    %v921 = vadd.f32 0.0, %v920
    %922 = vmatmul.bf16.gmra.mxu0 %v907
    %v923 = vpop.f32.mrf.mxu0
    %v924 = vadd.f32 0.0, %v923
    %v925 = vpop.f32.mrf.mxu0
    %v926 = vadd.f32 0.0, %v925
    %927 = vdwg.mxu0
    %v928 = vadd.f32 %v860, %v919
    %v929 = vadd.f32 %v861, %v921
    %v930 = vadd.f32 %v862, %v924
    %v931 = vadd.f32 %v863, %v926
    %v932 = vld [vmem:[#allocation2 + $0xe] sm:$0xff]
    %v933 = vld [vmem:[#allocation2 + $0x16] sm:$0xff]
    %v934 = vld [vmem:[#allocation2 + $0x2e] sm:$0xff]
    %v935 = vld [vmem:[#allocation2 + $0x36] sm:$0xff]
    %v936 = vpack.c.bf16 %v933, %v932
    %v937 = vpack.c.bf16 %v935, %v934
    %s938 = scalar_lea.vmem %s2, 416
    %v939 = vld [vmem:[%s938] sm:$0xf]
    %v940 = vld [vmem:[%s938 + $0x4] sm:$0xf]
    %v941 = vld [vmem:[%s938 + $0x8] sm:$0xf]
    %v942 = vld [vmem:[%s938 + $0xc] sm:$0xf]
    %v943 = vld [vmem:[%s938 + $0x10] sm:$0xf]
    %v944 = vld [vmem:[%s938 + $0x14] sm:$0xf]
    %v945 = vld [vmem:[%s938 + $0x18] sm:$0xf]
    %v946 = vld [vmem:[%s938 + $0x1c] sm:$0xf]
    %v955 = vunpack.c.l.b16 %v939
    %v956 = vunpack.c.l.b16 %v940
    %v957 = vunpack.c.l.b16 %v941
    %v958 = vunpack.c.l.b16 %v942
    %v959 = vunpack.c.l.b16 %v943
    %v960 = vunpack.c.l.b16 %v944
    %v961 = vunpack.c.l.b16 %v945
    %v962 = vunpack.c.l.b16 %v946
    %v963 = vpack.c.b16 %v956, %v955
    %v964 = vpack.c.b16 %v958, %v957
    %v965 = vpack.c.b16 %v960, %v959
    %v966 = vpack.c.b16 %v962, %v961
    %v972 = vsel %vm43, %v936, 0
    %v975 = vsel %vm43, %v937, 0
    %977 = vmatpush.bf16.msra.mxu0 0
    %978 = vmatpush.bf16.msra.mxu0 0
    %979 = vmatpush.bf16.msra.mxu0 0
    %980 = vmatpush.bf16.msra.mxu0 0
    %981 = vmatpush.bf16.msra.mxu0 %v966
    %982 = vmatpush.bf16.msra.mxu0 %v965
    %983 = vmatpush.bf16.msra.mxu0 %v964
    %984 = vmatpush.bf16.msra.mxu0 %v963
    %985 = vmatmul.bf16.gmra.mxu0 %v972
    %v986 = vpop.f32.mrf.mxu0
    %v987 = vadd.f32 0.0, %v986
    %v988 = vpop.f32.mrf.mxu0
    %v989 = vadd.f32 0.0, %v988
    %990 = vmatmul.bf16.gmra.mxu0 %v975
    %v991 = vpop.f32.mrf.mxu0
    %v992 = vadd.f32 0.0, %v991
    %v993 = vpop.f32.mrf.mxu0
    %v994 = vadd.f32 0.0, %v993
    %995 = vdwg.mxu0
    %v996 = vadd.f32 %v928, %v987
    %v997 = vadd.f32 %v929, %v989
    %v998 = vadd.f32 %v930, %v992
    %v999 = vadd.f32 %v931, %v994
    %v1000 = vld [vmem:[#allocation2 + $0xf] sm:$0xff]
    %v1001 = vld [vmem:[#allocation2 + $0x17] sm:$0xff]
    %v1002 = vld [vmem:[#allocation2 + $0x2f] sm:$0xff]
    %v1003 = vld [vmem:[#allocation2 + $0x37] sm:$0xff]
    %v1004 = vpack.c.bf16 %v1001, %v1000
    %v1005 = vpack.c.bf16 %v1003, %v1002
    %s1006 = scalar_lea.vmem %s2, 448
    %v1007 = vld [vmem:[%s1006] sm:$0xf]
    %v1008 = vld [vmem:[%s1006 + $0x4] sm:$0xf]
    %v1009 = vld [vmem:[%s1006 + $0x8] sm:$0xf]
    %v1010 = vld [vmem:[%s1006 + $0xc] sm:$0xf]
    %v1011 = vld [vmem:[%s1006 + $0x10] sm:$0xf]
    %v1012 = vld [vmem:[%s1006 + $0x14] sm:$0xf]
    %v1013 = vld [vmem:[%s1006 + $0x18] sm:$0xf]
    %v1014 = vld [vmem:[%s1006 + $0x1c] sm:$0xf]
    %v1023 = vunpack.c.l.b16 %v1007
    %v1024 = vunpack.c.l.b16 %v1008
    %v1025 = vunpack.c.l.b16 %v1009
    %v1026 = vunpack.c.l.b16 %v1010
    %v1027 = vunpack.c.l.b16 %v1011
    %v1028 = vunpack.c.l.b16 %v1012
    %v1029 = vunpack.c.l.b16 %v1013
    %v1030 = vunpack.c.l.b16 %v1014
    %v1031 = vpack.c.b16 %v1024, %v1023
    %v1032 = vpack.c.b16 %v1026, %v1025
    %v1033 = vpack.c.b16 %v1028, %v1027
    %v1034 = vpack.c.b16 %v1030, %v1029
    %v1040 = vsel %vm43, %v1004, 0
    %v1043 = vsel %vm43, %v1005, 0
    %1045 = vmatpush.bf16.msra.mxu0 0
    %1046 = vmatpush.bf16.msra.mxu0 0
    %1047 = vmatpush.bf16.msra.mxu0 0
    %1048 = vmatpush.bf16.msra.mxu0 0
    %1049 = vmatpush.bf16.msra.mxu0 %v1034
    %1050 = vmatpush.bf16.msra.mxu0 %v1033
    %1051 = vmatpush.bf16.msra.mxu0 %v1032
    %1052 = vmatpush.bf16.msra.mxu0 %v1031
    %1053 = vmatmul.bf16.gmra.mxu0 %v1040
    %v1054 = vpop.f32.mrf.mxu0
    %v1055 = vadd.f32 0.0, %v1054
    %v1056 = vpop.f32.mrf.mxu0
    %v1057 = vadd.f32 0.0, %v1056
    %1058 = vmatmul.bf16.gmra.mxu0 %v1043
    %v1059 = vpop.f32.mrf.mxu0
    %v1060 = vadd.f32 0.0, %v1059
    %v1061 = vpop.f32.mrf.mxu0
    %v1062 = vadd.f32 0.0, %v1061
    %1063 = vdwg.mxu0
    %v1064 = vadd.f32 %v996, %v1055
    %v1065 = vadd.f32 %v997, %v1057
    %v1066 = vadd.f32 %v998, %v1060
    %v1067 = vadd.f32 %v999, %v1062
    %v1069 = vperm.slane %v56, 0
    %v1071 = vadd.f32 %v1064, %v1069
    %v1072 = vadd.f32 %v1065, %v1069
    %v1073 = vadd.f32 %v1066, %v1069
    %v1074 = vadd.f32 %v1067, %v1069
    %vm1075 = vcmp.ge.f32.partialorder %v1071, 0.0
    %vm1076 = vcmp.ge.f32.partialorder %v1072, 0.0
    %vm1077 = vcmp.ge.f32.partialorder %v1073, 0.0
    %vm1078 = vcmp.ge.f32.partialorder %v1074, 0.0
    %v1079 = vld [vmem:[%s7] sm:$0x1]
    %v1080 = vperm.slane %v1079, 0
    %v1081 = vmul.f32 %v1071, %v1080
    %v1082 = vmul.f32 %v1072, %v1080
    %v1083 = vmul.f32 %v1073, %v1080
    %v1084 = vmul.f32 %v1074, %v1080
    %v1085 = vsel %vm1075, %v1071, %v1081
    %v1086 = vsel %vm1076, %v1072, %v1082
    %v1087 = vsel %vm1077, %v1073, %v1083
    %v1088 = vsel %vm1078, %v1074, %v1084
    %1089 = vst.msk [vmem:[#allocation2 + $0x8] sm:$0xff] %vm43, %v1085
    %1090 = vst.msk [vmem:[#allocation2 + $0x10] sm:$0xff] %vm43, %v1086
    %1091 = vst.msk [vmem:[#allocation2 + $0x28] sm:$0xff] %vm43, %v1087
    %1092 = vst.msk [vmem:[#allocation2 + $0x30] sm:$0xff] %vm43, %v1088
    %v1093 = vld [vmem:[%s5] sm:$0x1]
    %v1094 = vld [vmem:[#allocation2 + $0x1] sm:$0xff]
    %v1095 = vld [vmem:[#allocation2 + $0x9] sm:$0xff]
    %v1096 = vld [vmem:[#allocation2 + $0x21] sm:$0xff]
    %v1097 = vld [vmem:[#allocation2 + $0x29] sm:$0xff]
    %v1098 = vpack.c.bf16 %v1095, %v1094
    %v1099 = vpack.c.bf16 %v1097, %v1096
    %v1100 = vld [vmem:[%s4] sm:$0xf]
    %v1101 = vld [vmem:[%s4 + $0x4] sm:$0xf]
    %v1102 = vld [vmem:[%s4 + $0x8] sm:$0xf]
    %v1103 = vld [vmem:[%s4 + $0xc] sm:$0xf]
    %v1104 = vld [vmem:[%s4 + $0x10] sm:$0xf]
    %v1105 = vld [vmem:[%s4 + $0x14] sm:$0xf]
    %v1106 = vld [vmem:[%s4 + $0x18] sm:$0xf]
    %v1107 = vld [vmem:[%s4 + $0x1c] sm:$0xf]
    %v1108 = vld [vmem:[#allocation2 + $0x2] sm:$0xff]
    %v1109 = vld [vmem:[#allocation2 + $0xa] sm:$0xff]
    %v1110 = vld [vmem:[#allocation2 + $0x22] sm:$0xff]
    %v1111 = vld [vmem:[#allocation2 + $0x2a] sm:$0xff]
    %v1112 = vpack.c.bf16 %v1109, %v1108
    %v1113 = vpack.c.bf16 %v1111, %v1110
    %s1114 = scalar_lea.vmem %s4, 32
    %v1115 = vld [vmem:[%s1114] sm:$0xf]
    %v1116 = vld [vmem:[%s1114 + $0x4] sm:$0xf]
    %v1117 = vld [vmem:[%s1114 + $0x8] sm:$0xf]
    %v1118 = vld [vmem:[%s1114 + $0xc] sm:$0xf]
    %v1119 = vld [vmem:[%s1114 + $0x10] sm:$0xf]
    %v1120 = vld [vmem:[%s1114 + $0x14] sm:$0xf]
    %v1121 = vld [vmem:[%s1114 + $0x18] sm:$0xf]
    %v1122 = vld [vmem:[%s1114 + $0x1c] sm:$0xf]
    %v1131 = vunpack.c.l.b16 %v1115
    %v1132 = vunpack.c.l.b16 %v1116
    %v1133 = vunpack.c.l.b16 %v1117
    %v1134 = vunpack.c.l.b16 %v1118
    %v1135 = vunpack.c.l.b16 %v1119
    %v1136 = vunpack.c.l.b16 %v1120
    %v1137 = vunpack.c.l.b16 %v1121
    %v1138 = vunpack.c.l.b16 %v1122
    %v1139 = vpack.c.b16 %v1132, %v1131
    %v1140 = vpack.c.b16 %v1134, %v1133
    %v1141 = vpack.c.b16 %v1136, %v1135
    %v1142 = vpack.c.b16 %v1138, %v1137
    %v1148 = vsel %vm43, %v1112, 0
    %v1151 = vsel %vm43, %v1113, 0
    %1153 = vmatpush.bf16.msra.mxu0 0
    %1154 = vmatpush.bf16.msra.mxu0 0
    %1155 = vmatpush.bf16.msra.mxu0 0
    %1156 = vmatpush.bf16.msra.mxu0 0
    %1157 = vmatpush.bf16.msra.mxu0 %v1142
    %1158 = vmatpush.bf16.msra.mxu0 %v1141
    %1159 = vmatpush.bf16.msra.mxu0 %v1140
    %1160 = vmatpush.bf16.msra.mxu0 %v1139
    %1161 = vmatmul.bf16.gmra.mxu0 %v1148
    %v1162 = vpop.f32.mrf.mxu0
    %v1163 = vadd.f32 0.0, %v1162
    %v1164 = vpop.f32.mrf.mxu0
    %v1165 = vadd.f32 0.0, %v1164
    %1166 = vmatmul.bf16.gmra.mxu0 %v1151
    %v1167 = vpop.f32.mrf.mxu0
    %v1168 = vadd.f32 0.0, %v1167
    %v1169 = vpop.f32.mrf.mxu0
    %v1170 = vadd.f32 0.0, %v1169
    %1171 = vdwg.mxu0
    %v1180 = vunpack.c.l.b16 %v1100
    %v1181 = vunpack.c.l.b16 %v1101
    %v1182 = vunpack.c.l.b16 %v1102
    %v1183 = vunpack.c.l.b16 %v1103
    %v1184 = vunpack.c.l.b16 %v1104
    %v1185 = vunpack.c.l.b16 %v1105
    %v1186 = vunpack.c.l.b16 %v1106
    %v1187 = vunpack.c.l.b16 %v1107
    %v1188 = vpack.c.b16 %v1181, %v1180
    %v1189 = vpack.c.b16 %v1183, %v1182
    %v1190 = vpack.c.b16 %v1185, %v1184
    %v1191 = vpack.c.b16 %v1187, %v1186
    %v1197 = vsel %vm43, %v1098, 0
    %v1200 = vsel %vm43, %v1099, 0
    %1202 = vmatpush.bf16.msra.mxu0 0
    %1203 = vmatpush.bf16.msra.mxu0 0
    %1204 = vmatpush.bf16.msra.mxu0 0
    %1205 = vmatpush.bf16.msra.mxu0 0
    %1206 = vmatpush.bf16.msra.mxu0 %v1191
    %1207 = vmatpush.bf16.msra.mxu0 %v1190
    %1208 = vmatpush.bf16.msra.mxu0 %v1189
    %1209 = vmatpush.bf16.msra.mxu0 %v1188
    %1210 = vmatmul.bf16.gmra.mxu0 %v1197
    %v1211 = vpop.f32.mrf.mxu0
    %v1212 = vadd.f32 %v1163, %v1211
    %v1213 = vpop.f32.mrf.mxu0
    %v1214 = vadd.f32 %v1165, %v1213
    %1215 = vmatmul.bf16.gmra.mxu0 %v1200
    %v1216 = vpop.f32.mrf.mxu0
    %v1217 = vadd.f32 %v1168, %v1216
    %v1218 = vpop.f32.mrf.mxu0
    %v1219 = vadd.f32 %v1170, %v1218
    %1220 = vdwg.mxu0
    %v1221 = vld [vmem:[#allocation2 + $0x3] sm:$0xff]
    %v1222 = vld [vmem:[#allocation2 + $0xb] sm:$0xff]
    %v1223 = vld [vmem:[#allocation2 + $0x23] sm:$0xff]
    %v1224 = vld [vmem:[#allocation2 + $0x2b] sm:$0xff]
    %v1225 = vpack.c.bf16 %v1222, %v1221
    %v1226 = vpack.c.bf16 %v1224, %v1223
    %s1227 = scalar_lea.vmem %s4, 64
    %v1228 = vld [vmem:[%s1227] sm:$0xf]
    %v1229 = vld [vmem:[%s1227 + $0x4] sm:$0xf]
    %v1230 = vld [vmem:[%s1227 + $0x8] sm:$0xf]
    %v1231 = vld [vmem:[%s1227 + $0xc] sm:$0xf]
    %v1232 = vld [vmem:[%s1227 + $0x10] sm:$0xf]
    %v1233 = vld [vmem:[%s1227 + $0x14] sm:$0xf]
    %v1234 = vld [vmem:[%s1227 + $0x18] sm:$0xf]
    %v1235 = vld [vmem:[%s1227 + $0x1c] sm:$0xf]
    %v1244 = vunpack.c.l.b16 %v1228
    %v1245 = vunpack.c.l.b16 %v1229
    %v1246 = vunpack.c.l.b16 %v1230
    %v1247 = vunpack.c.l.b16 %v1231
    %v1248 = vunpack.c.l.b16 %v1232
    %v1249 = vunpack.c.l.b16 %v1233
    %v1250 = vunpack.c.l.b16 %v1234
    %v1251 = vunpack.c.l.b16 %v1235
    %v1252 = vpack.c.b16 %v1245, %v1244
    %v1253 = vpack.c.b16 %v1247, %v1246
    %v1254 = vpack.c.b16 %v1249, %v1248
    %v1255 = vpack.c.b16 %v1251, %v1250
    %v1261 = vsel %vm43, %v1225, 0
    %v1264 = vsel %vm43, %v1226, 0
    %1266 = vmatpush.bf16.msra.mxu0 0
    %1267 = vmatpush.bf16.msra.mxu0 0
    %1268 = vmatpush.bf16.msra.mxu0 0
    %1269 = vmatpush.bf16.msra.mxu0 0
    %1270 = vmatpush.bf16.msra.mxu0 %v1255
    %1271 = vmatpush.bf16.msra.mxu0 %v1254
    %1272 = vmatpush.bf16.msra.mxu0 %v1253
    %1273 = vmatpush.bf16.msra.mxu0 %v1252
    %1274 = vmatmul.bf16.gmra.mxu0 %v1261
    %v1275 = vpop.f32.mrf.mxu0
    %v1276 = vadd.f32 0.0, %v1275
    %v1277 = vpop.f32.mrf.mxu0
    %v1278 = vadd.f32 0.0, %v1277
    %1279 = vmatmul.bf16.gmra.mxu0 %v1264
    %v1280 = vpop.f32.mrf.mxu0
    %v1281 = vadd.f32 0.0, %v1280
    %v1282 = vpop.f32.mrf.mxu0
    %v1283 = vadd.f32 0.0, %v1282
    %1284 = vdwg.mxu0
    %v1285 = vadd.f32 %v1212, %v1276
    %v1286 = vadd.f32 %v1214, %v1278
    %v1287 = vadd.f32 %v1217, %v1281
    %v1288 = vadd.f32 %v1219, %v1283
    %v1289 = vld [vmem:[#allocation2 + $0x4] sm:$0xff]
    %v1290 = vld [vmem:[#allocation2 + $0xc] sm:$0xff]
    %v1291 = vld [vmem:[#allocation2 + $0x24] sm:$0xff]
    %v1292 = vld [vmem:[#allocation2 + $0x2c] sm:$0xff]
    %v1293 = vpack.c.bf16 %v1290, %v1289
    %v1294 = vpack.c.bf16 %v1292, %v1291
    %s1295 = scalar_lea.vmem %s4, 96
    %v1296 = vld [vmem:[%s1295] sm:$0xf]
    %v1297 = vld [vmem:[%s1295 + $0x4] sm:$0xf]
    %v1298 = vld [vmem:[%s1295 + $0x8] sm:$0xf]
    %v1299 = vld [vmem:[%s1295 + $0xc] sm:$0xf]
    %v1300 = vld [vmem:[%s1295 + $0x10] sm:$0xf]
    %v1301 = vld [vmem:[%s1295 + $0x14] sm:$0xf]
    %v1302 = vld [vmem:[%s1295 + $0x18] sm:$0xf]
    %v1303 = vld [vmem:[%s1295 + $0x1c] sm:$0xf]
    %v1312 = vunpack.c.l.b16 %v1296
    %v1313 = vunpack.c.l.b16 %v1297
    %v1314 = vunpack.c.l.b16 %v1298
    %v1315 = vunpack.c.l.b16 %v1299
    %v1316 = vunpack.c.l.b16 %v1300
    %v1317 = vunpack.c.l.b16 %v1301
    %v1318 = vunpack.c.l.b16 %v1302
    %v1319 = vunpack.c.l.b16 %v1303
    %v1320 = vpack.c.b16 %v1313, %v1312
    %v1321 = vpack.c.b16 %v1315, %v1314
    %v1322 = vpack.c.b16 %v1317, %v1316
    %v1323 = vpack.c.b16 %v1319, %v1318
    %v1329 = vsel %vm43, %v1293, 0
    %v1332 = vsel %vm43, %v1294, 0
    %1334 = vmatpush.bf16.msra.mxu0 0
    %1335 = vmatpush.bf16.msra.mxu0 0
    %1336 = vmatpush.bf16.msra.mxu0 0
    %1337 = vmatpush.bf16.msra.mxu0 0
    %1338 = vmatpush.bf16.msra.mxu0 %v1323
    %1339 = vmatpush.bf16.msra.mxu0 %v1322
    %1340 = vmatpush.bf16.msra.mxu0 %v1321
    %1341 = vmatpush.bf16.msra.mxu0 %v1320
    %1342 = vmatmul.bf16.gmra.mxu0 %v1329
    %v1343 = vpop.f32.mrf.mxu0
    %v1344 = vadd.f32 0.0, %v1343
    %v1345 = vpop.f32.mrf.mxu0
    %v1346 = vadd.f32 0.0, %v1345
    %1347 = vmatmul.bf16.gmra.mxu0 %v1332
    %v1348 = vpop.f32.mrf.mxu0
    %v1349 = vadd.f32 0.0, %v1348
    %v1350 = vpop.f32.mrf.mxu0
    %v1351 = vadd.f32 0.0, %v1350
    %1352 = vdwg.mxu0
    %v1353 = vadd.f32 %v1285, %v1344
    %v1354 = vadd.f32 %v1286, %v1346
    %v1355 = vadd.f32 %v1287, %v1349
    %v1356 = vadd.f32 %v1288, %v1351
    %v1357 = vld [vmem:[#allocation2 + $0x5] sm:$0xff]
    %v1358 = vld [vmem:[#allocation2 + $0xd] sm:$0xff]
    %v1359 = vld [vmem:[#allocation2 + $0x25] sm:$0xff]
    %v1360 = vld [vmem:[#allocation2 + $0x2d] sm:$0xff]
    %v1361 = vpack.c.bf16 %v1358, %v1357
    %v1362 = vpack.c.bf16 %v1360, %v1359
    %s1363 = scalar_lea.vmem %s4, 128
    %v1364 = vld [vmem:[%s1363] sm:$0xf]
    %v1365 = vld [vmem:[%s1363 + $0x4] sm:$0xf]
    %v1366 = vld [vmem:[%s1363 + $0x8] sm:$0xf]
    %v1367 = vld [vmem:[%s1363 + $0xc] sm:$0xf]
    %v1368 = vld [vmem:[%s1363 + $0x10] sm:$0xf]
    %v1369 = vld [vmem:[%s1363 + $0x14] sm:$0xf]
    %v1370 = vld [vmem:[%s1363 + $0x18] sm:$0xf]
    %v1371 = vld [vmem:[%s1363 + $0x1c] sm:$0xf]
    %v1380 = vunpack.c.l.b16 %v1364
    %v1381 = vunpack.c.l.b16 %v1365
    %v1382 = vunpack.c.l.b16 %v1366
    %v1383 = vunpack.c.l.b16 %v1367
    %v1384 = vunpack.c.l.b16 %v1368
    %v1385 = vunpack.c.l.b16 %v1369
    %v1386 = vunpack.c.l.b16 %v1370
    %v1387 = vunpack.c.l.b16 %v1371
    %v1388 = vpack.c.b16 %v1381, %v1380
    %v1389 = vpack.c.b16 %v1383, %v1382
    %v1390 = vpack.c.b16 %v1385, %v1384
    %v1391 = vpack.c.b16 %v1387, %v1386
    %v1397 = vsel %vm43, %v1361, 0
    %v1400 = vsel %vm43, %v1362, 0
    %1402 = vmatpush.bf16.msra.mxu0 0
    %1403 = vmatpush.bf16.msra.mxu0 0
    %1404 = vmatpush.bf16.msra.mxu0 0
    %1405 = vmatpush.bf16.msra.mxu0 0
    %1406 = vmatpush.bf16.msra.mxu0 %v1391
    %1407 = vmatpush.bf16.msra.mxu0 %v1390
    %1408 = vmatpush.bf16.msra.mxu0 %v1389
    %1409 = vmatpush.bf16.msra.mxu0 %v1388
    %1410 = vmatmul.bf16.gmra.mxu0 %v1397
    %v1411 = vpop.f32.mrf.mxu0
    %v1412 = vadd.f32 0.0, %v1411
    %v1413 = vpop.f32.mrf.mxu0
    %v1414 = vadd.f32 0.0, %v1413
    %1415 = vmatmul.bf16.gmra.mxu0 %v1400
    %v1416 = vpop.f32.mrf.mxu0
    %v1417 = vadd.f32 0.0, %v1416
    %v1418 = vpop.f32.mrf.mxu0
    %v1419 = vadd.f32 0.0, %v1418
    %1420 = vdwg.mxu0
    %v1421 = vadd.f32 %v1353, %v1412
    %v1422 = vadd.f32 %v1354, %v1414
    %v1423 = vadd.f32 %v1355, %v1417
    %v1424 = vadd.f32 %v1356, %v1419
    %v1425 = vld [vmem:[#allocation2 + $0x6] sm:$0xff]
    %v1426 = vld [vmem:[#allocation2 + $0xe] sm:$0xff]
    %v1427 = vld [vmem:[#allocation2 + $0x26] sm:$0xff]
    %v1428 = vld [vmem:[#allocation2 + $0x2e] sm:$0xff]
    %v1429 = vpack.c.bf16 %v1426, %v1425
    %v1430 = vpack.c.bf16 %v1428, %v1427
    %s1431 = scalar_lea.vmem %s4, 160
    %v1432 = vld [vmem:[%s1431] sm:$0xf]
    %v1433 = vld [vmem:[%s1431 + $0x4] sm:$0xf]
    %v1434 = vld [vmem:[%s1431 + $0x8] sm:$0xf]
    %v1435 = vld [vmem:[%s1431 + $0xc] sm:$0xf]
    %v1436 = vld [vmem:[%s1431 + $0x10] sm:$0xf]
    %v1437 = vld [vmem:[%s1431 + $0x14] sm:$0xf]
    %v1438 = vld [vmem:[%s1431 + $0x18] sm:$0xf]
    %v1439 = vld [vmem:[%s1431 + $0x1c] sm:$0xf]
    %v1448 = vunpack.c.l.b16 %v1432
    %v1449 = vunpack.c.l.b16 %v1433
    %v1450 = vunpack.c.l.b16 %v1434
    %v1451 = vunpack.c.l.b16 %v1435
    %v1452 = vunpack.c.l.b16 %v1436
    %v1453 = vunpack.c.l.b16 %v1437
    %v1454 = vunpack.c.l.b16 %v1438
    %v1455 = vunpack.c.l.b16 %v1439
    %v1456 = vpack.c.b16 %v1449, %v1448
    %v1457 = vpack.c.b16 %v1451, %v1450
    %v1458 = vpack.c.b16 %v1453, %v1452
    %v1459 = vpack.c.b16 %v1455, %v1454
    %v1465 = vsel %vm43, %v1429, 0
    %v1468 = vsel %vm43, %v1430, 0
    %1470 = vmatpush.bf16.msra.mxu0 0
    %1471 = vmatpush.bf16.msra.mxu0 0
    %1472 = vmatpush.bf16.msra.mxu0 0
    %1473 = vmatpush.bf16.msra.mxu0 0
    %1474 = vmatpush.bf16.msra.mxu0 %v1459
    %1475 = vmatpush.bf16.msra.mxu0 %v1458
    %1476 = vmatpush.bf16.msra.mxu0 %v1457
    %1477 = vmatpush.bf16.msra.mxu0 %v1456
    %1478 = vmatmul.bf16.gmra.mxu0 %v1465
    %v1479 = vpop.f32.mrf.mxu0
    %v1480 = vadd.f32 0.0, %v1479
    %v1481 = vpop.f32.mrf.mxu0
    %v1482 = vadd.f32 0.0, %v1481
    %1483 = vmatmul.bf16.gmra.mxu0 %v1468
    %v1484 = vpop.f32.mrf.mxu0
    %v1485 = vadd.f32 0.0, %v1484
    %v1486 = vpop.f32.mrf.mxu0
    %v1487 = vadd.f32 0.0, %v1486
    %1488 = vdwg.mxu0
    %v1489 = vadd.f32 %v1421, %v1480
    %v1490 = vadd.f32 %v1422, %v1482
    %v1491 = vadd.f32 %v1423, %v1485
    %v1492 = vadd.f32 %v1424, %v1487
    %v1493 = vld [vmem:[#allocation2 + $0x7] sm:$0xff]
    %v1494 = vld [vmem:[#allocation2 + $0xf] sm:$0xff]
    %v1495 = vld [vmem:[#allocation2 + $0x27] sm:$0xff]
    %v1496 = vld [vmem:[#allocation2 + $0x2f] sm:$0xff]
    %v1497 = vpack.c.bf16 %v1494, %v1493
    %v1498 = vpack.c.bf16 %v1496, %v1495
    %s1499 = scalar_lea.vmem %s4, 192
    %v1500 = vld [vmem:[%s1499] sm:$0xf]
    %v1501 = vld [vmem:[%s1499 + $0x4] sm:$0xf]
    %v1502 = vld [vmem:[%s1499 + $0x8] sm:$0xf]
    %v1503 = vld [vmem:[%s1499 + $0xc] sm:$0xf]
    %v1504 = vld [vmem:[%s1499 + $0x10] sm:$0xf]
    %v1505 = vld [vmem:[%s1499 + $0x14] sm:$0xf]
    %v1506 = vld [vmem:[%s1499 + $0x18] sm:$0xf]
    %v1507 = vld [vmem:[%s1499 + $0x1c] sm:$0xf]
    %v1516 = vunpack.c.l.b16 %v1500
    %v1517 = vunpack.c.l.b16 %v1501
    %v1518 = vunpack.c.l.b16 %v1502
    %v1519 = vunpack.c.l.b16 %v1503
    %v1520 = vunpack.c.l.b16 %v1504
    %v1521 = vunpack.c.l.b16 %v1505
    %v1522 = vunpack.c.l.b16 %v1506
    %v1523 = vunpack.c.l.b16 %v1507
    %v1524 = vpack.c.b16 %v1517, %v1516
    %v1525 = vpack.c.b16 %v1519, %v1518
    %v1526 = vpack.c.b16 %v1521, %v1520
    %v1527 = vpack.c.b16 %v1523, %v1522
    %v1533 = vsel %vm43, %v1497, 0
    %v1536 = vsel %vm43, %v1498, 0
    %1538 = vmatpush.bf16.msra.mxu0 0
    %1539 = vmatpush.bf16.msra.mxu0 0
    %1540 = vmatpush.bf16.msra.mxu0 0
    %1541 = vmatpush.bf16.msra.mxu0 0
    %1542 = vmatpush.bf16.msra.mxu0 %v1527
    %1543 = vmatpush.bf16.msra.mxu0 %v1526
    %1544 = vmatpush.bf16.msra.mxu0 %v1525
    %1545 = vmatpush.bf16.msra.mxu0 %v1524
    %1546 = vmatmul.bf16.gmra.mxu0 %v1533
    %v1547 = vpop.f32.mrf.mxu0
    %v1548 = vadd.f32 0.0, %v1547
    %v1549 = vpop.f32.mrf.mxu0
    %v1550 = vadd.f32 0.0, %v1549
    %1551 = vmatmul.bf16.gmra.mxu0 %v1536
    %v1552 = vpop.f32.mrf.mxu0
    %v1553 = vadd.f32 0.0, %v1552
    %v1554 = vpop.f32.mrf.mxu0
    %v1555 = vadd.f32 0.0, %v1554
    %1556 = vdwg.mxu0
    %v1557 = vadd.f32 %v1489, %v1548
    %v1558 = vadd.f32 %v1490, %v1550
    %v1559 = vadd.f32 %v1491, %v1553
    %v1560 = vadd.f32 %v1492, %v1555
    %v1561 = vld [vmem:[#allocation2 + $0x8] sm:$0xff]
    %v1562 = vld [vmem:[#allocation2 + $0x10] sm:$0xff]
    %v1563 = vld [vmem:[#allocation2 + $0x28] sm:$0xff]
    %v1564 = vld [vmem:[#allocation2 + $0x30] sm:$0xff]
    %v1565 = vpack.c.bf16 %v1562, %v1561
    %v1566 = vpack.c.bf16 %v1564, %v1563
    %s1567 = scalar_lea.vmem %s4, 224
    %v1568 = vld [vmem:[%s1567] sm:$0xf]
    %v1569 = vld [vmem:[%s1567 + $0x4] sm:$0xf]
    %v1570 = vld [vmem:[%s1567 + $0x8] sm:$0xf]
    %v1571 = vld [vmem:[%s1567 + $0xc] sm:$0xf]
    %v1572 = vld [vmem:[%s1567 + $0x10] sm:$0xf]
    %v1573 = vld [vmem:[%s1567 + $0x14] sm:$0xf]
    %v1574 = vld [vmem:[%s1567 + $0x18] sm:$0xf]
    %v1575 = vld [vmem:[%s1567 + $0x1c] sm:$0xf]
    %v1584 = vunpack.c.l.b16 %v1568
    %v1585 = vunpack.c.l.b16 %v1569
    %v1586 = vunpack.c.l.b16 %v1570
    %v1587 = vunpack.c.l.b16 %v1571
    %v1588 = vunpack.c.l.b16 %v1572
    %v1589 = vunpack.c.l.b16 %v1573
    %v1590 = vunpack.c.l.b16 %v1574
    %v1591 = vunpack.c.l.b16 %v1575
    %v1592 = vpack.c.b16 %v1585, %v1584
    %v1593 = vpack.c.b16 %v1587, %v1586
    %v1594 = vpack.c.b16 %v1589, %v1588
    %v1595 = vpack.c.b16 %v1591, %v1590
    %v1601 = vsel %vm43, %v1565, 0
    %v1604 = vsel %vm43, %v1566, 0
    %1606 = vmatpush.bf16.msra.mxu0 0
    %1607 = vmatpush.bf16.msra.mxu0 0
    %1608 = vmatpush.bf16.msra.mxu0 0
    %1609 = vmatpush.bf16.msra.mxu0 0
    %1610 = vmatpush.bf16.msra.mxu0 %v1595
    %1611 = vmatpush.bf16.msra.mxu0 %v1594
    %1612 = vmatpush.bf16.msra.mxu0 %v1593
    %1613 = vmatpush.bf16.msra.mxu0 %v1592
    %1614 = vmatmul.bf16.gmra.mxu0 %v1601
    %v1615 = vpop.f32.mrf.mxu0
    %v1616 = vadd.f32 0.0, %v1615
    %v1617 = vpop.f32.mrf.mxu0
    %v1618 = vadd.f32 0.0, %v1617
    %1619 = vmatmul.bf16.gmra.mxu0 %v1604
    %v1620 = vpop.f32.mrf.mxu0
    %v1621 = vadd.f32 0.0, %v1620
    %v1622 = vpop.f32.mrf.mxu0
    %v1623 = vadd.f32 0.0, %v1622
    %1624 = vdwg.mxu0
    %v1625 = vadd.f32 %v1557, %v1616
    %v1626 = vadd.f32 %v1558, %v1618
    %v1627 = vadd.f32 %v1559, %v1621
    %v1628 = vadd.f32 %v1560, %v1623
    %v1629 = vld [vmem:[#allocation2 + $0x9] sm:$0xff]
    %v1630 = vld [vmem:[#allocation2 + $0x11] sm:$0xff]
    %v1631 = vld [vmem:[#allocation2 + $0x29] sm:$0xff]
    %v1632 = vld [vmem:[#allocation2 + $0x31] sm:$0xff]
    %v1633 = vpack.c.bf16 %v1630, %v1629
    %v1634 = vpack.c.bf16 %v1632, %v1631
    %s1635 = scalar_lea.vmem %s4, 256
    %v1636 = vld [vmem:[%s1635] sm:$0xf]
    %v1637 = vld [vmem:[%s1635 + $0x4] sm:$0xf]
    %v1638 = vld [vmem:[%s1635 + $0x8] sm:$0xf]
    %v1639 = vld [vmem:[%s1635 + $0xc] sm:$0xf]
    %v1640 = vld [vmem:[%s1635 + $0x10] sm:$0xf]
    %v1641 = vld [vmem:[%s1635 + $0x14] sm:$0xf]
    %v1642 = vld [vmem:[%s1635 + $0x18] sm:$0xf]
    %v1643 = vld [vmem:[%s1635 + $0x1c] sm:$0xf]
    %v1652 = vunpack.c.l.b16 %v1636
    %v1653 = vunpack.c.l.b16 %v1637
    %v1654 = vunpack.c.l.b16 %v1638
    %v1655 = vunpack.c.l.b16 %v1639
    %v1656 = vunpack.c.l.b16 %v1640
    %v1657 = vunpack.c.l.b16 %v1641
    %v1658 = vunpack.c.l.b16 %v1642
    %v1659 = vunpack.c.l.b16 %v1643
    %v1660 = vpack.c.b16 %v1653, %v1652
    %v1661 = vpack.c.b16 %v1655, %v1654
    %v1662 = vpack.c.b16 %v1657, %v1656
    %v1663 = vpack.c.b16 %v1659, %v1658
    %v1669 = vsel %vm43, %v1633, 0
    %v1672 = vsel %vm43, %v1634, 0
    %1674 = vmatpush.bf16.msra.mxu0 0
    %1675 = vmatpush.bf16.msra.mxu0 0
    %1676 = vmatpush.bf16.msra.mxu0 0
    %1677 = vmatpush.bf16.msra.mxu0 0
    %1678 = vmatpush.bf16.msra.mxu0 %v1663
    %1679 = vmatpush.bf16.msra.mxu0 %v1662
    %1680 = vmatpush.bf16.msra.mxu0 %v1661
    %1681 = vmatpush.bf16.msra.mxu0 %v1660
    %1682 = vmatmul.bf16.gmra.mxu0 %v1669
    %v1683 = vpop.f32.mrf.mxu0
    %v1684 = vadd.f32 0.0, %v1683
    %v1685 = vpop.f32.mrf.mxu0
    %v1686 = vadd.f32 0.0, %v1685
    %1687 = vmatmul.bf16.gmra.mxu0 %v1672
    %v1688 = vpop.f32.mrf.mxu0
    %v1689 = vadd.f32 0.0, %v1688
    %v1690 = vpop.f32.mrf.mxu0
    %v1691 = vadd.f32 0.0, %v1690
    %1692 = vdwg.mxu0
    %v1693 = vadd.f32 %v1625, %v1684
    %v1694 = vadd.f32 %v1626, %v1686
    %v1695 = vadd.f32 %v1627, %v1689
    %v1696 = vadd.f32 %v1628, %v1691
    %v1697 = vld [vmem:[#allocation2 + $0xa] sm:$0xff]
    %v1698 = vld [vmem:[#allocation2 + $0x12] sm:$0xff]
    %v1699 = vld [vmem:[#allocation2 + $0x2a] sm:$0xff]
    %v1700 = vld [vmem:[#allocation2 + $0x32] sm:$0xff]
    %v1701 = vpack.c.bf16 %v1698, %v1697
    %v1702 = vpack.c.bf16 %v1700, %v1699
    %s1703 = scalar_lea.vmem %s4, 288
    %v1704 = vld [vmem:[%s1703] sm:$0xf]
    %v1705 = vld [vmem:[%s1703 + $0x4] sm:$0xf]
    %v1706 = vld [vmem:[%s1703 + $0x8] sm:$0xf]
    %v1707 = vld [vmem:[%s1703 + $0xc] sm:$0xf]
    %v1708 = vld [vmem:[%s1703 + $0x10] sm:$0xf]
    %v1709 = vld [vmem:[%s1703 + $0x14] sm:$0xf]
    %v1710 = vld [vmem:[%s1703 + $0x18] sm:$0xf]
    %v1711 = vld [vmem:[%s1703 + $0x1c] sm:$0xf]
    %v1720 = vunpack.c.l.b16 %v1704
    %v1721 = vunpack.c.l.b16 %v1705
    %v1722 = vunpack.c.l.b16 %v1706
    %v1723 = vunpack.c.l.b16 %v1707
    %v1724 = vunpack.c.l.b16 %v1708
    %v1725 = vunpack.c.l.b16 %v1709
    %v1726 = vunpack.c.l.b16 %v1710
    %v1727 = vunpack.c.l.b16 %v1711
    %v1728 = vpack.c.b16 %v1721, %v1720
    %v1729 = vpack.c.b16 %v1723, %v1722
    %v1730 = vpack.c.b16 %v1725, %v1724
    %v1731 = vpack.c.b16 %v1727, %v1726
    %v1737 = vsel %vm43, %v1701, 0
    %v1740 = vsel %vm43, %v1702, 0
    %1742 = vmatpush.bf16.msra.mxu0 0
    %1743 = vmatpush.bf16.msra.mxu0 0
    %1744 = vmatpush.bf16.msra.mxu0 0
    %1745 = vmatpush.bf16.msra.mxu0 0
    %1746 = vmatpush.bf16.msra.mxu0 %v1731
    %1747 = vmatpush.bf16.msra.mxu0 %v1730
    %1748 = vmatpush.bf16.msra.mxu0 %v1729
    %1749 = vmatpush.bf16.msra.mxu0 %v1728
    %1750 = vmatmul.bf16.gmra.mxu0 %v1737
    %v1751 = vpop.f32.mrf.mxu0
    %v1752 = vadd.f32 0.0, %v1751
    %v1753 = vpop.f32.mrf.mxu0
    %v1754 = vadd.f32 0.0, %v1753
    %1755 = vmatmul.bf16.gmra.mxu0 %v1740
    %v1756 = vpop.f32.mrf.mxu0
    %v1757 = vadd.f32 0.0, %v1756
    %v1758 = vpop.f32.mrf.mxu0
    %v1759 = vadd.f32 0.0, %v1758
    %1760 = vdwg.mxu0
    %v1761 = vadd.f32 %v1693, %v1752
    %v1762 = vadd.f32 %v1694, %v1754
    %v1763 = vadd.f32 %v1695, %v1757
    %v1764 = vadd.f32 %v1696, %v1759
    %v1765 = vld [vmem:[#allocation2 + $0xb] sm:$0xff]
    %v1766 = vld [vmem:[#allocation2 + $0x13] sm:$0xff]
    %v1767 = vld [vmem:[#allocation2 + $0x2b] sm:$0xff]
    %v1768 = vld [vmem:[#allocation2 + $0x33] sm:$0xff]
    %v1769 = vpack.c.bf16 %v1766, %v1765
    %v1770 = vpack.c.bf16 %v1768, %v1767
    %s1771 = scalar_lea.vmem %s4, 320
    %v1772 = vld [vmem:[%s1771] sm:$0xf]
    %v1773 = vld [vmem:[%s1771 + $0x4] sm:$0xf]
    %v1774 = vld [vmem:[%s1771 + $0x8] sm:$0xf]
    %v1775 = vld [vmem:[%s1771 + $0xc] sm:$0xf]
    %v1776 = vld [vmem:[%s1771 + $0x10] sm:$0xf]
    %v1777 = vld [vmem:[%s1771 + $0x14] sm:$0xf]
    %v1778 = vld [vmem:[%s1771 + $0x18] sm:$0xf]
    %v1779 = vld [vmem:[%s1771 + $0x1c] sm:$0xf]
    %v1788 = vunpack.c.l.b16 %v1772
    %v1789 = vunpack.c.l.b16 %v1773
    %v1790 = vunpack.c.l.b16 %v1774
    %v1791 = vunpack.c.l.b16 %v1775
    %v1792 = vunpack.c.l.b16 %v1776
    %v1793 = vunpack.c.l.b16 %v1777
    %v1794 = vunpack.c.l.b16 %v1778
    %v1795 = vunpack.c.l.b16 %v1779
    %v1796 = vpack.c.b16 %v1789, %v1788
    %v1797 = vpack.c.b16 %v1791, %v1790
    %v1798 = vpack.c.b16 %v1793, %v1792
    %v1799 = vpack.c.b16 %v1795, %v1794
    %v1805 = vsel %vm43, %v1769, 0
    %v1808 = vsel %vm43, %v1770, 0
    %1810 = vmatpush.bf16.msra.mxu0 0
    %1811 = vmatpush.bf16.msra.mxu0 0
    %1812 = vmatpush.bf16.msra.mxu0 0
    %1813 = vmatpush.bf16.msra.mxu0 0
    %1814 = vmatpush.bf16.msra.mxu0 %v1799
    %1815 = vmatpush.bf16.msra.mxu0 %v1798
    %1816 = vmatpush.bf16.msra.mxu0 %v1797
    %1817 = vmatpush.bf16.msra.mxu0 %v1796
    %1818 = vmatmul.bf16.gmra.mxu0 %v1805
    %v1819 = vpop.f32.mrf.mxu0
    %v1820 = vadd.f32 0.0, %v1819
    %v1821 = vpop.f32.mrf.mxu0
    %v1822 = vadd.f32 0.0, %v1821
    %1823 = vmatmul.bf16.gmra.mxu0 %v1808
    %v1824 = vpop.f32.mrf.mxu0
    %v1825 = vadd.f32 0.0, %v1824
    %v1826 = vpop.f32.mrf.mxu0
    %v1827 = vadd.f32 0.0, %v1826
    %1828 = vdwg.mxu0
    %v1829 = vadd.f32 %v1761, %v1820
    %v1830 = vadd.f32 %v1762, %v1822
    %v1831 = vadd.f32 %v1763, %v1825
    %v1832 = vadd.f32 %v1764, %v1827
    %v1833 = vld [vmem:[#allocation2 + $0xc] sm:$0xff]
    %v1834 = vld [vmem:[#allocation2 + $0x14] sm:$0xff]
    %v1835 = vld [vmem:[#allocation2 + $0x2c] sm:$0xff]
    %v1836 = vld [vmem:[#allocation2 + $0x34] sm:$0xff]
    %v1837 = vpack.c.bf16 %v1834, %v1833
    %v1838 = vpack.c.bf16 %v1836, %v1835
    %s1839 = scalar_lea.vmem %s4, 352
    %v1840 = vld [vmem:[%s1839] sm:$0xf]
    %v1841 = vld [vmem:[%s1839 + $0x4] sm:$0xf]
    %v1842 = vld [vmem:[%s1839 + $0x8] sm:$0xf]
    %v1843 = vld [vmem:[%s1839 + $0xc] sm:$0xf]
    %v1844 = vld [vmem:[%s1839 + $0x10] sm:$0xf]
    %v1845 = vld [vmem:[%s1839 + $0x14] sm:$0xf]
    %v1846 = vld [vmem:[%s1839 + $0x18] sm:$0xf]
    %v1847 = vld [vmem:[%s1839 + $0x1c] sm:$0xf]
    %v1856 = vunpack.c.l.b16 %v1840
    %v1857 = vunpack.c.l.b16 %v1841
    %v1858 = vunpack.c.l.b16 %v1842
    %v1859 = vunpack.c.l.b16 %v1843
    %v1860 = vunpack.c.l.b16 %v1844
    %v1861 = vunpack.c.l.b16 %v1845
    %v1862 = vunpack.c.l.b16 %v1846
    %v1863 = vunpack.c.l.b16 %v1847
    %v1864 = vpack.c.b16 %v1857, %v1856
    %v1865 = vpack.c.b16 %v1859, %v1858
    %v1866 = vpack.c.b16 %v1861, %v1860
    %v1867 = vpack.c.b16 %v1863, %v1862
    %v1873 = vsel %vm43, %v1837, 0
    %v1876 = vsel %vm43, %v1838, 0
    %1878 = vmatpush.bf16.msra.mxu0 0
    %1879 = vmatpush.bf16.msra.mxu0 0
    %1880 = vmatpush.bf16.msra.mxu0 0
    %1881 = vmatpush.bf16.msra.mxu0 0
    %1882 = vmatpush.bf16.msra.mxu0 %v1867
    %1883 = vmatpush.bf16.msra.mxu0 %v1866
    %1884 = vmatpush.bf16.msra.mxu0 %v1865
    %1885 = vmatpush.bf16.msra.mxu0 %v1864
    %1886 = vmatmul.bf16.gmra.mxu0 %v1873
    %v1887 = vpop.f32.mrf.mxu0
    %v1888 = vadd.f32 0.0, %v1887
    %v1889 = vpop.f32.mrf.mxu0
    %v1890 = vadd.f32 0.0, %v1889
    %1891 = vmatmul.bf16.gmra.mxu0 %v1876
    %v1892 = vpop.f32.mrf.mxu0
    %v1893 = vadd.f32 0.0, %v1892
    %v1894 = vpop.f32.mrf.mxu0
    %v1895 = vadd.f32 0.0, %v1894
    %1896 = vdwg.mxu0
    %v1897 = vadd.f32 %v1829, %v1888
    %v1898 = vadd.f32 %v1830, %v1890
    %v1899 = vadd.f32 %v1831, %v1893
    %v1900 = vadd.f32 %v1832, %v1895
    %v1901 = vld [vmem:[#allocation2 + $0xd] sm:$0xff]
    %v1902 = vld [vmem:[#allocation2 + $0x15] sm:$0xff]
    %v1903 = vld [vmem:[#allocation2 + $0x2d] sm:$0xff]
    %v1904 = vld [vmem:[#allocation2 + $0x35] sm:$0xff]
    %v1905 = vpack.c.bf16 %v1902, %v1901
    %v1906 = vpack.c.bf16 %v1904, %v1903
    %s1907 = scalar_lea.vmem %s4, 384
    %v1908 = vld [vmem:[%s1907] sm:$0xf]
    %v1909 = vld [vmem:[%s1907 + $0x4] sm:$0xf]
    %v1910 = vld [vmem:[%s1907 + $0x8] sm:$0xf]
    %v1911 = vld [vmem:[%s1907 + $0xc] sm:$0xf]
    %v1912 = vld [vmem:[%s1907 + $0x10] sm:$0xf]
    %v1913 = vld [vmem:[%s1907 + $0x14] sm:$0xf]
    %v1914 = vld [vmem:[%s1907 + $0x18] sm:$0xf]
    %v1915 = vld [vmem:[%s1907 + $0x1c] sm:$0xf]
    %v1924 = vunpack.c.l.b16 %v1908
    %v1925 = vunpack.c.l.b16 %v1909
    %v1926 = vunpack.c.l.b16 %v1910
    %v1927 = vunpack.c.l.b16 %v1911
    %v1928 = vunpack.c.l.b16 %v1912
    %v1929 = vunpack.c.l.b16 %v1913
    %v1930 = vunpack.c.l.b16 %v1914
    %v1931 = vunpack.c.l.b16 %v1915
    %v1932 = vpack.c.b16 %v1925, %v1924
    %v1933 = vpack.c.b16 %v1927, %v1926
    %v1934 = vpack.c.b16 %v1929, %v1928
    %v1935 = vpack.c.b16 %v1931, %v1930
    %v1941 = vsel %vm43, %v1905, 0
    %v1944 = vsel %vm43, %v1906, 0
    %1946 = vmatpush.bf16.msra.mxu0 0
    %1947 = vmatpush.bf16.msra.mxu0 0
    %1948 = vmatpush.bf16.msra.mxu0 0
    %1949 = vmatpush.bf16.msra.mxu0 0
    %1950 = vmatpush.bf16.msra.mxu0 %v1935
    %1951 = vmatpush.bf16.msra.mxu0 %v1934
    %1952 = vmatpush.bf16.msra.mxu0 %v1933
    %1953 = vmatpush.bf16.msra.mxu0 %v1932
    %1954 = vmatmul.bf16.gmra.mxu0 %v1941
    %v1955 = vpop.f32.mrf.mxu0
    %v1956 = vadd.f32 0.0, %v1955
    %v1957 = vpop.f32.mrf.mxu0
    %v1958 = vadd.f32 0.0, %v1957
    %1959 = vmatmul.bf16.gmra.mxu0 %v1944
    %v1960 = vpop.f32.mrf.mxu0
    %v1961 = vadd.f32 0.0, %v1960
    %v1962 = vpop.f32.mrf.mxu0
    %v1963 = vadd.f32 0.0, %v1962
    %1964 = vdwg.mxu0
    %v1965 = vadd.f32 %v1897, %v1956
    %v1966 = vadd.f32 %v1898, %v1958
    %v1967 = vadd.f32 %v1899, %v1961
    %v1968 = vadd.f32 %v1900, %v1963
    %v1969 = vld [vmem:[#allocation2 + $0xe] sm:$0xff]
    %v1970 = vld [vmem:[#allocation2 + $0x16] sm:$0xff]
    %v1971 = vld [vmem:[#allocation2 + $0x2e] sm:$0xff]
    %v1972 = vld [vmem:[#allocation2 + $0x36] sm:$0xff]
    %v1973 = vpack.c.bf16 %v1970, %v1969
    %v1974 = vpack.c.bf16 %v1972, %v1971
    %s1975 = scalar_lea.vmem %s4, 416
    %v1976 = vld [vmem:[%s1975] sm:$0xf]
    %v1977 = vld [vmem:[%s1975 + $0x4] sm:$0xf]
    %v1978 = vld [vmem:[%s1975 + $0x8] sm:$0xf]
    %v1979 = vld [vmem:[%s1975 + $0xc] sm:$0xf]
    %v1980 = vld [vmem:[%s1975 + $0x10] sm:$0xf]
    %v1981 = vld [vmem:[%s1975 + $0x14] sm:$0xf]
    %v1982 = vld [vmem:[%s1975 + $0x18] sm:$0xf]
    %v1983 = vld [vmem:[%s1975 + $0x1c] sm:$0xf]
    %v1992 = vunpack.c.l.b16 %v1976
    %v1993 = vunpack.c.l.b16 %v1977
    %v1994 = vunpack.c.l.b16 %v1978
    %v1995 = vunpack.c.l.b16 %v1979
    %v1996 = vunpack.c.l.b16 %v1980
    %v1997 = vunpack.c.l.b16 %v1981
    %v1998 = vunpack.c.l.b16 %v1982
    %v1999 = vunpack.c.l.b16 %v1983
    %v2000 = vpack.c.b16 %v1993, %v1992
    %v2001 = vpack.c.b16 %v1995, %v1994
    %v2002 = vpack.c.b16 %v1997, %v1996
    %v2003 = vpack.c.b16 %v1999, %v1998
    %v2009 = vsel %vm43, %v1973, 0
    %v2012 = vsel %vm43, %v1974, 0
    %2014 = vmatpush.bf16.msra.mxu0 0
    %2015 = vmatpush.bf16.msra.mxu0 0
    %2016 = vmatpush.bf16.msra.mxu0 0
    %2017 = vmatpush.bf16.msra.mxu0 0
    %2018 = vmatpush.bf16.msra.mxu0 %v2003
    %2019 = vmatpush.bf16.msra.mxu0 %v2002
    %2020 = vmatpush.bf16.msra.mxu0 %v2001
    %2021 = vmatpush.bf16.msra.mxu0 %v2000
    %2022 = vmatmul.bf16.gmra.mxu0 %v2009
    %v2023 = vpop.f32.mrf.mxu0
    %v2024 = vadd.f32 0.0, %v2023
    %v2025 = vpop.f32.mrf.mxu0
    %v2026 = vadd.f32 0.0, %v2025
    %2027 = vmatmul.bf16.gmra.mxu0 %v2012
    %v2028 = vpop.f32.mrf.mxu0
    %v2029 = vadd.f32 0.0, %v2028
    %v2030 = vpop.f32.mrf.mxu0
    %v2031 = vadd.f32 0.0, %v2030
    %2032 = vdwg.mxu0
    %v2033 = vadd.f32 %v1965, %v2024
    %v2034 = vadd.f32 %v1966, %v2026
    %v2035 = vadd.f32 %v1967, %v2029
    %v2036 = vadd.f32 %v1968, %v2031
    %v2037 = vld [vmem:[#allocation2 + $0xf] sm:$0xff]
    %v2038 = vld [vmem:[#allocation2 + $0x17] sm:$0xff]
    %v2039 = vld [vmem:[#allocation2 + $0x2f] sm:$0xff]
    %v2040 = vld [vmem:[#allocation2 + $0x37] sm:$0xff]
    %v2041 = vpack.c.bf16 %v2038, %v2037
    %v2042 = vpack.c.bf16 %v2040, %v2039
    %s2043 = scalar_lea.vmem %s4, 448
    %v2044 = vld [vmem:[%s2043] sm:$0xf]
    %v2045 = vld [vmem:[%s2043 + $0x4] sm:$0xf]
    %v2046 = vld [vmem:[%s2043 + $0x8] sm:$0xf]
    %v2047 = vld [vmem:[%s2043 + $0xc] sm:$0xf]
    %v2048 = vld [vmem:[%s2043 + $0x10] sm:$0xf]
    %v2049 = vld [vmem:[%s2043 + $0x14] sm:$0xf]
    %v2050 = vld [vmem:[%s2043 + $0x18] sm:$0xf]
    %v2051 = vld [vmem:[%s2043 + $0x1c] sm:$0xf]
    %v2060 = vunpack.c.l.b16 %v2044
    %v2061 = vunpack.c.l.b16 %v2045
    %v2062 = vunpack.c.l.b16 %v2046
    %v2063 = vunpack.c.l.b16 %v2047
    %v2064 = vunpack.c.l.b16 %v2048
    %v2065 = vunpack.c.l.b16 %v2049
    %v2066 = vunpack.c.l.b16 %v2050
    %v2067 = vunpack.c.l.b16 %v2051
    %v2068 = vpack.c.b16 %v2061, %v2060
    %v2069 = vpack.c.b16 %v2063, %v2062
    %v2070 = vpack.c.b16 %v2065, %v2064
    %v2071 = vpack.c.b16 %v2067, %v2066
    %v2077 = vsel %vm43, %v2041, 0
    %v2080 = vsel %vm43, %v2042, 0
    %2082 = vmatpush.bf16.msra.mxu0 0
    %2083 = vmatpush.bf16.msra.mxu0 0
    %2084 = vmatpush.bf16.msra.mxu0 0
    %2085 = vmatpush.bf16.msra.mxu0 0
    %2086 = vmatpush.bf16.msra.mxu0 %v2071
    %2087 = vmatpush.bf16.msra.mxu0 %v2070
    %2088 = vmatpush.bf16.msra.mxu0 %v2069
    %2089 = vmatpush.bf16.msra.mxu0 %v2068
    %2090 = vmatmul.bf16.gmra.mxu0 %v2077
    %v2091 = vpop.f32.mrf.mxu0
    %v2092 = vadd.f32 0.0, %v2091
    %v2093 = vpop.f32.mrf.mxu0
    %v2094 = vadd.f32 0.0, %v2093
    %2095 = vmatmul.bf16.gmra.mxu0 %v2080
    %v2096 = vpop.f32.mrf.mxu0
    %v2097 = vadd.f32 0.0, %v2096
    %v2098 = vpop.f32.mrf.mxu0
    %v2099 = vadd.f32 0.0, %v2098
    %2100 = vdwg.mxu0
    %v2101 = vadd.f32 %v2033, %v2092
    %v2102 = vadd.f32 %v2034, %v2094
    %v2103 = vadd.f32 %v2035, %v2097
    %v2104 = vadd.f32 %v2036, %v2099
    %v2106 = vperm.slane %v1093, 0
    %v2108 = vadd.f32 %v2101, %v2106
    %v2109 = vadd.f32 %v2102, %v2106
    %v2110 = vadd.f32 %v2103, %v2106
    %v2111 = vadd.f32 %v2104, %v2106
    %vm2112 = vcmp.ge.f32.partialorder %v2108, 0.0
    %vm2113 = vcmp.ge.f32.partialorder %v2109, 0.0
    %vm2114 = vcmp.ge.f32.partialorder %v2110, 0.0
    %vm2115 = vcmp.ge.f32.partialorder %v2111, 0.0
    %v2116 = vld [vmem:[%s7 + $0x1] sm:$0x1]
    %v2117 = vperm.slane %v2116, 0
    %v2118 = vmul.f32 %v2108, %v2117
    %v2119 = vmul.f32 %v2109, %v2117
    %v2120 = vmul.f32 %v2110, %v2117
    %v2121 = vmul.f32 %v2111, %v2117
    %v2122 = vsel %vm2112, %v2108, %v2118
    %v2123 = vsel %vm2113, %v2109, %v2119
    %v2124 = vsel %vm2114, %v2110, %v2120
    %v2125 = vsel %vm2115, %v2111, %v2121
    %2126 = vst.msk [vmem:[#allocation2 + $0x8] sm:$0xff] %vm43, %v2122
    %2127 = vst.msk [vmem:[#allocation2 + $0x10] sm:$0xff] %vm43, %v2123
    %2128 = vst.msk [vmem:[#allocation2 + $0x28] sm:$0xff] %vm43, %v2124
    %2129 = vst.msk [vmem:[#allocation2 + $0x30] sm:$0xff] %vm43, %v2125
    %v2130 = vld [vmem:[#allocation2 + $0x1] sm:$0xff]
    %v2131 = vld [vmem:[#allocation2 + $0x9] sm:$0xff]
    %v2132 = vld [vmem:[#allocation2 + $0x21] sm:$0xff]
    %v2133 = vld [vmem:[#allocation2 + $0x29] sm:$0xff]
    %v2134 = vld [vmem:[%s6] sm:$0x1]
    %v2135 = vperm.slane %v2134, 0
    %v2136 = vmul.f32 %v2130, %v2135
    %v2137 = vmul.f32 %v2131, %v2135
    %v2138 = vmul.f32 %v2132, %v2135
    %v2139 = vmul.f32 %v2133, %v2135
    %v2140 = vadd.f32 %v2136, 0.0
    %v2141 = vadd.f32 %v2137, 0.0
    %v2142 = vadd.f32 %v2138, 0.0
    %v2143 = vadd.f32 %v2139, 0.0
    %v2144 = vld [vmem:[#allocation2 + $0x2] sm:$0xff]
    %v2145 = vld [vmem:[#allocation2 + $0xa] sm:$0xff]
    %v2146 = vld [vmem:[#allocation2 + $0x22] sm:$0xff]
    %v2147 = vld [vmem:[#allocation2 + $0x2a] sm:$0xff]
    %v2148 = vld [vmem:[%s6 + $0x1] sm:$0x1]
    %v2149 = vperm.slane %v2148, 0
    %v2150 = vmul.f32 %v2144, %v2149
    %v2151 = vmul.f32 %v2145, %v2149
    %v2152 = vmul.f32 %v2146, %v2149
    %v2153 = vmul.f32 %v2147, %v2149
    %v2154 = vadd.f32 %v2140, %v2150
    %v2155 = vadd.f32 %v2141, %v2151
    %v2156 = vadd.f32 %v2142, %v2152
    %v2157 = vadd.f32 %v2143, %v2153
    %v2158 = vld [vmem:[#allocation2 + $0x3] sm:$0xff]
    %v2159 = vld [vmem:[#allocation2 + $0xb] sm:$0xff]
    %v2160 = vld [vmem:[#allocation2 + $0x23] sm:$0xff]
    %v2161 = vld [vmem:[#allocation2 + $0x2b] sm:$0xff]
    %v2162 = vld [vmem:[%s6 + $0x2] sm:$0x1]
    %v2163 = vperm.slane %v2162, 0
    %v2164 = vmul.f32 %v2158, %v2163
    %v2165 = vmul.f32 %v2159, %v2163
    %v2166 = vmul.f32 %v2160, %v2163
    %v2167 = vmul.f32 %v2161, %v2163
    %v2168 = vadd.f32 %v2154, %v2164
    %v2169 = vadd.f32 %v2155, %v2165
    %v2170 = vadd.f32 %v2156, %v2166
    %v2171 = vadd.f32 %v2157, %v2167
    %v2172 = vld [vmem:[#allocation2 + $0x4] sm:$0xff]
    %v2173 = vld [vmem:[#allocation2 + $0xc] sm:$0xff]
    %v2174 = vld [vmem:[#allocation2 + $0x24] sm:$0xff]
    %v2175 = vld [vmem:[#allocation2 + $0x2c] sm:$0xff]
    %v2176 = vld [vmem:[%s6 + $0x3] sm:$0x1]
    %v2177 = vperm.slane %v2176, 0
    %v2178 = vmul.f32 %v2172, %v2177
    %v2179 = vmul.f32 %v2173, %v2177
    %v2180 = vmul.f32 %v2174, %v2177
    %v2181 = vmul.f32 %v2175, %v2177
    %v2182 = vadd.f32 %v2168, %v2178
    %v2183 = vadd.f32 %v2169, %v2179
    %v2184 = vadd.f32 %v2170, %v2180
    %v2185 = vadd.f32 %v2171, %v2181
    %v2186 = vld [vmem:[#allocation2 + $0x5] sm:$0xff]
    %v2187 = vld [vmem:[#allocation2 + $0xd] sm:$0xff]
    %v2188 = vld [vmem:[#allocation2 + $0x25] sm:$0xff]
    %v2189 = vld [vmem:[#allocation2 + $0x2d] sm:$0xff]
    %v2190 = vld [vmem:[%s6 + $0x4] sm:$0x1]
    %v2191 = vperm.slane %v2190, 0
    %v2192 = vmul.f32 %v2186, %v2191
    %v2193 = vmul.f32 %v2187, %v2191
    %v2194 = vmul.f32 %v2188, %v2191
    %v2195 = vmul.f32 %v2189, %v2191
    %v2196 = vadd.f32 %v2182, %v2192
    %v2197 = vadd.f32 %v2183, %v2193
    %v2198 = vadd.f32 %v2184, %v2194
    %v2199 = vadd.f32 %v2185, %v2195
    %v2200 = vld [vmem:[#allocation2 + $0x6] sm:$0xff]
    %v2201 = vld [vmem:[#allocation2 + $0xe] sm:$0xff]
    %v2202 = vld [vmem:[#allocation2 + $0x26] sm:$0xff]
    %v2203 = vld [vmem:[#allocation2 + $0x2e] sm:$0xff]
    %v2204 = vld [vmem:[%s6 + $0x5] sm:$0x1]
    %v2205 = vperm.slane %v2204, 0
    %v2206 = vmul.f32 %v2200, %v2205
    %v2207 = vmul.f32 %v2201, %v2205
    %v2208 = vmul.f32 %v2202, %v2205
    %v2209 = vmul.f32 %v2203, %v2205
    %v2210 = vadd.f32 %v2196, %v2206
    %v2211 = vadd.f32 %v2197, %v2207
    %v2212 = vadd.f32 %v2198, %v2208
    %v2213 = vadd.f32 %v2199, %v2209
    %v2214 = vld [vmem:[#allocation2 + $0x7] sm:$0xff]
    %v2215 = vld [vmem:[#allocation2 + $0xf] sm:$0xff]
    %v2216 = vld [vmem:[#allocation2 + $0x27] sm:$0xff]
    %v2217 = vld [vmem:[#allocation2 + $0x2f] sm:$0xff]
    %v2218 = vld [vmem:[%s6 + $0x6] sm:$0x1]
    %v2219 = vperm.slane %v2218, 0
    %v2220 = vmul.f32 %v2214, %v2219
    %v2221 = vmul.f32 %v2215, %v2219
    %v2222 = vmul.f32 %v2216, %v2219
    %v2223 = vmul.f32 %v2217, %v2219
    %v2224 = vadd.f32 %v2210, %v2220
    %v2225 = vadd.f32 %v2211, %v2221
    %v2226 = vadd.f32 %v2212, %v2222
    %v2227 = vadd.f32 %v2213, %v2223
    %v2228 = vld [vmem:[#allocation2 + $0x8] sm:$0xff]
    %v2229 = vld [vmem:[#allocation2 + $0x10] sm:$0xff]
    %v2230 = vld [vmem:[#allocation2 + $0x28] sm:$0xff]
    %v2231 = vld [vmem:[#allocation2 + $0x30] sm:$0xff]
    %v2232 = vld [vmem:[%s6 + $0x7] sm:$0x1]
    %v2233 = vperm.slane %v2232, 0
    %v2234 = vmul.f32 %v2228, %v2233
    %v2235 = vmul.f32 %v2229, %v2233
    %v2236 = vmul.f32 %v2230, %v2233
    %v2237 = vmul.f32 %v2231, %v2233
    %v2238 = vadd.f32 %v2224, %v2234
    %v2239 = vadd.f32 %v2225, %v2235
    %v2240 = vadd.f32 %v2226, %v2236
    %v2241 = vadd.f32 %v2227, %v2237
    %v2242 = vld [vmem:[#allocation2 + $0x11] sm:$0xff]
    %v2243 = vld [vmem:[#allocation2 + $0x31] sm:$0xff]
    %v2244 = vld [vmem:[%s6 + $0x8] sm:$0x1]
    %v2245 = vperm.slane %v2244, 0
    %v2246 = vmul.f32 %v2131, %v2245
    %v2247 = vmul.f32 %v2242, %v2245
    %v2248 = vmul.f32 %v2133, %v2245
    %v2249 = vmul.f32 %v2243, %v2245
    %v2250 = vadd.f32 %v2238, %v2246
    %v2251 = vadd.f32 %v2239, %v2247
    %v2252 = vadd.f32 %v2240, %v2248
    %v2253 = vadd.f32 %v2241, %v2249
    %v2254 = vld [vmem:[#allocation2 + $0x12] sm:$0xff]
    %v2255 = vld [vmem:[#allocation2 + $0x32] sm:$0xff]
    %v2256 = vld [vmem:[%s6 + $0x9] sm:$0x1]
    %v2257 = vperm.slane %v2256, 0
    %v2258 = vmul.f32 %v2145, %v2257
    %v2259 = vmul.f32 %v2254, %v2257
    %v2260 = vmul.f32 %v2147, %v2257
    %v2261 = vmul.f32 %v2255, %v2257
    %v2262 = vadd.f32 %v2250, %v2258
    %v2263 = vadd.f32 %v2251, %v2259
    %v2264 = vadd.f32 %v2252, %v2260
    %v2265 = vadd.f32 %v2253, %v2261
    %v2266 = vld [vmem:[#allocation2 + $0x13] sm:$0xff]
    %v2267 = vld [vmem:[#allocation2 + $0x33] sm:$0xff]
    %v2268 = vld [vmem:[%s6 + $0xa] sm:$0x1]
    %v2269 = vperm.slane %v2268, 0
    %v2270 = vmul.f32 %v2159, %v2269
    %v2271 = vmul.f32 %v2266, %v2269
    %v2272 = vmul.f32 %v2161, %v2269
    %v2273 = vmul.f32 %v2267, %v2269
    %v2274 = vadd.f32 %v2262, %v2270
    %v2275 = vadd.f32 %v2263, %v2271
    %v2276 = vadd.f32 %v2264, %v2272
    %v2277 = vadd.f32 %v2265, %v2273
    %v2278 = vld [vmem:[#allocation2 + $0x14] sm:$0xff]
    %v2279 = vld [vmem:[#allocation2 + $0x34] sm:$0xff]
    %v2280 = vld [vmem:[%s6 + $0xb] sm:$0x1]
    %v2281 = vperm.slane %v2280, 0
    %v2282 = vmul.f32 %v2173, %v2281
    %v2283 = vmul.f32 %v2278, %v2281
    %v2284 = vmul.f32 %v2175, %v2281
    %v2285 = vmul.f32 %v2279, %v2281
    %v2286 = vadd.f32 %v2274, %v2282
    %v2287 = vadd.f32 %v2275, %v2283
    %v2288 = vadd.f32 %v2276, %v2284
    %v2289 = vadd.f32 %v2277, %v2285
    %v2290 = vld [vmem:[#allocation2 + $0x15] sm:$0xff]
    %v2291 = vld [vmem:[#allocation2 + $0x35] sm:$0xff]
    %v2292 = vld [vmem:[%s6 + $0xc] sm:$0x1]
    %v2293 = vperm.slane %v2292, 0
    %v2294 = vmul.f32 %v2187, %v2293
    %v2295 = vmul.f32 %v2290, %v2293
    %v2296 = vmul.f32 %v2189, %v2293
    %v2297 = vmul.f32 %v2291, %v2293
    %v2298 = vadd.f32 %v2286, %v2294
    %v2299 = vadd.f32 %v2287, %v2295
    %v2300 = vadd.f32 %v2288, %v2296
    %v2301 = vadd.f32 %v2289, %v2297
    %v2302 = vld [vmem:[#allocation2 + $0x16] sm:$0xff]
    %v2303 = vld [vmem:[#allocation2 + $0x36] sm:$0xff]
    %v2304 = vld [vmem:[%s6 + $0xd] sm:$0x1]
    %v2305 = vperm.slane %v2304, 0
    %v2306 = vmul.f32 %v2201, %v2305
    %v2307 = vmul.f32 %v2302, %v2305
    %v2308 = vmul.f32 %v2203, %v2305
    %v2309 = vmul.f32 %v2303, %v2305
    %v2310 = vadd.f32 %v2298, %v2306
    %v2311 = vadd.f32 %v2299, %v2307
    %v2312 = vadd.f32 %v2300, %v2308
    %v2313 = vadd.f32 %v2301, %v2309
    %v2314 = vld [vmem:[#allocation2 + $0x17] sm:$0xff]
    %v2315 = vld [vmem:[#allocation2 + $0x37] sm:$0xff]
    %v2316 = vld [vmem:[%s6 + $0xe] sm:$0x1]
    %v2317 = vperm.slane %v2316, 0
    %v2318 = vmul.f32 %v2215, %v2317
    %v2319 = vmul.f32 %v2314, %v2317
    %v2320 = vmul.f32 %v2217, %v2317
    %v2321 = vmul.f32 %v2315, %v2317
    %v2322 = vadd.f32 %v2310, %v2318
    %v2323 = vadd.f32 %v2311, %v2319
    %v2324 = vadd.f32 %v2312, %v2320
    %v2325 = vadd.f32 %v2313, %v2321
    %vm2326 = vcmask 261120
    %v2327 = vsel %vm2326, %v2322, 0.0
    %2328 = vadd.xlane.f32.xlu0 %v2327
    %v2329 = vpop.xlane.xlu0 %2328
    %v2330 = vsel %vm2326, %v2323, 0.0
    %2331 = vadd.xlane.f32.xlu0 %v2330
    %v2332 = vpop.xlane.xlu0 %2331
    %v2333 = vsel %vm2326, %v2324, 0.0
    %2334 = vadd.xlane.f32.xlu0 %v2333
    %v2335 = vpop.xlane.xlu0 %2334
    %v2336 = vsel %vm2326, %v2325, 0.0
    %2337 = vadd.xlane.f32.xlu0 %v2336
    %v2338 = vpop.xlane.xlu0 %2337
    %s2339 = sld [smem:[#allocation3]]
    %v2340 = vstv %s2339
    %v2341 = vadd.f32 %v2329, %v2340
    %v2342 = vadd.f32 %v2332, %v2340
    %v2343 = vadd.f32 %v2335, %v2340
    %v2344 = vadd.f32 %v2338, %v2340
    %2349 = vrot.lane.b32.xlu0 %v2322, 96
    %v2350 = vpop.permute.xlu0 %2349
    %2351 = vrot.lane.b32.xlu0 %v2323, 96
    %v2352 = vpop.permute.xlu0 %2351
    %2353 = vrot.lane.b32.xlu0 %v2324, 96
    %v2354 = vpop.permute.xlu0 %2353
    %2355 = vrot.lane.b32.xlu0 %v2325, 96
    %v2356 = vpop.permute.xlu0 %2355
    %v2361 = vsel %vm2326, %v2350, 0.0
    %2362 = vadd.xlane.f32.xlu0 %v2361
    %v2363 = vpop.xlane.xlu0 %2362
    %v2364 = vsel %vm2326, %v2352, 0.0
    %2365 = vadd.xlane.f32.xlu0 %v2364
    %v2366 = vpop.xlane.xlu0 %2365
    %v2367 = vsel %vm2326, %v2354, 0.0
    %2368 = vadd.xlane.f32.xlu0 %v2367
    %v2369 = vpop.xlane.xlu0 %2368
    %v2370 = vsel %vm2326, %v2356, 0.0
    %2371 = vadd.xlane.f32.xlu0 %v2370
    %v2372 = vpop.xlane.xlu0 %2371
    %s2373 = sld [smem:[#allocation3 + $0x1]]
    %v2374 = vstv %s2373
    %v2375 = vadd.f32 %v2363, %v2374
    %v2376 = vadd.f32 %v2366, %v2374
    %v2377 = vadd.f32 %v2369, %v2374
    %v2378 = vadd.f32 %v2372, %v2374
    %v2379 = vsub.f32 0.0, %v2341
    %v2380 = vsub.f32 0.0, %v2342
    %v2381 = vsub.f32 0.0, %v2343
    %v2382 = vsub.f32 0.0, %v2344
    %v2383 = vmul.f32 %v2379, 1.442695
    %v2384 = vpow.pop %v2383
    %v2385 = vmul.f32 %v2380, 1.442695
    %v2386 = vpow.pop %v2385
    %v2387 = vmul.f32 %v2381, 1.442695
    %v2388 = vpow.pop %v2387
    %v2389 = vmul.f32 %v2382, 1.442695
    %v2390 = vpow.pop %v2389
    %v2391 = vadd.f32 %v2384, 1.0
    %v2392 = vadd.f32 %v2386, 1.0
    %v2393 = vadd.f32 %v2388, 1.0
    %v2394 = vadd.f32 %v2390, 1.0
    %v2395 = vrcp.pop %v2391
    %v2396 = vmul.f32 %v2391, %v2395
    %v2397 = vsub.f32 1.0, %v2396
    %v2398 = vmul.f32 %v2395, %v2397
    %v2399 = vadd.f32 %v2395, %v2398
    %vm2400 = vweird.f32 %v2391
    %vm2401 = vweird.f32 %v2395
    %vm2402 = vmor %vm2400, %vm2401
    %v2403 = vsel %vm2402, %v2395, %v2399
    %v2404 = vand.u32 2147483647, %v2391
    %vm2405 = vcmp.eq.f32.partialorder %v2404, 8.507059e+37
    %v2406 = vand.u32 %v2391, 2147483648
    %v2407 = vor.u32 1.1754944e-38, %v2406
    %v2408 = vsel %vm2405, %v2407, %v2403
    %v2409 = vmul.f32 1.0, %v2408
    %v2410 = vrcp.pop %v2392
    %v2411 = vmul.f32 %v2392, %v2410
    %v2412 = vsub.f32 1.0, %v2411
    %v2413 = vmul.f32 %v2410, %v2412
    %v2414 = vadd.f32 %v2410, %v2413
    %vm2415 = vweird.f32 %v2392
    %vm2416 = vweird.f32 %v2410
    %vm2417 = vmor %vm2415, %vm2416
    %v2418 = vsel %vm2417, %v2410, %v2414
    %v2419 = vand.u32 2147483647, %v2392
    %vm2420 = vcmp.eq.f32.partialorder %v2419, 8.507059e+37
    %v2421 = vand.u32 %v2392, 2147483648
    %v2422 = vor.u32 1.1754944e-38, %v2421
    %v2423 = vsel %vm2420, %v2422, %v2418
    %v2424 = vmul.f32 1.0, %v2423
    %v2425 = vrcp.pop %v2393
    %v2426 = vmul.f32 %v2393, %v2425
    %v2427 = vsub.f32 1.0, %v2426
    %v2428 = vmul.f32 %v2425, %v2427
    %v2429 = vadd.f32 %v2425, %v2428
    %vm2430 = vweird.f32 %v2393
    %vm2431 = vweird.f32 %v2425
    %vm2432 = vmor %vm2430, %vm2431
    %v2433 = vsel %vm2432, %v2425, %v2429
    %v2434 = vand.u32 2147483647, %v2393
    %vm2435 = vcmp.eq.f32.partialorder %v2434, 8.507059e+37
    %v2436 = vand.u32 %v2393, 2147483648
    %v2437 = vor.u32 1.1754944e-38, %v2436
    %v2438 = vsel %vm2435, %v2437, %v2433
    %v2439 = vmul.f32 1.0, %v2438
    %v2440 = vrcp.pop %v2394
    %v2441 = vmul.f32 %v2394, %v2440
    %v2442 = vsub.f32 1.0, %v2441
    %v2443 = vmul.f32 %v2440, %v2442
    %v2444 = vadd.f32 %v2440, %v2443
    %vm2445 = vweird.f32 %v2394
    %vm2446 = vweird.f32 %v2440
    %vm2447 = vmor %vm2445, %vm2446
    %v2448 = vsel %vm2447, %v2440, %v2444
    %v2449 = vand.u32 2147483647, %v2394
    %vm2450 = vcmp.eq.f32.partialorder %v2449, 8.507059e+37
    %v2451 = vand.u32 %v2394, 2147483648
    %v2452 = vor.u32 1.1754944e-38, %v2451
    %v2453 = vsel %vm2450, %v2452, %v2448
    %v2454 = vmul.f32 1.0, %v2453
    %vm2455 = vcmask 7168
    %2456 = vst.msk [vmem:[%s8] sm:$0xff] %vm2455, %v2409
    %2457 = vst.msk [vmem:[%s8 + $0x8] sm:$0xff] %vm2455, %v2424
    %2458 = vst.msk [vmem:[%s8 + $0x10] sm:$0xff] %vm2455, %v2439
    %2459 = vst.msk [vmem:[%s8 + $0x18] sm:$0xff] %vm2455, %v2454
    %v2460 = vsub.f32 0.0, %v2375
    %v2461 = vsub.f32 0.0, %v2376
    %v2462 = vsub.f32 0.0, %v2377
    %v2463 = vsub.f32 0.0, %v2378
    %v2464 = vmul.f32 %v2460, 1.442695
    %v2465 = vpow.pop %v2464
    %v2466 = vmul.f32 %v2461, 1.442695
    %v2467 = vpow.pop %v2466
    %v2468 = vmul.f32 %v2462, 1.442695
    %v2469 = vpow.pop %v2468
    %v2470 = vmul.f32 %v2463, 1.442695
    %v2471 = vpow.pop %v2470
    %v2472 = vadd.f32 %v2465, 1.0
    %v2473 = vadd.f32 %v2467, 1.0
    %v2474 = vadd.f32 %v2469, 1.0
    %v2475 = vadd.f32 %v2471, 1.0
    %v2476 = vrcp.pop %v2472
    %v2477 = vmul.f32 %v2472, %v2476
    %v2478 = vsub.f32 1.0, %v2477
    %v2479 = vmul.f32 %v2476, %v2478
    %v2480 = vadd.f32 %v2476, %v2479
    %vm2481 = vweird.f32 %v2472
    %vm2482 = vweird.f32 %v2476
    %vm2483 = vmor %vm2481, %vm2482
    %v2484 = vsel %vm2483, %v2476, %v2480
    %v2485 = vand.u32 2147483647, %v2472
    %vm2486 = vcmp.eq.f32.partialorder %v2485, 8.507059e+37
    %v2487 = vand.u32 %v2472, 2147483648
    %v2488 = vor.u32 1.1754944e-38, %v2487
    %v2489 = vsel %vm2486, %v2488, %v2484
    %v2490 = vmul.f32 1.0, %v2489
    %v2491 = vrcp.pop %v2473
    %v2492 = vmul.f32 %v2473, %v2491
    %v2493 = vsub.f32 1.0, %v2492
    %v2494 = vmul.f32 %v2491, %v2493
    %v2495 = vadd.f32 %v2491, %v2494
    %vm2496 = vweird.f32 %v2473
    %vm2497 = vweird.f32 %v2491
    %vm2498 = vmor %vm2496, %vm2497
    %v2499 = vsel %vm2498, %v2491, %v2495
    %v2500 = vand.u32 2147483647, %v2473
    %vm2501 = vcmp.eq.f32.partialorder %v2500, 8.507059e+37
    %v2502 = vand.u32 %v2473, 2147483648
    %v2503 = vor.u32 1.1754944e-38, %v2502
    %v2504 = vsel %vm2501, %v2503, %v2499
    %v2505 = vmul.f32 1.0, %v2504
    %v2506 = vrcp.pop %v2474
    %v2507 = vmul.f32 %v2474, %v2506
    %v2508 = vsub.f32 1.0, %v2507
    %v2509 = vmul.f32 %v2506, %v2508
    %v2510 = vadd.f32 %v2506, %v2509
    %vm2511 = vweird.f32 %v2474
    %vm2512 = vweird.f32 %v2506
    %vm2513 = vmor %vm2511, %vm2512
    %v2514 = vsel %vm2513, %v2506, %v2510
    %v2515 = vand.u32 2147483647, %v2474
    %vm2516 = vcmp.eq.f32.partialorder %v2515, 8.507059e+37
    %v2517 = vand.u32 %v2474, 2147483648
    %v2518 = vor.u32 1.1754944e-38, %v2517
    %v2519 = vsel %vm2516, %v2518, %v2514
    %v2520 = vmul.f32 1.0, %v2519
    %v2521 = vrcp.pop %v2475
    %v2522 = vmul.f32 %v2475, %v2521
    %v2523 = vsub.f32 1.0, %v2522
    %v2524 = vmul.f32 %v2521, %v2523
    %v2525 = vadd.f32 %v2521, %v2524
    %vm2526 = vweird.f32 %v2475
    %vm2527 = vweird.f32 %v2521
    %vm2528 = vmor %vm2526, %vm2527
    %v2529 = vsel %vm2528, %v2521, %v2525
    %v2530 = vand.u32 2147483647, %v2475
    %vm2531 = vcmp.eq.f32.partialorder %v2530, 8.507059e+37
    %v2532 = vand.u32 %v2475, 2147483648
    %v2533 = vor.u32 1.1754944e-38, %v2532
    %v2534 = vsel %vm2531, %v2533, %v2529
    %v2535 = vmul.f32 1.0, %v2534
    %vm2536 = vcmask 15368
    %2537 = vst.msk [vmem:[%s8] sm:$0xff] %vm2536, %v2490
    %2538 = vst.msk [vmem:[%s8 + $0x8] sm:$0xff] %vm2536, %v2505
    %2539 = vst.msk [vmem:[%s8 + $0x10] sm:$0xff] %vm2536, %v2520
    %2540 = vst.msk [vmem:[%s8 + $0x18] sm:$0xff] %vm2536, %v2535
    // Predicated region
    $region38: #{refine_discriminator_forward.1} parent=1 // pred_check
      _
    $region39: #{refine_discriminator_forward.1} parent=1 // pred_check_branch
      %2542 = sbr.rel (0) target = $region41
    $region40: #{refine_discriminator_forward.1} parent=1 // pred_region
      _
    $region41: #{refine_discriminator_forward.1} parent=1 // pred_fallthru
      _
    // Predicated region
    $region42: #{refine_discriminator_forward.1} parent=1 // pred_check
      _
    $region43: #{refine_discriminator_forward.1} parent=1 // pred_check_branch
      %2544 = sbr.rel (0) target = $region45
    $region44: #{refine_discriminator_forward.1} parent=1 // pred_region
      _
    $region45: #{refine_discriminator_forward.1} parent=1 // pred_fallthru
      _
    %2545 = vsyncpa [#allocation4], 1

</llo_original>
